<compile_context>
chip_gen: v6e
topology: v6e:2x2x1
jax: 0.10.0
libtpu: 0.0.40
codegen_flags: <defaults>
</compile_context>

<pallas_src>
import functools

import jax
import jax.numpy as jnp
import numpy as np
from jax import lax
from jax.experimental import pallas as pl
from jax.experimental.pallas import tpu as pltpu


def _round_up(x, m):
    return (x + m - 1) // m * m


def _lstm_kernel(x_ref,                        # (T*Bp, Dp)  bf16, all timesteps
                 wih0_ref, b0_ref,             # (Dp, 4H) bf16, (1, 4H) f32
                 wbig_hbm,                     # (2H, 8H) bf16, HBM (pl.ANY)
                 b1_ref,                       # (1, 4H) f32
                 wfc_hbm,                      # (H, Cp) bf16, HBM (pl.ANY)
                 bfc_ref,                      # (1, Cp) f32
                 out_ref,                      # (Bp, Cp) f32
                 xp_sc,                        # VMEM (T*Bp, 4H) f32
                 wbig_sc,                      # VMEM (2H, 8H) bf16
                 wfc_sc,                       # VMEM (H, Cp) bf16
                 sem,                          # DMA sems (2,)
                 *, seq_len, batch_pad, hidden_size):
    T = seq_len
    Bp = batch_pad
    H = hidden_size

    # ---- Start manual DMAs of the big weights; they overlap the hoisted
    # projection below instead of blocking the pallas_call prologue. ----
    cp_wbig = pltpu.make_async_copy(wbig_hbm, wbig_sc, sem.at[0])
    cp_wfc = pltpu.make_async_copy(wfc_hbm, wfc_sc, sem.at[1])
    cp_wbig.start()
    cp_wfc.start()

    # ---- Hoisted layer-0 input projection for ALL timesteps (one MXU matmul);
    # biases b_ih_l0 + b_hh_l0 are folded into b0. ----
    xp_sc[...] = (jnp.dot(x_ref[...], wih0_ref[...],
                          preferred_element_type=jnp.float32)
                  + b0_ref[...])                       # (T*Bp, 4H) f32

    # Hoist the layer-1 bias broadcast out of the unrolled loop.
    b1b = jnp.broadcast_to(b1_ref[...], (Bp, 4 * H))

    def gates_to_hc(g, c_prev):
        # PyTorch gate order: i, f, g, o.  H = 128 -> lane-aligned slices.
        i_g = jax.nn.sigmoid(g[:, 0 * H:1 * H])
        f_g = jax.nn.sigmoid(g[:, 1 * H:2 * H])
        g_g = jnp.tanh(g[:, 2 * H:3 * H])
        o_g = jax.nn.sigmoid(g[:, 3 * H:4 * H])
        c_new = f_g * c_prev + i_g * g_g
        h_new = o_g * jnp.tanh(c_new)
        return h_new, c_new

    # Recurrent weights needed from step 0 onwards.
    cp_wbig.wait()

    def step(t, carry):
        # rec0 = h0_{t-1} @ whh0 (recurrent part of layer-0's gates), carried
        # from the previous iteration's fused matmul.
        rec0, c0, h1, c1 = carry

        # Layer 0: precomputed input projection + carried recurrent term.
        off = pl.multiple_of(t * Bp, Bp)
        g0 = xp_sc[pl.ds(off, Bp), :] + rec0
        h0, c0 = gates_to_hc(g0, c0)

        # Single fused MXU matmul: [h0_t | h1_{t-1}] (Bp, 2H) x (2H, 8H).
        #   cols [0,4H)   -> h0_t @ wih1 + h1_{t-1} @ whh1   (layer-1 gates)
        #   cols [4H,8H)  -> h0_t @ whh0                     (layer-0 rec, t+1)
        hcat = jnp.concatenate([h0, h1], axis=1).astype(jnp.bfloat16)
        gg = jnp.dot(hcat, wbig_sc[...], preferred_element_type=jnp.float32)

        g1 = gg[:, :4 * H] + b1b
        rec0_next = gg[:, 4 * H:]
        h1, c1 = gates_to_hc(g1, c1)
        return (rec0_next, c0, h1, c1)

    z_h = jnp.zeros((Bp, H), jnp.float32)
    z_g = jnp.zeros((Bp, 4 * H), jnp.float32)     # h0_{-1} @ whh0 == 0
    _, _, h1, _ = lax.fori_loop(0, T, step, (z_g, z_h, z_h, z_h), unroll=True)

    # Final linear head on the last timestep's layer-1 hidden state.
    cp_wfc.wait()
    out_ref[...] = (jnp.dot(h1.astype(jnp.bfloat16), wfc_sc[...],
                            preferred_element_type=jnp.float32)
                    + bfc_ref[...]).astype(out_ref.dtype)


def rnn_forward(x_btd, params, *, hidden_size, num_classes):
    """x_btd: (B, T, D) float32 (batch_first, like PyTorch). Returns (B, num_classes)."""
    B, T, D = x_btd.shape
    H = hidden_size
    C = num_classes

    Bp = _round_up(max(B, 8), 8)     # sublane-pad batch
    Dp = _round_up(D, 128)           # lane-pad input features
    Cp = _round_up(C, 128)           # lane-dense output

    # Time-major, padded, flattened to (T*Bp, Dp), bf16 MXU operand.
    x_tbd = jnp.transpose(x_btd, (1, 0, 2)).astype(jnp.float32)        # (T, B, D)
    x_pad = jnp.zeros((T, Bp, Dp), jnp.float32).at[:, :B, :D].set(x_tbd)
    x_flat = x_pad.reshape(T * Bp, Dp).astype(jnp.bfloat16)

    # Layer-0 input projection weights (pre-transposed, padded, bf16) + folded bias.
    wih0 = (jnp.zeros((Dp, 4 * H), jnp.float32)
            .at[:D, :].set(params["w_ih_l0"].T).astype(jnp.bfloat16))
    b0 = (params["b_ih_l0"] + params["b_hh_l0"])[None, :].astype(jnp.float32)

    # Block-stacked recurrent weight:  W_big = [[wih1, whh0], [whh1, 0]]  (2H, 8H)
    wbig = jnp.zeros((2 * H, 8 * H), jnp.float32)
    wbig = wbig.at[:H, :4 * H].set(params["w_ih_l1"].T)
    wbig = wbig.at[H:, :4 * H].set(params["w_hh_l1"].T)
    wbig = wbig.at[:H, 4 * H:].set(params["w_hh_l0"].T)
    wbig = wbig.astype(jnp.bfloat16)
    b1 = (params["b_ih_l1"] + params["b_hh_l1"])[None, :].astype(jnp.float32)

    # FC head, padded to lane-dense output.
    wfc = (jnp.zeros((H, Cp), jnp.float32)
           .at[:, :C].set(params["w_fc"].T).astype(jnp.bfloat16))
    bfc = jnp.zeros((1, Cp), jnp.float32).at[0, :C].set(params["b_fc"])

    full = lambda shape: pl.BlockSpec(shape, lambda i, s=shape: tuple(0 for _ in s))
    hbm = pl.BlockSpec(memory_space=pl.ANY)

    kernel = functools.partial(_lstm_kernel, seq_len=T, batch_pad=Bp,
                               hidden_size=H)

    out_pad = pl.pallas_call(
        kernel,
        out_shape=jax.ShapeDtypeStruct((Bp, Cp), jnp.float32),
        grid_spec=pltpu.PrefetchScalarGridSpec(
            num_scalar_prefetch=0,
            grid=(1,),                                    # single invocation
            in_specs=[
                full((T * Bp, Dp)),                       # x
                full((Dp, 4 * H)), full((1, 4 * H)),      # wih0, b0
                hbm,                                      # wbig (manual DMA)
                full((1, 4 * H)),                         # b1
                hbm,                                      # wfc (manual DMA)
                full((1, Cp)),                            # bfc
            ],
            out_specs=full((Bp, Cp)),
            scratch_shapes=[
                pltpu.VMEM((T * Bp, 4 * H), jnp.float32),     # hoisted projection
                pltpu.VMEM((2 * H, 8 * H), jnp.bfloat16),     # W_big landing buffer
                pltpu.VMEM((H, Cp), jnp.bfloat16),            # W_fc landing buffer
                pltpu.SemaphoreType.DMA((2,)),
            ],
        ),
        compiler_params=pltpu.CompilerParams(
            dimension_semantics=("arbitrary",)),
    )(x_flat, wih0, b0, wbig, b1, wfc, bfc)

    return out_pad[:B, :C]


def _reference_forward(x_btd, params, *, hidden_size):
    """Pure-JAX f32 reference of the same 2-layer LSTM + fc (for verification)."""
    H = hidden_size
    B, T, D = x_btd.shape

    def cell(x_in, h, c, wih, whh, b):
        gates = x_in @ wih.T + h @ whh.T + b
        i = jax.nn.sigmoid(gates[:, 0 * H:1 * H])
        f = jax.nn.sigmoid(gates[:, 1 * H:2 * H])
        g = jnp.tanh(gates[:, 2 * H:3 * H])
        o = jax.nn.sigmoid(gates[:, 3 * H:4 * H])
        c = f * c + i * g
        h = o * jnp.tanh(c)
        return h, c

    h0 = jnp.zeros((B, H)); c0 = jnp.zeros((B, H))
    h1 = jnp.zeros((B, H)); c1 = jnp.zeros((B, H))
    b0 = params["b_ih_l0"] + params["b_hh_l0"]
    b1 = params["b_ih_l1"] + params["b_hh_l1"]
    for t in range(T):
        h0, c0 = cell(x_btd[:, t, :], h0, c0, params["w_ih_l0"], params["w_hh_l0"], b0)
        h1, c1 = cell(h0, h1, c1, params["w_ih_l1"], params["w_hh_l1"], b1)
    return h1 @ params["w_fc"].T + params["b_fc"]


def init_params(key, input_size, hidden_size, num_classes):
    H = hidden_size
    k = 1.0 / np.sqrt(H)
    keys = jax.random.split(key, 10)
    u = lambda kk, shape: jax.random.uniform(kk, shape, jnp.float32, minval=-k, maxval=k)
    return {
        "w_ih_l0": u(keys[0], (4 * H, input_size)),
        "w_hh_l0": u(keys[1], (4 * H, H)),
        "b_ih_l0": u(keys[2], (4 * H,)),
        "b_hh_l0": u(keys[3], (4 * H,)),
        "w_ih_l1": u(keys[4], (4 * H, H)),
        "w_hh_l1": u(keys[5], (4 * H, H)),
        "b_ih_l1": u(keys[6], (4 * H,)),
        "b_hh_l1": u(keys[7], (4 * H,)),
        "w_fc":    u(keys[8], (num_classes, H)),
        "b_fc":    u(keys[9], (num_classes,)),
    }


if __name__ == "__main__":
    # Shapes from the PyTorch module: input_size=28, hidden_size=128,
    # num_layers=2, num_classes=10; small batch/sequence for the demo.
    B, T, D = 2, 8, 28
    H, C = 128, 10

    key = jax.random.PRNGKey(0)
    kx, kp = jax.random.split(key)
    x = jax.random.normal(kx, (B, T, D), dtype=jnp.float32)
    params = init_params(kp, D, H, C)

    out = rnn_forward(x, params, hidden_size=H, num_classes=C)
    out = jax.block_until_ready(out)

    ref = _reference_forward(x, params, hidden_size=H)
    assert out.shape == (B, C)
    # bf16 MXU operands vs. f32 reference -> loosened tolerance.
    assert np.allclose(np.asarray(out), np.asarray(ref), atol=2e-2, rtol=2e-2)

    print("KERNEL_OK")
</pallas_src>

<mosaic_0001>
module attributes {stable_mosaic.version = 11 : i64} {
  func.func @_lstm_kernel(%arg0: i32, %arg1: memref<64x128xbf16, #tpu.memory_space<vmem>>, %arg2: memref<128x512xbf16, #tpu.memory_space<vmem>>, %arg3: memref<1x512xf32, #tpu.memory_space<vmem>>, %arg4: memref<256x1024xbf16, #tpu.memory_space<any>>, %arg5: memref<1x512xf32, #tpu.memory_space<vmem>>, %arg6: memref<128x128xbf16, #tpu.memory_space<any>>, %arg7: memref<1x128xf32, #tpu.memory_space<vmem>>, %arg8: memref<8x128xf32, #tpu.memory_space<vmem>>, %arg9: memref<64x512xf32, #tpu.memory_space<vmem>>, %arg10: memref<256x1024xbf16, #tpu.memory_space<vmem>>, %arg11: memref<128x128xbf16, #tpu.memory_space<vmem>>, %arg12: memref<2x!tpu.dma_semaphore, #tpu.memory_space<semaphore_mem>>) attributes {dimension_semantics = [#tpu.dimension_semantics<arbitrary>], iteration_bounds = array<i64: 1>, scalar_prefetch = 0 : i64, scratch_operands = 4 : i64, tpu.core_type = #tpu.core_type<tc>, window_params = [{pipeline_mode = #tpu.pipeline_mode<synchronous>, transform_indices = @transform_0, window_bounds = array<i64: 64, 128>}, {pipeline_mode = #tpu.pipeline_mode<synchronous>, transform_indices = @transform_1, window_bounds = array<i64: 128, 512>}, {pipeline_mode = #tpu.pipeline_mode<synchronous>, transform_indices = @transform_2, window_bounds = array<i64: 1, 512>}, {}, {pipeline_mode = #tpu.pipeline_mode<synchronous>, transform_indices = @transform_4, window_bounds = array<i64: 1, 512>}, {}, {pipeline_mode = #tpu.pipeline_mode<synchronous>, transform_indices = @transform_6, window_bounds = array<i64: 1, 128>}, {pipeline_mode = #tpu.pipeline_mode<synchronous>, transform_indices = @transform_7, window_bounds = array<i64: 8, 128>}]} {
    %c0_i32 = arith.constant 0 : i32
    %0 = tpu.memref_slice %arg12[%c0_i32] : memref<2x!tpu.dma_semaphore, #tpu.memory_space<semaphore_mem>> -> memref<1x!tpu.dma_semaphore, #tpu.memory_space<semaphore_mem>>
    %1 = tpu.memref_squeeze %0 : memref<1x!tpu.dma_semaphore, #tpu.memory_space<semaphore_mem>> -> memref<!tpu.dma_semaphore, #tpu.memory_space<semaphore_mem>>
    tpu.enqueue_dma source(%arg4 : memref<256x1024xbf16, #tpu.memory_space<any>>) target(%arg10 : memref<256x1024xbf16, #tpu.memory_space<vmem>>) target_semaphore(%1 : memref<!tpu.dma_semaphore, #tpu.memory_space<semaphore_mem>>)
    %c1_i32 = arith.constant 1 : i32
    %2 = tpu.memref_slice %arg12[%c1_i32] : memref<2x!tpu.dma_semaphore, #tpu.memory_space<semaphore_mem>> -> memref<1x!tpu.dma_semaphore, #tpu.memory_space<semaphore_mem>>
    %3 = tpu.memref_squeeze %2 : memref<1x!tpu.dma_semaphore, #tpu.memory_space<semaphore_mem>> -> memref<!tpu.dma_semaphore, #tpu.memory_space<semaphore_mem>>
    tpu.enqueue_dma source(%arg6 : memref<128x128xbf16, #tpu.memory_space<any>>) target(%arg11 : memref<128x128xbf16, #tpu.memory_space<vmem>>) target_semaphore(%3 : memref<!tpu.dma_semaphore, #tpu.memory_space<semaphore_mem>>)
    %c0 = arith.constant 0 : index
    %c0_0 = arith.constant 0 : index
    %4 = vector.load %arg1[%c0, %c0_0] : memref<64x128xbf16, #tpu.memory_space<vmem>>, vector<64x128xbf16>
    %c0_1 = arith.constant 0 : index
    %c0_2 = arith.constant 0 : index
    %5 = vector.load %arg2[%c0_1, %c0_2] : memref<128x512xbf16, #tpu.memory_space<vmem>>, vector<128x512xbf16>
    %cst = arith.constant dense<0.000000e+00> : vector<64x512xf32>
    %6 = tpu.matmul %4, %5, %cst {dimension_numbers = #tpu.dot_dimension_numbers<[1], [0], [0], [1], [0, 0, 1, 1], [], []>} : vector<64x128xbf16>, vector<128x512xbf16>, vector<64x512xf32> -> vector<64x512xf32>
    %c0_3 = arith.constant 0 : index
    %c0_4 = arith.constant 0 : index
    %7 = vector.load %arg3[%c0_3, %c0_4] : memref<1x512xf32, #tpu.memory_space<vmem>>, vector<1x512xf32>
    %8 = vector.broadcast %7 : vector<1x512xf32> to vector<64x512xf32>
    %9 = arith.addf %6, %8 : vector<64x512xf32>
    %c0_5 = arith.constant 0 : index
    %c0_6 = arith.constant 0 : index
    %10 = vector.load %arg9[%c0_5, %c0_6] : memref<64x512xf32, #tpu.memory_space<vmem>>, vector<64x512xf32>
    tpu.vector_store %arg9[%c0_5, %c0_6], %9 {strides = array<i32>} : memref<64x512xf32, #tpu.memory_space<vmem>>, vector<64x512xf32>,
    %c0_7 = arith.constant 0 : index
    %c0_8 = arith.constant 0 : index
    %11 = vector.load %arg5[%c0_7, %c0_8] : memref<1x512xf32, #tpu.memory_space<vmem>>, vector<1x512xf32>
    %12 = vector.shape_cast %11 : vector<1x512xf32> to vector<1x512xf32>
    %13 = vector.broadcast %12 : vector<1x512xf32> to vector<8x512xf32>
    %c0_i32_9 = arith.constant 0 : i32
    %14 = tpu.memref_slice %arg12[%c0_i32_9] : memref<2x!tpu.dma_semaphore, #tpu.memory_space<semaphore_mem>> -> memref<1x!tpu.dma_semaphore, #tpu.memory_space<semaphore_mem>>
    %15 = tpu.memref_squeeze %14 : memref<1x!tpu.dma_semaphore, #tpu.memory_space<semaphore_mem>> -> memref<!tpu.dma_semaphore, #tpu.memory_space<semaphore_mem>>
    tpu.wait_dma2 semaphore(%15 : memref<!tpu.dma_semaphore, #tpu.memory_space<semaphore_mem>>) src(%arg4 : memref<256x1024xbf16, #tpu.memory_space<any>>) dst(%arg10 : memref<256x1024xbf16, #tpu.memory_space<vmem>>)
    %cst_10 = arith.constant 0.000000e+00 : f32
    %16 = vector.broadcast %cst_10 : f32 to vector<8x128xf32>
    %cst_11 = arith.constant 0.000000e+00 : f32
    %17 = vector.broadcast %cst_11 : f32 to vector<8x512xf32>
    %c0_i32_12 = arith.constant 0 : i32
    %c8_i32 = arith.constant 8 : i32
    %18 = arith.muli %c0_i32_12, %c8_i32 : i32
    %19 = tpu.assume_multiple %18, 8 : i32
    %20 = arith.index_cast %19 : i32 to index
    %c0_13 = arith.constant 0 : index
    %21 = vector.load %arg9[%20, %c0_13] : memref<64x512xf32, #tpu.memory_space<vmem>>, vector<8x512xf32>
    %22 = arith.addf %21, %17 : vector<8x512xf32>
    %23 = vector.extract_strided_slice %22 {offsets = [0, 0], sizes = [8, 128], strides = [1, 1]} : vector<8x512xf32> to vector<8x128xf32>
    %24 = arith.negf %23 : vector<8x128xf32>
    %25 = math.exp %24 : vector<8x128xf32>
    %cst_14 = arith.constant 1.000000e+00 : f32
    %26 = vector.broadcast %cst_14 : f32 to vector<8x128xf32>
    %27 = arith.addf %26, %25 : vector<8x128xf32>
    %28 = arith.divf %26, %27 : vector<8x128xf32>
    %29 = vector.extract_strided_slice %22 {offsets = [0, 128], sizes = [8, 128], strides = [1, 1]} : vector<8x512xf32> to vector<8x128xf32>
    %30 = arith.negf %29 : vector<8x128xf32>
    %31 = math.exp %30 : vector<8x128xf32>
    %cst_15 = arith.constant 1.000000e+00 : f32
    %32 = vector.broadcast %cst_15 : f32 to vector<8x128xf32>
    %33 = arith.addf %32, %31 : vector<8x128xf32>
    %34 = arith.divf %32, %33 : vector<8x128xf32>
    %35 = vector.extract_strided_slice %22 {offsets = [0, 256], sizes = [8, 128], strides = [1, 1]} : vector<8x512xf32> to vector<8x128xf32>
    %36 = math.tanh %35 : vector<8x128xf32>
    %37 = vector.extract_strided_slice %22 {offsets = [0, 384], sizes = [8, 128], strides = [1, 1]} : vector<8x512xf32> to vector<8x128xf32>
    %38 = arith.negf %37 : vector<8x128xf32>
    %39 = math.exp %38 : vector<8x128xf32>
    %cst_16 = arith.constant 1.000000e+00 : f32
    %40 = vector.broadcast %cst_16 : f32 to vector<8x128xf32>
    %41 = arith.addf %40, %39 : vector<8x128xf32>
    %42 = arith.divf %40, %41 : vector<8x128xf32>
    %43 = arith.mulf %34, %16 : vector<8x128xf32>
    %44 = arith.mulf %28, %36 : vector<8x128xf32>
    %45 = arith.addf %43, %44 : vector<8x128xf32>
    %46 = math.tanh %45 : vector<8x128xf32>
    %47 = arith.mulf %42, %46 : vector<8x128xf32>
    %48 = tpu.concatenate %47, %16 in 1 : vector<8x128xf32>, vector<8x128xf32> -> vector<8x256xf32>
    %49 = arith.truncf %48 : vector<8x256xf32> to vector<8x256xbf16>
    %c0_17 = arith.constant 0 : index
    %c0_18 = arith.constant 0 : index
    %50 = vector.load %arg10[%c0_17, %c0_18] : memref<256x1024xbf16, #tpu.memory_space<vmem>>, vector<256x1024xbf16>
    %cst_19 = arith.constant dense<0.000000e+00> : vector<8x1024xf32>
    %51 = tpu.matmul %49, %50, %cst_19 {dimension_numbers = #tpu.dot_dimension_numbers<[1], [0], [0], [1], [0, 0, 1, 1], [], []>} : vector<8x256xbf16>, vector<256x1024xbf16>, vector<8x1024xf32> -> vector<8x1024xf32>
    %52 = vector.extract_strided_slice %51 {offsets = [0, 0], sizes = [8, 512], strides = [1, 1]} : vector<8x1024xf32> to vector<8x512xf32>
    %53 = arith.addf %52, %13 : vector<8x512xf32>
    %54 = vector.extract_strided_slice %51 {offsets = [0, 512], sizes = [8, 512], strides = [1, 1]} : vector<8x1024xf32> to vector<8x512xf32>
    %55 = vector.extract_strided_slice %53 {offsets = [0, 0], sizes = [8, 128], strides = [1, 1]} : vector<8x512xf32> to vector<8x128xf32>
    %56 = arith.negf %55 : vector<8x128xf32>
    %57 = math.exp %56 : vector<8x128xf32>
    %cst_20 = arith.constant 1.000000e+00 : f32
    %58 = vector.broadcast %cst_20 : f32 to vector<8x128xf32>
    %59 = arith.addf %58, %57 : vector<8x128xf32>
    %60 = arith.divf %58, %59 : vector<8x128xf32>
    %61 = vector.extract_strided_slice %53 {offsets = [0, 128], sizes = [8, 128], strides = [1, 1]} : vector<8x512xf32> to vector<8x128xf32>
    %62 = arith.negf %61 : vector<8x128xf32>
    %63 = math.exp %62 : vector<8x128xf32>
    %cst_21 = arith.constant 1.000000e+00 : f32
    %64 = vector.broadcast %cst_21 : f32 to vector<8x128xf32>
    %65 = arith.addf %64, %63 : vector<8x128xf32>
    %66 = arith.divf %64, %65 : vector<8x128xf32>
    %67 = vector.extract_strided_slice %53 {offsets = [0, 256], sizes = [8, 128], strides = [1, 1]} : vector<8x512xf32> to vector<8x128xf32>
    %68 = math.tanh %67 : vector<8x128xf32>
    %69 = vector.extract_strided_slice %53 {offsets = [0, 384], sizes = [8, 128], strides = [1, 1]} : vector<8x512xf32> to vector<8x128xf32>
    %70 = arith.negf %69 : vector<8x128xf32>
    %71 = math.exp %70 : vector<8x128xf32>
    %cst_22 = arith.constant 1.000000e+00 : f32
    %72 = vector.broadcast %cst_22 : f32 to vector<8x128xf32>
    %73 = arith.addf %72, %71 : vector<8x128xf32>
    %74 = arith.divf %72, %73 : vector<8x128xf32>
    %75 = arith.mulf %66, %16 : vector<8x128xf32>
    %76 = arith.mulf %60, %68 : vector<8x128xf32>
    %77 = arith.addf %75, %76 : vector<8x128xf32>
    %78 = math.tanh %77 : vector<8x128xf32>
    %79 = arith.mulf %74, %78 : vector<8x128xf32>
    %c1_i32_23 = arith.constant 1 : i32
    %c8_i32_24 = arith.constant 8 : i32
    %80 = arith.muli %c1_i32_23, %c8_i32_24 : i32
    %81 = tpu.assume_multiple %80, 8 : i32
    %82 = arith.index_cast %81 : i32 to index
    %c0_25 = arith.constant 0 : index
    %83 = vector.load %arg9[%82, %c0_25] : memref<64x512xf32, #tpu.memory_space<vmem>>, vector<8x512xf32>
    %84 = arith.addf %83, %54 : vector<8x512xf32>
    %85 = vector.extract_strided_slice %84 {offsets = [0, 0], sizes = [8, 128], strides = [1, 1]} : vector<8x512xf32> to vector<8x128xf32>
    %86 = arith.negf %85 : vector<8x128xf32>
    %87 = math.exp %86 : vector<8x128xf32>
    %cst_26 = arith.constant 1.000000e+00 : f32
    %88 = vector.broadcast %cst_26 : f32 to vector<8x128xf32>
    %89 = arith.addf %88, %87 : vector<8x128xf32>
    %90 = arith.divf %88, %89 : vector<8x128xf32>
    %91 = vector.extract_strided_slice %84 {offsets = [0, 128], sizes = [8, 128], strides = [1, 1]} : vector<8x512xf32> to vector<8x128xf32>
    %92 = arith.negf %91 : vector<8x128xf32>
    %93 = math.exp %92 : vector<8x128xf32>
    %cst_27 = arith.constant 1.000000e+00 : f32
    %94 = vector.broadcast %cst_27 : f32 to vector<8x128xf32>
    %95 = arith.addf %94, %93 : vector<8x128xf32>
    %96 = arith.divf %94, %95 : vector<8x128xf32>
    %97 = vector.extract_strided_slice %84 {offsets = [0, 256], sizes = [8, 128], strides = [1, 1]} : vector<8x512xf32> to vector<8x128xf32>
    %98 = math.tanh %97 : vector<8x128xf32>
    %99 = vector.extract_strided_slice %84 {offsets = [0, 384], sizes = [8, 128], strides = [1, 1]} : vector<8x512xf32> to vector<8x128xf32>
    %100 = arith.negf %99 : vector<8x128xf32>
    %101 = math.exp %100 : vector<8x128xf32>
    %cst_28 = arith.constant 1.000000e+00 : f32
    %102 = vector.broadcast %cst_28 : f32 to vector<8x128xf32>
    %103 = arith.addf %102, %101 : vector<8x128xf32>
    %104 = arith.divf %102, %103 : vector<8x128xf32>
    %105 = arith.mulf %96, %45 : vector<8x128xf32>
    %106 = arith.mulf %90, %98 : vector<8x128xf32>
    %107 = arith.addf %105, %106 : vector<8x128xf32>
    %108 = math.tanh %107 : vector<8x128xf32>
    %109 = arith.mulf %104, %108 : vector<8x128xf32>
    %110 = tpu.concatenate %109, %79 in 1 : vector<8x128xf32>, vector<8x128xf32> -> vector<8x256xf32>
    %111 = arith.truncf %110 : vector<8x256xf32> to vector<8x256xbf16>
    %c0_29 = arith.constant 0 : index
    %c0_30 = arith.constant 0 : index
    %112 = vector.load %arg10[%c0_29, %c0_30] : memref<256x1024xbf16, #tpu.memory_space<vmem>>, vector<256x1024xbf16>
    %cst_31 = arith.constant dense<0.000000e+00> : vector<8x1024xf32>
    %113 = tpu.matmul %111, %112, %cst_31 {dimension_numbers = #tpu.dot_dimension_numbers<[1], [0], [0], [1], [0, 0, 1, 1], [], []>} : vector<8x256xbf16>, vector<256x1024xbf16>, vector<8x1024xf32> -> vector<8x1024xf32>
    %114 = vector.extract_strided_slice %113 {offsets = [0, 0], sizes = [8, 512], strides = [1, 1]} : vector<8x1024xf32> to vector<8x512xf32>
    %115 = arith.addf %114, %13 : vector<8x512xf32>
    %116 = vector.extract_strided_slice %113 {offsets = [0, 512], sizes = [8, 512], strides = [1, 1]} : vector<8x1024xf32> to vector<8x512xf32>
    %117 = vector.extract_strided_slice %115 {offsets = [0, 0], sizes = [8, 128], strides = [1, 1]} : vector<8x512xf32> to vector<8x128xf32>
    %118 = arith.negf %117 : vector<8x128xf32>
    %119 = math.exp %118 : vector<8x128xf32>
    %cst_32 = arith.constant 1.000000e+00 : f32
    %120 = vector.broadcast %cst_32 : f32 to vector<8x128xf32>
    %121 = arith.addf %120, %119 : vector<8x128xf32>
    %122 = arith.divf %120, %121 : vector<8x128xf32>
    %123 = vector.extract_strided_slice %115 {offsets = [0, 128], sizes = [8, 128], strides = [1, 1]} : vector<8x512xf32> to vector<8x128xf32>
    %124 = arith.negf %123 : vector<8x128xf32>
    %125 = math.exp %124 : vector<8x128xf32>
    %cst_33 = arith.constant 1.000000e+00 : f32
    %126 = vector.broadcast %cst_33 : f32 to vector<8x128xf32>
    %127 = arith.addf %126, %125 : vector<8x128xf32>
    %128 = arith.divf %126, %127 : vector<8x128xf32>
    %129 = vector.extract_strided_slice %115 {offsets = [0, 256], sizes = [8, 128], strides = [1, 1]} : vector<8x512xf32> to vector<8x128xf32>
    %130 = math.tanh %129 : vector<8x128xf32>
    %131 = vector.extract_strided_slice %115 {offsets = [0, 384], sizes = [8, 128], strides = [1, 1]} : vector<8x512xf32> to vector<8x128xf32>
    %132 = arith.negf %131 : vector<8x128xf32>
    %133 = math.exp %132 : vector<8x128xf32>
    %cst_34 = arith.constant 1.000000e+00 : f32
    %134 = vector.broadcast %cst_34 : f32 to vector<8x128xf32>
    %135 = arith.addf %134, %133 : vector<8x128xf32>
    %136 = arith.divf %134, %135 : vector<8x128xf32>
    %137 = arith.mulf %128, %77 : vector<8x128xf32>
    %138 = arith.mulf %122, %130 : vector<8x128xf32>
    %139 = arith.addf %137, %138 : vector<8x128xf32>
    %140 = math.tanh %139 : vector<8x128xf32>
    %141 = arith.mulf %136, %140 : vector<8x128xf32>
    %c2_i32 = arith.constant 2 : i32
    %c8_i32_35 = arith.constant 8 : i32
    %142 = arith.muli %c2_i32, %c8_i32_35 : i32
    %143 = tpu.assume_multiple %142, 8 : i32
    %144 = arith.index_cast %143 : i32 to index
    %c0_36 = arith.constant 0 : index
    %145 = vector.load %arg9[%144, %c0_36] : memref<64x512xf32, #tpu.memory_space<vmem>>, vector<8x512xf32>
    %146 = arith.addf %145, %116 : vector<8x512xf32>
    %147 = vector.extract_strided_slice %146 {offsets = [0, 0], sizes = [8, 128], strides = [1, 1]} : vector<8x512xf32> to vector<8x128xf32>
    %148 = arith.negf %147 : vector<8x128xf32>
    %149 = math.exp %148 : vector<8x128xf32>
    %cst_37 = arith.constant 1.000000e+00 : f32
    %150 = vector.broadcast %cst_37 : f32 to vector<8x128xf32>
    %151 = arith.addf %150, %149 : vector<8x128xf32>
    %152 = arith.divf %150, %151 : vector<8x128xf32>
    %153 = vector.extract_strided_slice %146 {offsets = [0, 128], sizes = [8, 128], strides = [1, 1]} : vector<8x512xf32> to vector<8x128xf32>
    %154 = arith.negf %153 : vector<8x128xf32>
    %155 = math.exp %154 : vector<8x128xf32>
    %cst_38 = arith.constant 1.000000e+00 : f32
    %156 = vector.broadcast %cst_38 : f32 to vector<8x128xf32>
    %157 = arith.addf %156, %155 : vector<8x128xf32>
    %158 = arith.divf %156, %157 : vector<8x128xf32>
    %159 = vector.extract_strided_slice %146 {offsets = [0, 256], sizes = [8, 128], strides = [1, 1]} : vector<8x512xf32> to vector<8x128xf32>
    %160 = math.tanh %159 : vector<8x128xf32>
    %161 = vector.extract_strided_slice %146 {offsets = [0, 384], sizes = [8, 128], strides = [1, 1]} : vector<8x512xf32> to vector<8x128xf32>
    %162 = arith.negf %161 : vector<8x128xf32>
    %163 = math.exp %162 : vector<8x128xf32>
    %cst_39 = arith.constant 1.000000e+00 : f32
    %164 = vector.broadcast %cst_39 : f32 to vector<8x128xf32>
    %165 = arith.addf %164, %163 : vector<8x128xf32>
    %166 = arith.divf %164, %165 : vector<8x128xf32>
    %167 = arith.mulf %158, %107 : vector<8x128xf32>
    %168 = arith.mulf %152, %160 : vector<8x128xf32>
    %169 = arith.addf %167, %168 : vector<8x128xf32>
    %170 = math.tanh %169 : vector<8x128xf32>
    %171 = arith.mulf %166, %170 : vector<8x128xf32>
    %172 = tpu.concatenate %171, %141 in 1 : vector<8x128xf32>, vector<8x128xf32> -> vector<8x256xf32>
    %173 = arith.truncf %172 : vector<8x256xf32> to vector<8x256xbf16>
    %c0_40 = arith.constant 0 : index
    %c0_41 = arith.constant 0 : index
    %174 = vector.load %arg10[%c0_40, %c0_41] : memref<256x1024xbf16, #tpu.memory_space<vmem>>, vector<256x1024xbf16>
    %cst_42 = arith.constant dense<0.000000e+00> : vector<8x1024xf32>
    %175 = tpu.matmul %173, %174, %cst_42 {dimension_numbers = #tpu.dot_dimension_numbers<[1], [0], [0], [1], [0, 0, 1, 1], [], []>} : vector<8x256xbf16>, vector<256x1024xbf16>, vector<8x1024xf32> -> vector<8x1024xf32>
    %176 = vector.extract_strided_slice %175 {offsets = [0, 0], sizes = [8, 512], strides = [1, 1]} : vector<8x1024xf32> to vector<8x512xf32>
    %177 = arith.addf %176, %13 : vector<8x512xf32>
    %178 = vector.extract_strided_slice %175 {offsets = [0, 512], sizes = [8, 512], strides = [1, 1]} : vector<8x1024xf32> to vector<8x512xf32>
    %179 = vector.extract_strided_slice %177 {offsets = [0, 0], sizes = [8, 128], strides = [1, 1]} : vector<8x512xf32> to vector<8x128xf32>
    %180 = arith.negf %179 : vector<8x128xf32>
    %181 = math.exp %180 : vector<8x128xf32>
    %cst_43 = arith.constant 1.000000e+00 : f32
    %182 = vector.broadcast %cst_43 : f32 to vector<8x128xf32>
    %183 = arith.addf %182, %181 : vector<8x128xf32>
    %184 = arith.divf %182, %183 : vector<8x128xf32>
    %185 = vector.extract_strided_slice %177 {offsets = [0, 128], sizes = [8, 128], strides = [1, 1]} : vector<8x512xf32> to vector<8x128xf32>
    %186 = arith.negf %185 : vector<8x128xf32>
    %187 = math.exp %186 : vector<8x128xf32>
    %cst_44 = arith.constant 1.000000e+00 : f32
    %188 = vector.broadcast %cst_44 : f32 to vector<8x128xf32>
    %189 = arith.addf %188, %187 : vector<8x128xf32>
    %190 = arith.divf %188, %189 : vector<8x128xf32>
    %191 = vector.extract_strided_slice %177 {offsets = [0, 256], sizes = [8, 128], strides = [1, 1]} : vector<8x512xf32> to vector<8x128xf32>
    %192 = math.tanh %191 : vector<8x128xf32>
    %193 = vector.extract_strided_slice %177 {offsets = [0, 384], sizes = [8, 128], strides = [1, 1]} : vector<8x512xf32> to vector<8x128xf32>
    %194 = arith.negf %193 : vector<8x128xf32>
    %195 = math.exp %194 : vector<8x128xf32>
    %cst_45 = arith.constant 1.000000e+00 : f32
    %196 = vector.broadcast %cst_45 : f32 to vector<8x128xf32>
    %197 = arith.addf %196, %195 : vector<8x128xf32>
    %198 = arith.divf %196, %197 : vector<8x128xf32>
    %199 = arith.mulf %190, %139 : vector<8x128xf32>
    %200 = arith.mulf %184, %192 : vector<8x128xf32>
    %201 = arith.addf %199, %200 : vector<8x128xf32>
    %202 = math.tanh %201 : vector<8x128xf32>
    %203 = arith.mulf %198, %202 : vector<8x128xf32>
    %c3_i32 = arith.constant 3 : i32
    %c8_i32_46 = arith.constant 8 : i32
    %204 = arith.muli %c3_i32, %c8_i32_46 : i32
    %205 = tpu.assume_multiple %204, 8 : i32
    %206 = arith.index_cast %205 : i32 to index
    %c0_47 = arith.constant 0 : index
    %207 = vector.load %arg9[%206, %c0_47] : memref<64x512xf32, #tpu.memory_space<vmem>>, vector<8x512xf32>
    %208 = arith.addf %207, %178 : vector<8x512xf32>
    %209 = vector.extract_strided_slice %208 {offsets = [0, 0], sizes = [8, 128], strides = [1, 1]} : vector<8x512xf32> to vector<8x128xf32>
    %210 = arith.negf %209 : vector<8x128xf32>
    %211 = math.exp %210 : vector<8x128xf32>
    %cst_48 = arith.constant 1.000000e+00 : f32
    %212 = vector.broadcast %cst_48 : f32 to vector<8x128xf32>
    %213 = arith.addf %212, %211 : vector<8x128xf32>
    %214 = arith.divf %212, %213 : vector<8x128xf32>
    %215 = vector.extract_strided_slice %208 {offsets = [0, 128], sizes = [8, 128], strides = [1, 1]} : vector<8x512xf32> to vector<8x128xf32>
    %216 = arith.negf %215 : vector<8x128xf32>
    %217 = math.exp %216 : vector<8x128xf32>
    %cst_49 = arith.constant 1.000000e+00 : f32
    %218 = vector.broadcast %cst_49 : f32 to vector<8x128xf32>
    %219 = arith.addf %218, %217 : vector<8x128xf32>
    %220 = arith.divf %218, %219 : vector<8x128xf32>
    %221 = vector.extract_strided_slice %208 {offsets = [0, 256], sizes = [8, 128], strides = [1, 1]} : vector<8x512xf32> to vector<8x128xf32>
    %222 = math.tanh %221 : vector<8x128xf32>
    %223 = vector.extract_strided_slice %208 {offsets = [0, 384], sizes = [8, 128], strides = [1, 1]} : vector<8x512xf32> to vector<8x128xf32>
    %224 = arith.negf %223 : vector<8x128xf32>
    %225 = math.exp %224 : vector<8x128xf32>
    %cst_50 = arith.constant 1.000000e+00 : f32
    %226 = vector.broadcast %cst_50 : f32 to vector<8x128xf32>
    %227 = arith.addf %226, %225 : vector<8x128xf32>
    %228 = arith.divf %226, %227 : vector<8x128xf32>
    %229 = arith.mulf %220, %169 : vector<8x128xf32>
    %230 = arith.mulf %214, %222 : vector<8x128xf32>
    %231 = arith.addf %229, %230 : vector<8x128xf32>
    %232 = math.tanh %231 : vector<8x128xf32>
    %233 = arith.mulf %228, %232 : vector<8x128xf32>
    %234 = tpu.concatenate %233, %203 in 1 : vector<8x128xf32>, vector<8x128xf32> -> vector<8x256xf32>
    %235 = arith.truncf %234 : vector<8x256xf32> to vector<8x256xbf16>
    %c0_51 = arith.constant 0 : index
    %c0_52 = arith.constant 0 : index
    %236 = vector.load %arg10[%c0_51, %c0_52] : memref<256x1024xbf16, #tpu.memory_space<vmem>>, vector<256x1024xbf16>
    %cst_53 = arith.constant dense<0.000000e+00> : vector<8x1024xf32>
    %237 = tpu.matmul %235, %236, %cst_53 {dimension_numbers = #tpu.dot_dimension_numbers<[1], [0], [0], [1], [0, 0, 1, 1], [], []>} : vector<8x256xbf16>, vector<256x1024xbf16>, vector<8x1024xf32> -> vector<8x1024xf32>
    %238 = vector.extract_strided_slice %237 {offsets = [0, 0], sizes = [8, 512], strides = [1, 1]} : vector<8x1024xf32> to vector<8x512xf32>
    %239 = arith.addf %238, %13 : vector<8x512xf32>
    %240 = vector.extract_strided_slice %237 {offsets = [0, 512], sizes = [8, 512], strides = [1, 1]} : vector<8x1024xf32> to vector<8x512xf32>
    %241 = vector.extract_strided_slice %239 {offsets = [0, 0], sizes = [8, 128], strides = [1, 1]} : vector<8x512xf32> to vector<8x128xf32>
    %242 = arith.negf %241 : vector<8x128xf32>
    %243 = math.exp %242 : vector<8x128xf32>
    %cst_54 = arith.constant 1.000000e+00 : f32
    %244 = vector.broadcast %cst_54 : f32 to vector<8x128xf32>
    %245 = arith.addf %244, %243 : vector<8x128xf32>
    %246 = arith.divf %244, %245 : vector<8x128xf32>
    %247 = vector.extract_strided_slice %239 {offsets = [0, 128], sizes = [8, 128], strides = [1, 1]} : vector<8x512xf32> to vector<8x128xf32>
    %248 = arith.negf %247 : vector<8x128xf32>
    %249 = math.exp %248 : vector<8x128xf32>
    %cst_55 = arith.constant 1.000000e+00 : f32
    %250 = vector.broadcast %cst_55 : f32 to vector<8x128xf32>
    %251 = arith.addf %250, %249 : vector<8x128xf32>
    %252 = arith.divf %250, %251 : vector<8x128xf32>
    %253 = vector.extract_strided_slice %239 {offsets = [0, 256], sizes = [8, 128], strides = [1, 1]} : vector<8x512xf32> to vector<8x128xf32>
    %254 = math.tanh %253 : vector<8x128xf32>
    %255 = vector.extract_strided_slice %239 {offsets = [0, 384], sizes = [8, 128], strides = [1, 1]} : vector<8x512xf32> to vector<8x128xf32>
    %256 = arith.negf %255 : vector<8x128xf32>
    %257 = math.exp %256 : vector<8x128xf32>
    %cst_56 = arith.constant 1.000000e+00 : f32
    %258 = vector.broadcast %cst_56 : f32 to vector<8x128xf32>
    %259 = arith.addf %258, %257 : vector<8x128xf32>
    %260 = arith.divf %258, %259 : vector<8x128xf32>
    %261 = arith.mulf %252, %201 : vector<8x128xf32>
    %262 = arith.mulf %246, %254 : vector<8x128xf32>
    %263 = arith.addf %261, %262 : vector<8x128xf32>
    %264 = math.tanh %263 : vector<8x128xf32>
    %265 = arith.mulf %260, %264 : vector<8x128xf32>
    %c4_i32 = arith.constant 4 : i32
    %c8_i32_57 = arith.constant 8 : i32
    %266 = arith.muli %c4_i32, %c8_i32_57 : i32
    %267 = tpu.assume_multiple %266, 8 : i32
    %268 = arith.index_cast %267 : i32 to index
    %c0_58 = arith.constant 0 : index
    %269 = vector.load %arg9[%268, %c0_58] : memref<64x512xf32, #tpu.memory_space<vmem>>, vector<8x512xf32>
    %270 = arith.addf %269, %240 : vector<8x512xf32>
    %271 = vector.extract_strided_slice %270 {offsets = [0, 0], sizes = [8, 128], strides = [1, 1]} : vector<8x512xf32> to vector<8x128xf32>
    %272 = arith.negf %271 : vector<8x128xf32>
    %273 = math.exp %272 : vector<8x128xf32>
    %cst_59 = arith.constant 1.000000e+00 : f32
    %274 = vector.broadcast %cst_59 : f32 to vector<8x128xf32>
    %275 = arith.addf %274, %273 : vector<8x128xf32>
    %276 = arith.divf %274, %275 : vector<8x128xf32>
    %277 = vector.extract_strided_slice %270 {offsets = [0, 128], sizes = [8, 128], strides = [1, 1]} : vector<8x512xf32> to vector<8x128xf32>
    %278 = arith.negf %277 : vector<8x128xf32>
    %279 = math.exp %278 : vector<8x128xf32>
    %cst_60 = arith.constant 1.000000e+00 : f32
    %280 = vector.broadcast %cst_60 : f32 to vector<8x128xf32>
    %281 = arith.addf %280, %279 : vector<8x128xf32>
    %282 = arith.divf %280, %281 : vector<8x128xf32>
    %283 = vector.extract_strided_slice %270 {offsets = [0, 256], sizes = [8, 128], strides = [1, 1]} : vector<8x512xf32> to vector<8x128xf32>
    %284 = math.tanh %283 : vector<8x128xf32>
    %285 = vector.extract_strided_slice %270 {offsets = [0, 384], sizes = [8, 128], strides = [1, 1]} : vector<8x512xf32> to vector<8x128xf32>
    %286 = arith.negf %285 : vector<8x128xf32>
    %287 = math.exp %286 : vector<8x128xf32>
    %cst_61 = arith.constant 1.000000e+00 : f32
    %288 = vector.broadcast %cst_61 : f32 to vector<8x128xf32>
    %289 = arith.addf %288, %287 : vector<8x128xf32>
    %290 = arith.divf %288, %289 : vector<8x128xf32>
    %291 = arith.mulf %282, %231 : vector<8x128xf32>
    %292 = arith.mulf %276, %284 : vector<8x128xf32>
    %293 = arith.addf %291, %292 : vector<8x128xf32>
    %294 = math.tanh %293 : vector<8x128xf32>
    %295 = arith.mulf %290, %294 : vector<8x128xf32>
    %296 = tpu.concatenate %295, %265 in 1 : vector<8x128xf32>, vector<8x128xf32> -> vector<8x256xf32>
    %297 = arith.truncf %296 : vector<8x256xf32> to vector<8x256xbf16>
    %c0_62 = arith.constant 0 : index
    %c0_63 = arith.constant 0 : index
    %298 = vector.load %arg10[%c0_62, %c0_63] : memref<256x1024xbf16, #tpu.memory_space<vmem>>, vector<256x1024xbf16>
    %cst_64 = arith.constant dense<0.000000e+00> : vector<8x1024xf32>
    %299 = tpu.matmul %297, %298, %cst_64 {dimension_numbers = #tpu.dot_dimension_numbers<[1], [0], [0], [1], [0, 0, 1, 1], [], []>} : vector<8x256xbf16>, vector<256x1024xbf16>, vector<8x1024xf32> -> vector<8x1024xf32>
    %300 = vector.extract_strided_slice %299 {offsets = [0, 0], sizes = [8, 512], strides = [1, 1]} : vector<8x1024xf32> to vector<8x512xf32>
    %301 = arith.addf %300, %13 : vector<8x512xf32>
    %302 = vector.extract_strided_slice %299 {offsets = [0, 512], sizes = [8, 512], strides = [1, 1]} : vector<8x1024xf32> to vector<8x512xf32>
    %303 = vector.extract_strided_slice %301 {offsets = [0, 0], sizes = [8, 128], strides = [1, 1]} : vector<8x512xf32> to vector<8x128xf32>
    %304 = arith.negf %303 : vector<8x128xf32>
    %305 = math.exp %304 : vector<8x128xf32>
    %cst_65 = arith.constant 1.000000e+00 : f32
    %306 = vector.broadcast %cst_65 : f32 to vector<8x128xf32>
    %307 = arith.addf %306, %305 : vector<8x128xf32>
    %308 = arith.divf %306, %307 : vector<8x128xf32>
    %309 = vector.extract_strided_slice %301 {offsets = [0, 128], sizes = [8, 128], strides = [1, 1]} : vector<8x512xf32> to vector<8x128xf32>
    %310 = arith.negf %309 : vector<8x128xf32>
    %311 = math.exp %310 : vector<8x128xf32>
    %cst_66 = arith.constant 1.000000e+00 : f32
    %312 = vector.broadcast %cst_66 : f32 to vector<8x128xf32>
    %313 = arith.addf %312, %311 : vector<8x128xf32>
    %314 = arith.divf %312, %313 : vector<8x128xf32>
    %315 = vector.extract_strided_slice %301 {offsets = [0, 256], sizes = [8, 128], strides = [1, 1]} : vector<8x512xf32> to vector<8x128xf32>
    %316 = math.tanh %315 : vector<8x128xf32>
    %317 = vector.extract_strided_slice %301 {offsets = [0, 384], sizes = [8, 128], strides = [1, 1]} : vector<8x512xf32> to vector<8x128xf32>
    %318 = arith.negf %317 : vector<8x128xf32>
    %319 = math.exp %318 : vector<8x128xf32>
    %cst_67 = arith.constant 1.000000e+00 : f32
    %320 = vector.broadcast %cst_67 : f32 to vector<8x128xf32>
    %321 = arith.addf %320, %319 : vector<8x128xf32>
    %322 = arith.divf %320, %321 : vector<8x128xf32>
    %323 = arith.mulf %314, %263 : vector<8x128xf32>
    %324 = arith.mulf %308, %316 : vector<8x128xf32>
    %325 = arith.addf %323, %324 : vector<8x128xf32>
    %326 = math.tanh %325 : vector<8x128xf32>
    %327 = arith.mulf %322, %326 : vector<8x128xf32>
    %c5_i32 = arith.constant 5 : i32
    %c8_i32_68 = arith.constant 8 : i32
    %328 = arith.muli %c5_i32, %c8_i32_68 : i32
    %329 = tpu.assume_multiple %328, 8 : i32
    %330 = arith.index_cast %329 : i32 to index
    %c0_69 = arith.constant 0 : index
    %331 = vector.load %arg9[%330, %c0_69] : memref<64x512xf32, #tpu.memory_space<vmem>>, vector<8x512xf32>
    %332 = arith.addf %331, %302 : vector<8x512xf32>
    %333 = vector.extract_strided_slice %332 {offsets = [0, 0], sizes = [8, 128], strides = [1, 1]} : vector<8x512xf32> to vector<8x128xf32>
    %334 = arith.negf %333 : vector<8x128xf32>
    %335 = math.exp %334 : vector<8x128xf32>
    %cst_70 = arith.constant 1.000000e+00 : f32
    %336 = vector.broadcast %cst_70 : f32 to vector<8x128xf32>
    %337 = arith.addf %336, %335 : vector<8x128xf32>
    %338 = arith.divf %336, %337 : vector<8x128xf32>
    %339 = vector.extract_strided_slice %332 {offsets = [0, 128], sizes = [8, 128], strides = [1, 1]} : vector<8x512xf32> to vector<8x128xf32>
    %340 = arith.negf %339 : vector<8x128xf32>
    %341 = math.exp %340 : vector<8x128xf32>
    %cst_71 = arith.constant 1.000000e+00 : f32
    %342 = vector.broadcast %cst_71 : f32 to vector<8x128xf32>
    %343 = arith.addf %342, %341 : vector<8x128xf32>
    %344 = arith.divf %342, %343 : vector<8x128xf32>
    %345 = vector.extract_strided_slice %332 {offsets = [0, 256], sizes = [8, 128], strides = [1, 1]} : vector<8x512xf32> to vector<8x128xf32>
    %346 = math.tanh %345 : vector<8x128xf32>
    %347 = vector.extract_strided_slice %332 {offsets = [0, 384], sizes = [8, 128], strides = [1, 1]} : vector<8x512xf32> to vector<8x128xf32>
    %348 = arith.negf %347 : vector<8x128xf32>
    %349 = math.exp %348 : vector<8x128xf32>
    %cst_72 = arith.constant 1.000000e+00 : f32
    %350 = vector.broadcast %cst_72 : f32 to vector<8x128xf32>
    %351 = arith.addf %350, %349 : vector<8x128xf32>
    %352 = arith.divf %350, %351 : vector<8x128xf32>
    %353 = arith.mulf %344, %293 : vector<8x128xf32>
    %354 = arith.mulf %338, %346 : vector<8x128xf32>
    %355 = arith.addf %353, %354 : vector<8x128xf32>
    %356 = math.tanh %355 : vector<8x128xf32>
    %357 = arith.mulf %352, %356 : vector<8x128xf32>
    %358 = tpu.concatenate %357, %327 in 1 : vector<8x128xf32>, vector<8x128xf32> -> vector<8x256xf32>
    %359 = arith.truncf %358 : vector<8x256xf32> to vector<8x256xbf16>
    %c0_73 = arith.constant 0 : index
    %c0_74 = arith.constant 0 : index
    %360 = vector.load %arg10[%c0_73, %c0_74] : memref<256x1024xbf16, #tpu.memory_space<vmem>>, vector<256x1024xbf16>
    %cst_75 = arith.constant dense<0.000000e+00> : vector<8x1024xf32>
    %361 = tpu.matmul %359, %360, %cst_75 {dimension_numbers = #tpu.dot_dimension_numbers<[1], [0], [0], [1], [0, 0, 1, 1], [], []>} : vector<8x256xbf16>, vector<256x1024xbf16>, vector<8x1024xf32> -> vector<8x1024xf32>
    %362 = vector.extract_strided_slice %361 {offsets = [0, 0], sizes = [8, 512], strides = [1, 1]} : vector<8x1024xf32> to vector<8x512xf32>
    %363 = arith.addf %362, %13 : vector<8x512xf32>
    %364 = vector.extract_strided_slice %361 {offsets = [0, 512], sizes = [8, 512], strides = [1, 1]} : vector<8x1024xf32> to vector<8x512xf32>
    %365 = vector.extract_strided_slice %363 {offsets = [0, 0], sizes = [8, 128], strides = [1, 1]} : vector<8x512xf32> to vector<8x128xf32>
    %366 = arith.negf %365 : vector<8x128xf32>
    %367 = math.exp %366 : vector<8x128xf32>
    %cst_76 = arith.constant 1.000000e+00 : f32
    %368 = vector.broadcast %cst_76 : f32 to vector<8x128xf32>
    %369 = arith.addf %368, %367 : vector<8x128xf32>
    %370 = arith.divf %368, %369 : vector<8x128xf32>
    %371 = vector.extract_strided_slice %363 {offsets = [0, 128], sizes = [8, 128], strides = [1, 1]} : vector<8x512xf32> to vector<8x128xf32>
    %372 = arith.negf %371 : vector<8x128xf32>
    %373 = math.exp %372 : vector<8x128xf32>
    %cst_77 = arith.constant 1.000000e+00 : f32
    %374 = vector.broadcast %cst_77 : f32 to vector<8x128xf32>
    %375 = arith.addf %374, %373 : vector<8x128xf32>
    %376 = arith.divf %374, %375 : vector<8x128xf32>
    %377 = vector.extract_strided_slice %363 {offsets = [0, 256], sizes = [8, 128], strides = [1, 1]} : vector<8x512xf32> to vector<8x128xf32>
    %378 = math.tanh %377 : vector<8x128xf32>
    %379 = vector.extract_strided_slice %363 {offsets = [0, 384], sizes = [8, 128], strides = [1, 1]} : vector<8x512xf32> to vector<8x128xf32>
    %380 = arith.negf %379 : vector<8x128xf32>
    %381 = math.exp %380 : vector<8x128xf32>
    %cst_78 = arith.constant 1.000000e+00 : f32
    %382 = vector.broadcast %cst_78 : f32 to vector<8x128xf32>
    %383 = arith.addf %382, %381 : vector<8x128xf32>
    %384 = arith.divf %382, %383 : vector<8x128xf32>
    %385 = arith.mulf %376, %325 : vector<8x128xf32>
    %386 = arith.mulf %370, %378 : vector<8x128xf32>
    %387 = arith.addf %385, %386 : vector<8x128xf32>
    %388 = math.tanh %387 : vector<8x128xf32>
    %389 = arith.mulf %384, %388 : vector<8x128xf32>
    %c6_i32 = arith.constant 6 : i32
    %c8_i32_79 = arith.constant 8 : i32
    %390 = arith.muli %c6_i32, %c8_i32_79 : i32
    %391 = tpu.assume_multiple %390, 8 : i32
    %392 = arith.index_cast %391 : i32 to index
    %c0_80 = arith.constant 0 : index
    %393 = vector.load %arg9[%392, %c0_80] : memref<64x512xf32, #tpu.memory_space<vmem>>, vector<8x512xf32>
    %394 = arith.addf %393, %364 : vector<8x512xf32>
    %395 = vector.extract_strided_slice %394 {offsets = [0, 0], sizes = [8, 128], strides = [1, 1]} : vector<8x512xf32> to vector<8x128xf32>
    %396 = arith.negf %395 : vector<8x128xf32>
    %397 = math.exp %396 : vector<8x128xf32>
    %cst_81 = arith.constant 1.000000e+00 : f32
    %398 = vector.broadcast %cst_81 : f32 to vector<8x128xf32>
    %399 = arith.addf %398, %397 : vector<8x128xf32>
    %400 = arith.divf %398, %399 : vector<8x128xf32>
    %401 = vector.extract_strided_slice %394 {offsets = [0, 128], sizes = [8, 128], strides = [1, 1]} : vector<8x512xf32> to vector<8x128xf32>
    %402 = arith.negf %401 : vector<8x128xf32>
    %403 = math.exp %402 : vector<8x128xf32>
    %cst_82 = arith.constant 1.000000e+00 : f32
    %404 = vector.broadcast %cst_82 : f32 to vector<8x128xf32>
    %405 = arith.addf %404, %403 : vector<8x128xf32>
    %406 = arith.divf %404, %405 : vector<8x128xf32>
    %407 = vector.extract_strided_slice %394 {offsets = [0, 256], sizes = [8, 128], strides = [1, 1]} : vector<8x512xf32> to vector<8x128xf32>
    %408 = math.tanh %407 : vector<8x128xf32>
    %409 = vector.extract_strided_slice %394 {offsets = [0, 384], sizes = [8, 128], strides = [1, 1]} : vector<8x512xf32> to vector<8x128xf32>
    %410 = arith.negf %409 : vector<8x128xf32>
    %411 = math.exp %410 : vector<8x128xf32>
    %cst_83 = arith.constant 1.000000e+00 : f32
    %412 = vector.broadcast %cst_83 : f32 to vector<8x128xf32>
    %413 = arith.addf %412, %411 : vector<8x128xf32>
    %414 = arith.divf %412, %413 : vector<8x128xf32>
    %415 = arith.mulf %406, %355 : vector<8x128xf32>
    %416 = arith.mulf %400, %408 : vector<8x128xf32>
    %417 = arith.addf %415, %416 : vector<8x128xf32>
    %418 = math.tanh %417 : vector<8x128xf32>
    %419 = arith.mulf %414, %418 : vector<8x128xf32>
    %420 = tpu.concatenate %419, %389 in 1 : vector<8x128xf32>, vector<8x128xf32> -> vector<8x256xf32>
    %421 = arith.truncf %420 : vector<8x256xf32> to vector<8x256xbf16>
    %c0_84 = arith.constant 0 : index
    %c0_85 = arith.constant 0 : index
    %422 = vector.load %arg10[%c0_84, %c0_85] : memref<256x1024xbf16, #tpu.memory_space<vmem>>, vector<256x1024xbf16>
    %cst_86 = arith.constant dense<0.000000e+00> : vector<8x1024xf32>
    %423 = tpu.matmul %421, %422, %cst_86 {dimension_numbers = #tpu.dot_dimension_numbers<[1], [0], [0], [1], [0, 0, 1, 1], [], []>} : vector<8x256xbf16>, vector<256x1024xbf16>, vector<8x1024xf32> -> vector<8x1024xf32>
    %424 = vector.extract_strided_slice %423 {offsets = [0, 0], sizes = [8, 512], strides = [1, 1]} : vector<8x1024xf32> to vector<8x512xf32>
    %425 = arith.addf %424, %13 : vector<8x512xf32>
    %426 = vector.extract_strided_slice %423 {offsets = [0, 512], sizes = [8, 512], strides = [1, 1]} : vector<8x1024xf32> to vector<8x512xf32>
    %427 = vector.extract_strided_slice %425 {offsets = [0, 0], sizes = [8, 128], strides = [1, 1]} : vector<8x512xf32> to vector<8x128xf32>
    %428 = arith.negf %427 : vector<8x128xf32>
    %429 = math.exp %428 : vector<8x128xf32>
    %cst_87 = arith.constant 1.000000e+00 : f32
    %430 = vector.broadcast %cst_87 : f32 to vector<8x128xf32>
    %431 = arith.addf %430, %429 : vector<8x128xf32>
    %432 = arith.divf %430, %431 : vector<8x128xf32>
    %433 = vector.extract_strided_slice %425 {offsets = [0, 128], sizes = [8, 128], strides = [1, 1]} : vector<8x512xf32> to vector<8x128xf32>
    %434 = arith.negf %433 : vector<8x128xf32>
    %435 = math.exp %434 : vector<8x128xf32>
    %cst_88 = arith.constant 1.000000e+00 : f32
    %436 = vector.broadcast %cst_88 : f32 to vector<8x128xf32>
    %437 = arith.addf %436, %435 : vector<8x128xf32>
    %438 = arith.divf %436, %437 : vector<8x128xf32>
    %439 = vector.extract_strided_slice %425 {offsets = [0, 256], sizes = [8, 128], strides = [1, 1]} : vector<8x512xf32> to vector<8x128xf32>
    %440 = math.tanh %439 : vector<8x128xf32>
    %441 = vector.extract_strided_slice %425 {offsets = [0, 384], sizes = [8, 128], strides = [1, 1]} : vector<8x512xf32> to vector<8x128xf32>
    %442 = arith.negf %441 : vector<8x128xf32>
    %443 = math.exp %442 : vector<8x128xf32>
    %cst_89 = arith.constant 1.000000e+00 : f32
    %444 = vector.broadcast %cst_89 : f32 to vector<8x128xf32>
    %445 = arith.addf %444, %443 : vector<8x128xf32>
    %446 = arith.divf %444, %445 : vector<8x128xf32>
    %447 = arith.mulf %438, %387 : vector<8x128xf32>
    %448 = arith.mulf %432, %440 : vector<8x128xf32>
    %449 = arith.addf %447, %448 : vector<8x128xf32>
    %450 = math.tanh %449 : vector<8x128xf32>
    %451 = arith.mulf %446, %450 : vector<8x128xf32>
    %c7_i32 = arith.constant 7 : i32
    %c8_i32_90 = arith.constant 8 : i32
    %452 = arith.muli %c7_i32, %c8_i32_90 : i32
    %453 = tpu.assume_multiple %452, 8 : i32
    %454 = arith.index_cast %453 : i32 to index
    %c0_91 = arith.constant 0 : index
    %455 = vector.load %arg9[%454, %c0_91] : memref<64x512xf32, #tpu.memory_space<vmem>>, vector<8x512xf32>
    %456 = arith.addf %455, %426 : vector<8x512xf32>
    %457 = vector.extract_strided_slice %456 {offsets = [0, 0], sizes = [8, 128], strides = [1, 1]} : vector<8x512xf32> to vector<8x128xf32>
    %458 = arith.negf %457 : vector<8x128xf32>
    %459 = math.exp %458 : vector<8x128xf32>
    %cst_92 = arith.constant 1.000000e+00 : f32
    %460 = vector.broadcast %cst_92 : f32 to vector<8x128xf32>
    %461 = arith.addf %460, %459 : vector<8x128xf32>
    %462 = arith.divf %460, %461 : vector<8x128xf32>
    %463 = vector.extract_strided_slice %456 {offsets = [0, 128], sizes = [8, 128], strides = [1, 1]} : vector<8x512xf32> to vector<8x128xf32>
    %464 = arith.negf %463 : vector<8x128xf32>
    %465 = math.exp %464 : vector<8x128xf32>
    %cst_93 = arith.constant 1.000000e+00 : f32
    %466 = vector.broadcast %cst_93 : f32 to vector<8x128xf32>
    %467 = arith.addf %466, %465 : vector<8x128xf32>
    %468 = arith.divf %466, %467 : vector<8x128xf32>
    %469 = vector.extract_strided_slice %456 {offsets = [0, 256], sizes = [8, 128], strides = [1, 1]} : vector<8x512xf32> to vector<8x128xf32>
    %470 = math.tanh %469 : vector<8x128xf32>
    %471 = vector.extract_strided_slice %456 {offsets = [0, 384], sizes = [8, 128], strides = [1, 1]} : vector<8x512xf32> to vector<8x128xf32>
    %472 = arith.negf %471 : vector<8x128xf32>
    %473 = math.exp %472 : vector<8x128xf32>
    %cst_94 = arith.constant 1.000000e+00 : f32
    %474 = vector.broadcast %cst_94 : f32 to vector<8x128xf32>
    %475 = arith.addf %474, %473 : vector<8x128xf32>
    %476 = arith.divf %474, %475 : vector<8x128xf32>
    %477 = arith.mulf %468, %417 : vector<8x128xf32>
    %478 = arith.mulf %462, %470 : vector<8x128xf32>
    %479 = arith.addf %477, %478 : vector<8x128xf32>
    %480 = math.tanh %479 : vector<8x128xf32>
    %481 = arith.mulf %476, %480 : vector<8x128xf32>
    %482 = tpu.concatenate %481, %451 in 1 : vector<8x128xf32>, vector<8x128xf32> -> vector<8x256xf32>
    %483 = arith.truncf %482 : vector<8x256xf32> to vector<8x256xbf16>
    %c0_95 = arith.constant 0 : index
    %c0_96 = arith.constant 0 : index
    %484 = vector.load %arg10[%c0_95, %c0_96] : memref<256x1024xbf16, #tpu.memory_space<vmem>>, vector<256x1024xbf16>
    %cst_97 = arith.constant dense<0.000000e+00> : vector<8x1024xf32>
    %485 = tpu.matmul %483, %484, %cst_97 {dimension_numbers = #tpu.dot_dimension_numbers<[1], [0], [0], [1], [0, 0, 1, 1], [], []>} : vector<8x256xbf16>, vector<256x1024xbf16>, vector<8x1024xf32> -> vector<8x1024xf32>
    %486 = vector.extract_strided_slice %485 {offsets = [0, 0], sizes = [8, 512], strides = [1, 1]} : vector<8x1024xf32> to vector<8x512xf32>
    %487 = arith.addf %486, %13 : vector<8x512xf32>
    %488 = vector.extract_strided_slice %485 {offsets = [0, 512], sizes = [8, 512], strides = [1, 1]} : vector<8x1024xf32> to vector<8x512xf32>
    %489 = vector.extract_strided_slice %487 {offsets = [0, 0], sizes = [8, 128], strides = [1, 1]} : vector<8x512xf32> to vector<8x128xf32>
    %490 = arith.negf %489 : vector<8x128xf32>
    %491 = math.exp %490 : vector<8x128xf32>
    %cst_98 = arith.constant 1.000000e+00 : f32
    %492 = vector.broadcast %cst_98 : f32 to vector<8x128xf32>
    %493 = arith.addf %492, %491 : vector<8x128xf32>
    %494 = arith.divf %492, %493 : vector<8x128xf32>
    %495 = vector.extract_strided_slice %487 {offsets = [0, 128], sizes = [8, 128], strides = [1, 1]} : vector<8x512xf32> to vector<8x128xf32>
    %496 = arith.negf %495 : vector<8x128xf32>
    %497 = math.exp %496 : vector<8x128xf32>
    %cst_99 = arith.constant 1.000000e+00 : f32
    %498 = vector.broadcast %cst_99 : f32 to vector<8x128xf32>
    %499 = arith.addf %498, %497 : vector<8x128xf32>
    %500 = arith.divf %498, %499 : vector<8x128xf32>
    %501 = vector.extract_strided_slice %487 {offsets = [0, 256], sizes = [8, 128], strides = [1, 1]} : vector<8x512xf32> to vector<8x128xf32>
    %502 = math.tanh %501 : vector<8x128xf32>
    %503 = vector.extract_strided_slice %487 {offsets = [0, 384], sizes = [8, 128], strides = [1, 1]} : vector<8x512xf32> to vector<8x128xf32>
    %504 = arith.negf %503 : vector<8x128xf32>
    %505 = math.exp %504 : vector<8x128xf32>
    %cst_100 = arith.constant 1.000000e+00 : f32
    %506 = vector.broadcast %cst_100 : f32 to vector<8x128xf32>
    %507 = arith.addf %506, %505 : vector<8x128xf32>
    %508 = arith.divf %506, %507 : vector<8x128xf32>
    %509 = arith.mulf %500, %449 : vector<8x128xf32>
    %510 = arith.mulf %494, %502 : vector<8x128xf32>
    %511 = arith.addf %509, %510 : vector<8x128xf32>
    %512 = math.tanh %511 : vector<8x128xf32>
    %513 = arith.mulf %508, %512 : vector<8x128xf32>
    %c8_i32_101 = arith.constant 8 : i32
    %c1_i32_102 = arith.constant 1 : i32
    %514 = tpu.memref_slice %arg12[%c1_i32_102] : memref<2x!tpu.dma_semaphore, #tpu.memory_space<semaphore_mem>> -> memref<1x!tpu.dma_semaphore, #tpu.memory_space<semaphore_mem>>
    %515 = tpu.memref_squeeze %514 : memref<1x!tpu.dma_semaphore, #tpu.memory_space<semaphore_mem>> -> memref<!tpu.dma_semaphore, #tpu.memory_space<semaphore_mem>>
    tpu.wait_dma2 semaphore(%515 : memref<!tpu.dma_semaphore, #tpu.memory_space<semaphore_mem>>) src(%arg6 : memref<128x128xbf16, #tpu.memory_space<any>>) dst(%arg11 : memref<128x128xbf16, #tpu.memory_space<vmem>>)
    %516 = arith.truncf %513 : vector<8x128xf32> to vector<8x128xbf16>
    %c0_103 = arith.constant 0 : index
    %c0_104 = arith.constant 0 : index
    %517 = vector.load %arg11[%c0_103, %c0_104] : memref<128x128xbf16, #tpu.memory_space<vmem>>, vector<128x128xbf16>
    %cst_105 = arith.constant dense<0.000000e+00> : vector<8x128xf32>
    %518 = tpu.matmul %516, %517, %cst_105 {dimension_numbers = #tpu.dot_dimension_numbers<[1], [0], [0], [1], [0, 0, 1, 1], [], []>} : vector<8x128xbf16>, vector<128x128xbf16>, vector<8x128xf32> -> vector<8x128xf32>
    %c0_106 = arith.constant 0 : index
    %c0_107 = arith.constant 0 : index
    %519 = vector.load %arg7[%c0_106, %c0_107] : memref<1x128xf32, #tpu.memory_space<vmem>>, vector<1x128xf32>
    %520 = vector.broadcast %519 : vector<1x128xf32> to vector<8x128xf32>
    %521 = arith.addf %518, %520 : vector<8x128xf32>
    %c0_108 = arith.constant 0 : index
    %c0_109 = arith.constant 0 : index
    %522 = vector.load %arg8[%c0_108, %c0_109] : memref<8x128xf32, #tpu.memory_space<vmem>>, vector<8x128xf32>
    tpu.vector_store %arg8[%c0_108, %c0_109], %521 {strides = array<i32>} : memref<8x128xf32, #tpu.memory_space<vmem>>, vector<8x128xf32>,
    return
  }
  func.func @transform_0(%arg0: i32) -> (i32, i32) {
    %c0_i32 = arith.constant 0 : i32
    %c0_i32_0 = arith.constant 0 : i32
    %c0_i32_1 = arith.constant 0 : i32
    return %c0_i32, %c0_i32_0 : i32, i32
  }
  func.func @transform_1(%arg0: i32) -> (i32, i32) {
    %c0_i32 = arith.constant 0 : i32
    %c0_i32_0 = arith.constant 0 : i32
    %c0_i32_1 = arith.constant 0 : i32
    return %c0_i32, %c0_i32_0 : i32, i32
  }
  func.func @transform_2(%arg0: i32) -> (i32, i32) {
    %c0_i32 = arith.constant 0 : i32
    %c0_i32_0 = arith.constant 0 : i32
    %c0_i32_1 = arith.constant 0 : i32
    return %c0_i32, %c0_i32_0 : i32, i32
  }
  func.func @transform_4(%arg0: i32) -> (i32, i32) {
    %c0_i32 = arith.constant 0 : i32
    %c0_i32_0 = arith.constant 0 : i32
    %c0_i32_1 = arith.constant 0 : i32
    return %c0_i32, %c0_i32_0 : i32, i32
  }
  func.func @transform_6(%arg0: i32) -> (i32, i32) {
    %c0_i32 = arith.constant 0 : i32
    %c0_i32_0 = arith.constant 0 : i32
    %c0_i32_1 = arith.constant 0 : i32
    return %c0_i32, %c0_i32_0 : i32, i32
  }
  func.func @transform_7(%arg0: i32) -> (i32, i32) {
    %c0_i32 = arith.constant 0 : i32
    %c0_i32_0 = arith.constant 0 : i32
    %c0_i32_1 = arith.constant 0 : i32
    return %c0_i32, %c0_i32_0 : i32, i32
  }
}

</mosaic_0001>

<llo_original>
// kernel: tpu_custom_call.1
$region0: #{tpu_custom_call.1}
  #allocation0 [shape = 'u32[]', space=smem, size = 0x4, offset = 0x4, fixed_abs, tag = 'smem constant byte address 0x4 - core index']
  #allocation1 [shape = 'u32[144,128]{1,0:T(1,128)}', space=vmem, size = 0x12000, scoped, tag = 'internal scratch']
  #allocation2 [shape = 'f32[64,512]{1,0:T(8,128)}', space=vmem, size = 0x20000, scoped, tag = 'scratch operand']
  #allocation3 [shape = 'bf16[256,1024]{1,0:T(8,128)(2,1)}', space=vmem, size = 0x80000, scoped, tag = 'scratch operand']
  #allocation4 [shape = 'bf16[128,128]{1,0:T(8,128)(2,1)}', space=vmem, size = 0x8000, scoped, tag = 'scratch operand']
  #allocation5 [shape = 's32[2]{0}', space=sflag, size = 0x8, scoped, tag = 'scratch operand']
  #allocation13 [shape = 's32[]', space=sflag, size = 0x4, offset = 0, fixed_abs, tag = 'sflag constant byte address 0x0 - dummy sync flag']
  #allocation14 [shape = 's32[]', space=sflag, size = 0x4, offset = 0, fixed_abs, tag = 'sflag constant byte address 0x0 - dummy sync flag']
  #allocation15 [shape = 'u32[]', space=smem, size = 0x4, offset = 0x44, fixed_abs, tag = 'smem constant byte address 0x44 - assertion arg 0']
  #allocation16 [shape = 'u32[]', space=smem, size = 0x4, offset = 0x48, fixed_abs, tag = 'smem constant byte address 0x48 - assertion arg 1']
  #allocation17 [shape = 's32[]', space=sflag, size = 0x4, offset = 0, fixed_abs, tag = 'sflag constant byte address 0x0 - dummy sync flag']
  #allocation18 [shape = 's32[]', space=sflag, size = 0x4, offset = 0, fixed_abs, tag = 'sflag constant byte address 0x0 - dummy sync flag']
  %s0 = inlined_call_operand.hbm [shape: bf16[64,128], index: 0, kind: input, shape index: {}]
  %s1 = inlined_call_operand.hbm [shape: bf16[128,512], index: 1, kind: input, shape index: {}]
  %s2 = inlined_call_operand.hbm [shape: f32[1,512], index: 2, kind: input, shape index: {}]
  %s3 = inlined_call_operand.hbm [shape: bf16[256,1024], index: 3, kind: input, shape index: {}]
  %s4 = inlined_call_operand.vmem [shape: f32[1,512], index: 4, kind: input, shape index: {}]
  %s5 = inlined_call_operand.hbm [shape: bf16[128,128], index: 5, kind: input, shape index: {}]
  %s6 = inlined_call_operand.vmem [shape: f32[1,128], index: 6, kind: input, shape index: {}]
  %s7 = inlined_call_operand.hbm [shape: f32[8,128], index: 7, kind: output, shape index: {}]
  %s8 = sld [smem:[#allocation0]]
  $region50: #{tpu_custom_call.1} parent=0
    _
  %s10 = ssub.s32 1, %s8
  %s11 = scalar_select 0, %s10, %s8
  $region1: #{tpu_custom_call.1} parent=0
    #allocation6 [shape = 'u8[16384]{0}', space=vmem, size = 0x4000, scoped, tag = 'input window, operand 0, single buffered']
    #allocation7 [shape = 's32[1]{0}', space=sflag, size = 0x4, scoped, tag = 'scoped memory for tpu_custom_call.1']
    #allocation8 [shape = 's32[1]{0}', space=sflag, size = 0x4, scoped, tag = 'scoped memory for tpu_custom_call.1']
    #allocation9 [shape = 'u8[131072]{0}', space=vmem, size = 0x20000, scoped, tag = 'input window, operand 1, single buffered']
    #allocation10 [shape = 's32[1]{0}', space=sflag, size = 0x4, scoped, tag = 'scoped memory for tpu_custom_call.1']
    #allocation11 [shape = 'u8[2048]{0}', space=vmem, size = 0x800, scoped, tag = 'input window, operand 2, single buffered']
    #allocation12 [shape = 'u8[4096]{0}', space=vmem, size = 0x1000, scoped, tag = 'output window, operand 0, single buffered']
    %12 = vsyncpa [#allocation7], 0
    %13 = vsyncpa [#allocation10], 0
    %14 = vsyncpa [#allocation8], 0
    // Predicated region
    $region2: #{tpu_custom_call.1} parent=1 // pred_check
      _
    $region3: #{tpu_custom_call.1} parent=1 // pred_check_branch
      %16 = sbr.rel (0) target = $region5
    $region4: #{tpu_custom_call.1} parent=1 // pred_region
      %s18 = ssub.s32 512, 512
      %19 = vsyncadd [#allocation7], %s18
      %s20 = sshll.u32 [#allocation6], 4
      %s21 = int_to_ptr.vmem [resolvable:$true] %s20
      %26 = dma.hbm_to_vmem [thread:$0]  %s0, 512, %s21, [#allocation7], 64, 64, 4
    $region5: #{tpu_custom_call.1} parent=1 // pred_fallthru
      _
    // Predicated region
    $region6: #{tpu_custom_call.1} parent=1 // pred_check
      _
    $region7: #{tpu_custom_call.1} parent=1 // pred_check_branch
      %28 = sbr.rel (0) target = $region9
    $region8: #{tpu_custom_call.1} parent=1 // pred_region
      %s30 = ssub.s32 4096, 4096
      %31 = vsyncadd [#allocation10], %s30
      %s32 = sshll.u32 [#allocation9], 4
      %s33 = int_to_ptr.vmem [resolvable:$true] %s32
      %38 = dma.hbm_to_vmem [thread:$0]  %s1, 4096, %s33, [#allocation10], 256, 256, 16
    $region9: #{tpu_custom_call.1} parent=1 // pred_fallthru
      _
    // Predicated region
    $region10: #{tpu_custom_call.1} parent=1 // pred_check
      _
    $region11: #{tpu_custom_call.1} parent=1 // pred_check_branch
      %40 = sbr.rel (0) target = $region13
    $region12: #{tpu_custom_call.1} parent=1 // pred_region
      %s42 = ssub.s32 64, 64
      %43 = vsyncadd [#allocation10], %s42
      %s45 = sshll.u32 [#allocation11], 4
      %s46 = int_to_ptr.vmem [resolvable:$true] %s45
      %48 = dma.hbm_to_vmem [thread:$0]  %s2, 64, %s46, [#allocation10]
    $region13: #{tpu_custom_call.1} parent=1 // pred_fallthru
      _
    // Predicated region
    $region14: #{tpu_custom_call.1} parent=1 // pred_check
      _
    $region15: #{tpu_custom_call.1} parent=1 // pred_check_branch
      %50 = sbr.rel (0) target = $region17
    $region16: #{tpu_custom_call.1} parent=1 // pred_region
      _
    $region17: #{tpu_custom_call.1} parent=1 // pred_fallthru
      _
    // Predicated region
    $region18: #{tpu_custom_call.1} parent=1 // pred_check
      _
    $region19: #{tpu_custom_call.1} parent=1 // pred_check_branch
      %52 = sbr.rel (0) target = $region21
    $region20: #{tpu_custom_call.1} parent=1 // pred_region
      _
    $region21: #{tpu_custom_call.1} parent=1 // pred_fallthru
      _
    // Predicated region
    $region22: #{tpu_custom_call.1} parent=1 // pred_check
      _
    $region23: #{tpu_custom_call.1} parent=1 // pred_check_branch
      %54 = sbr.rel (0) target = $region25
    $region24: #{tpu_custom_call.1} parent=1 // pred_region
      %55 = dma.done [#allocation7], 512
    $region25: #{tpu_custom_call.1} parent=1 // pred_fallthru
      _
    // Predicated region
    $region26: #{tpu_custom_call.1} parent=1 // pred_check
      _
    $region27: #{tpu_custom_call.1} parent=1 // pred_check_branch
      %57 = sbr.rel (0) target = $region29
    $region28: #{tpu_custom_call.1} parent=1 // pred_region
      %58 = dma.done [#allocation10], 4096
    $region29: #{tpu_custom_call.1} parent=1 // pred_fallthru
      _
    // Predicated region
    $region30: #{tpu_custom_call.1} parent=1 // pred_check
      _
    $region31: #{tpu_custom_call.1} parent=1 // pred_check_branch
      %60 = sbr.rel (0) target = $region33
    $region32: #{tpu_custom_call.1} parent=1 // pred_region
      %61 = dma.done [#allocation10], 64
    $region33: #{tpu_custom_call.1} parent=1 // pred_fallthru
      _
    // Predicated region
    $region34: #{tpu_custom_call.1} parent=1 // pred_check
      _
    $region35: #{tpu_custom_call.1} parent=1 // pred_check_branch
      %64 = sbr.rel target = $region37
    $region36: #{tpu_custom_call.1} parent=1 // pred_region
      %65 = sst [smem:[#allocation15]] [#allocation14]
      %66 = sst [smem:[#allocation16]] [#allocation13]
    $region37: #{tpu_custom_call.1} parent=1 // pred_fallthru
      _
    %68 = shalt.err (0)
    %s70 = sshll.u32 [#allocation3], 4
    %s71 = int_to_ptr.vmem [resolvable:$true] %s70
    %73 = dma.hbm_to_vmem [thread:$0]  %s3, 16384, %s71, [#allocation5]
    %s74 = scalar_lea.sflag [#allocation5], 1
    // Predicated region
    $region38: #{tpu_custom_call.1} parent=1 // pred_check
      _
    $region39: #{tpu_custom_call.1} parent=1 // pred_check_branch
      %76 = sbr.rel target = $region41
    $region40: #{tpu_custom_call.1} parent=1 // pred_region
      %77 = sst [smem:[#allocation15]] [#allocation18]
      %78 = sst [smem:[#allocation16]] [#allocation17]
    $region41: #{tpu_custom_call.1} parent=1 // pred_fallthru
      _
    %80 = shalt.err (0)
    %s82 = sshll.u32 [#allocation4], 4
    %s83 = int_to_ptr.vmem [resolvable:$true] %s82
    %85 = dma.hbm_to_vmem [thread:$0]  %s5, 1024, %s83, %s74
    %v86 = vld [vmem:[#allocation6] sm:$0xf]
    %v87 = vld [vmem:[#allocation6 + $0x4] sm:$0xf]
    %v88 = vld [vmem:[#allocation6 + $0x8] sm:$0xf]
    %v89 = vld [vmem:[#allocation6 + $0xc] sm:$0xf]
    %v90 = vld [vmem:[#allocation6 + $0x10] sm:$0xf]
    %v91 = vld [vmem:[#allocation6 + $0x14] sm:$0xf]
    %v92 = vld [vmem:[#allocation6 + $0x18] sm:$0xf]
    %v93 = vld [vmem:[#allocation6 + $0x1c] sm:$0xf]
    %v94 = vld [vmem:[#allocation9] sm:$0xff]
    %v95 = vld [vmem:[#allocation9 + $0x8] sm:$0xff]
    %v96 = vld [vmem:[#allocation9 + $0x10] sm:$0xff]
    %v97 = vld [vmem:[#allocation9 + $0x18] sm:$0xff]
    %v98 = vld [vmem:[#allocation9 + $0x20] sm:$0xff]
    %v99 = vld [vmem:[#allocation9 + $0x28] sm:$0xff]
    %v100 = vld [vmem:[#allocation9 + $0x30] sm:$0xff]
    %v101 = vld [vmem:[#allocation9 + $0x38] sm:$0xff]
    %v102 = vld [vmem:[#allocation9 + $0x40] sm:$0xff]
    %v103 = vld [vmem:[#allocation9 + $0x48] sm:$0xff]
    %v104 = vld [vmem:[#allocation9 + $0x50] sm:$0xff]
    %v105 = vld [vmem:[#allocation9 + $0x58] sm:$0xff]
    %v106 = vld [vmem:[#allocation9 + $0x60] sm:$0xff]
    %v107 = vld [vmem:[#allocation9 + $0x68] sm:$0xff]
    %v108 = vld [vmem:[#allocation9 + $0x70] sm:$0xff]
    %v109 = vld [vmem:[#allocation9 + $0x78] sm:$0xff]
    %v110 = vld [vmem:[#allocation9 + $0x80] sm:$0xff]
    %v111 = vld [vmem:[#allocation9 + $0x88] sm:$0xff]
    %v112 = vld [vmem:[#allocation9 + $0x90] sm:$0xff]
    %v113 = vld [vmem:[#allocation9 + $0x98] sm:$0xff]
    %v114 = vld [vmem:[#allocation9 + $0xa0] sm:$0xff]
    %v115 = vld [vmem:[#allocation9 + $0xa8] sm:$0xff]
    %v116 = vld [vmem:[#allocation9 + $0xb0] sm:$0xff]
    %v117 = vld [vmem:[#allocation9 + $0xb8] sm:$0xff]
    %v118 = vld [vmem:[#allocation9 + $0xc0] sm:$0xff]
    %v119 = vld [vmem:[#allocation9 + $0xc8] sm:$0xff]
    %v120 = vld [vmem:[#allocation9 + $0xd0] sm:$0xff]
    %v121 = vld [vmem:[#allocation9 + $0xd8] sm:$0xff]
    %v122 = vld [vmem:[#allocation9 + $0xe0] sm:$0xff]
    %v123 = vld [vmem:[#allocation9 + $0xe8] sm:$0xff]
    %v124 = vld [vmem:[#allocation9 + $0xf0] sm:$0xff]
    %v125 = vld [vmem:[#allocation9 + $0xf8] sm:$0xff]
    %v126 = vld [vmem:[#allocation11] sm:$0xf]
    %v128 = vlaneseq
    %v129 = vshrl.u32 %v128, 7
    %v130 = vsub.s32 0, %v129
    %v131 = vrot.slane %v126, %v130
    %v132 = vlaneseq
    %v133 = vshrl.u32 %v132, 7
    %v134 = vsub.s32 1, %v133
    %v135 = vrot.slane %v126, %v134
    %v136 = vlaneseq
    %v137 = vshrl.u32 %v136, 7
    %v138 = vsub.s32 2, %v137
    %v139 = vrot.slane %v126, %v138
    %v140 = vlaneseq
    %v141 = vshrl.u32 %v140, 7
    %v142 = vsub.s32 3, %v141
    %v143 = vrot.slane %v126, %v142
    %v156 = vunpack.c.l.b16 %v86
    %v157 = vunpack.c.l.b16 %v87
    %v158 = vunpack.c.l.b16 %v88
    %v159 = vunpack.c.l.b16 %v89
    %v160 = vunpack.c.l.b16 %v90
    %v161 = vunpack.c.l.b16 %v91
    %v162 = vunpack.c.l.b16 %v92
    %v163 = vunpack.c.l.b16 %v93
    %v164 = vpack.c.b16 %v157, %v156
    %v165 = vpack.c.b16 %v159, %v158
    %v166 = vpack.c.b16 %v161, %v160
    %v167 = vpack.c.b16 %v163, %v162
    %v204 = vunpack.c.l.b16 %v94
    %v205 = vunpack.c.h.b16 %v94
    %v206 = vunpack.c.l.b16 %v95
    %v207 = vunpack.c.h.b16 %v95
    %v208 = vunpack.c.l.b16 %v96
    %v209 = vunpack.c.h.b16 %v96
    %v210 = vunpack.c.l.b16 %v97
    %v211 = vunpack.c.h.b16 %v97
    %v212 = vunpack.c.l.b16 %v98
    %v213 = vunpack.c.h.b16 %v98
    %v214 = vunpack.c.l.b16 %v99
    %v215 = vunpack.c.h.b16 %v99
    %v216 = vunpack.c.l.b16 %v100
    %v217 = vunpack.c.h.b16 %v100
    %v218 = vunpack.c.l.b16 %v101
    %v219 = vunpack.c.h.b16 %v101
    %v220 = vunpack.c.l.b16 %v102
    %v221 = vunpack.c.h.b16 %v102
    %v222 = vunpack.c.l.b16 %v103
    %v223 = vunpack.c.h.b16 %v103
    %v224 = vunpack.c.l.b16 %v104
    %v225 = vunpack.c.h.b16 %v104
    %v226 = vunpack.c.l.b16 %v105
    %v227 = vunpack.c.h.b16 %v105
    %v228 = vunpack.c.l.b16 %v106
    %v229 = vunpack.c.h.b16 %v106
    %v230 = vunpack.c.l.b16 %v107
    %v231 = vunpack.c.h.b16 %v107
    %v232 = vunpack.c.l.b16 %v108
    %v233 = vunpack.c.h.b16 %v108
    %v234 = vunpack.c.l.b16 %v109
    %v235 = vunpack.c.h.b16 %v109
    %v236 = vunpack.c.l.b16 %v110
    %v237 = vunpack.c.h.b16 %v110
    %v238 = vunpack.c.l.b16 %v111
    %v239 = vunpack.c.h.b16 %v111
    %v240 = vunpack.c.l.b16 %v112
    %v241 = vunpack.c.h.b16 %v112
    %v242 = vunpack.c.l.b16 %v113
    %v243 = vunpack.c.h.b16 %v113
    %v244 = vunpack.c.l.b16 %v114
    %v245 = vunpack.c.h.b16 %v114
    %v246 = vunpack.c.l.b16 %v115
    %v247 = vunpack.c.h.b16 %v115
    %v248 = vunpack.c.l.b16 %v116
    %v249 = vunpack.c.h.b16 %v116
    %v250 = vunpack.c.l.b16 %v117
    %v251 = vunpack.c.h.b16 %v117
    %v252 = vunpack.c.l.b16 %v118
    %v253 = vunpack.c.h.b16 %v118
    %v254 = vunpack.c.l.b16 %v119
    %v255 = vunpack.c.h.b16 %v119
    %v256 = vunpack.c.l.b16 %v120
    %v257 = vunpack.c.h.b16 %v120
    %v258 = vunpack.c.l.b16 %v121
    %v259 = vunpack.c.h.b16 %v121
    %v260 = vunpack.c.l.b16 %v122
    %v261 = vunpack.c.h.b16 %v122
    %v262 = vunpack.c.l.b16 %v123
    %v263 = vunpack.c.h.b16 %v123
    %v264 = vunpack.c.l.b16 %v124
    %v265 = vunpack.c.h.b16 %v124
    %v266 = vunpack.c.l.b16 %v125
    %v267 = vunpack.c.h.b16 %v125
    %v268 = vpack.c.b16 %v208, %v204
    %v269 = vpack.c.b16 %v209, %v205
    %v270 = vpack.c.b16 %v210, %v206
    %v271 = vpack.c.b16 %v211, %v207
    %v272 = vpack.c.b16 %v216, %v212
    %v273 = vpack.c.b16 %v217, %v213
    %v274 = vpack.c.b16 %v218, %v214
    %v275 = vpack.c.b16 %v219, %v215
    %v276 = vpack.c.b16 %v224, %v220
    %v277 = vpack.c.b16 %v225, %v221
    %v278 = vpack.c.b16 %v226, %v222
    %v279 = vpack.c.b16 %v227, %v223
    %v280 = vpack.c.b16 %v232, %v228
    %v281 = vpack.c.b16 %v233, %v229
    %v282 = vpack.c.b16 %v234, %v230
    %v283 = vpack.c.b16 %v235, %v231
    %v284 = vpack.c.b16 %v240, %v236
    %v285 = vpack.c.b16 %v241, %v237
    %v286 = vpack.c.b16 %v242, %v238
    %v287 = vpack.c.b16 %v243, %v239
    %v288 = vpack.c.b16 %v248, %v244
    %v289 = vpack.c.b16 %v249, %v245
    %v290 = vpack.c.b16 %v250, %v246
    %v291 = vpack.c.b16 %v251, %v247
    %v292 = vpack.c.b16 %v256, %v252
    %v293 = vpack.c.b16 %v257, %v253
    %v294 = vpack.c.b16 %v258, %v254
    %v295 = vpack.c.b16 %v259, %v255
    %v296 = vpack.c.b16 %v264, %v260
    %v297 = vpack.c.b16 %v265, %v261
    %v298 = vpack.c.b16 %v266, %v262
    %v299 = vpack.c.b16 %v267, %v263
    %332 = vmatprep.subr.bf16.mxu0 %v297
    %333 = vmatpush1.bf16.msra.mxu0 %v296
    %334 = vmatprep.subr.bf16.mxu0 %v293
    %335 = vmatpush1.bf16.msra.mxu0 %v292
    %336 = vmatprep.subr.bf16.mxu0 %v289
    %337 = vmatpush1.bf16.msra.mxu0 %v288
    %338 = vmatprep.subr.bf16.mxu0 %v285
    %339 = vmatpush1.bf16.msra.mxu0 %v284
    %340 = vmatprep.subr.bf16.mxu0 %v281
    %341 = vmatpush1.bf16.msra.mxu0 %v280
    %342 = vmatprep.subr.bf16.mxu0 %v277
    %343 = vmatpush1.bf16.msra.mxu0 %v276
    %344 = vmatprep.subr.bf16.mxu0 %v273
    %345 = vmatpush1.bf16.msra.mxu0 %v272
    %346 = vmatprep.subr.bf16.mxu0 %v269
    %347 = vmatpush1.bf16.msra.mxu0 %v268
    %348 = vmatprep.subr.bf16.mxu0 0
    %349 = vmatpush2.bf16.msra.mxu0 0
    %350 = vmatprep.subr.bf16.mxu0 0
    %351 = vmatpush2.bf16.msra.mxu0 0
    %352 = vmatprep.subr.bf16.mxu0 0
    %353 = vmatpush2.bf16.msra.mxu0 0
    %354 = vmatprep.subr.bf16.mxu0 0
    %355 = vmatpush2.bf16.msra.mxu0 0
    %356 = vmatprep.subr.bf16.mxu0 0
    %357 = vmatpush2.bf16.msra.mxu0 0
    %358 = vmatprep.subr.bf16.mxu0 0
    %359 = vmatpush2.bf16.msra.mxu0 0
    %360 = vmatprep.subr.bf16.mxu0 0
    %361 = vmatpush2.bf16.msra.mxu0 0
    %362 = vmatprep.subr.bf16.mxu0 0
    %363 = vmatpush2.bf16.msra.mxu0 0
    %364 = vmatprep.mubr.bf16.mxu0 0
    %365 = vmatmul.mubr.bf16.gmra.mxu0 %v164
    %v366 = vpop.f32.mrf.mxu0
    %v367 = vadd.f32 %v131, %v366
    %v368 = vpop.f32.mrf.mxu0
    %v369 = vadd.f32 %v135, %v368
    %v370 = vpop.f32.mrf.mxu0
    %v371 = vadd.f32 %v131, %v370
    %v372 = vpop.f32.mrf.mxu0
    %v373 = vadd.f32 %v135, %v372
    %374 = vmatprep.mubr.bf16.mxu0 0
    %375 = vmatmul.mubr.bf16.gmra.mxu0 %v165
    %v376 = vpop.f32.mrf.mxu0
    %v377 = vadd.f32 %v131, %v376
    %v378 = vpop.f32.mrf.mxu0
    %v379 = vadd.f32 %v135, %v378
    %v380 = vpop.f32.mrf.mxu0
    %v381 = vadd.f32 %v131, %v380
    %v382 = vpop.f32.mrf.mxu0
    %v383 = vadd.f32 %v135, %v382
    %384 = vmatprep.mubr.bf16.mxu0 0
    %385 = vmatmul.mubr.bf16.gmra.mxu0 %v166
    %v386 = vpop.f32.mrf.mxu0
    %v387 = vadd.f32 %v131, %v386
    %v388 = vpop.f32.mrf.mxu0
    %v389 = vadd.f32 %v135, %v388
    %v390 = vpop.f32.mrf.mxu0
    %v391 = vadd.f32 %v131, %v390
    %v392 = vpop.f32.mrf.mxu0
    %v393 = vadd.f32 %v135, %v392
    %394 = vmatprep.mubr.bf16.mxu0 0
    %395 = vmatmul.mubr.bf16.gmra.mxu0 %v167
    %v396 = vpop.f32.mrf.mxu0
    %v397 = vadd.f32 %v131, %v396
    %v398 = vpop.f32.mrf.mxu0
    %v399 = vadd.f32 %v135, %v398
    %v400 = vpop.f32.mrf.mxu0
    %v401 = vadd.f32 %v131, %v400
    %v402 = vpop.f32.mrf.mxu0
    %v403 = vadd.f32 %v135, %v402
    %404 = vdwg.mxu0
    %405 = vmatprep.subr.bf16.mxu0 %v299
    %406 = vmatpush1.bf16.msra.mxu0 %v298
    %407 = vmatprep.subr.bf16.mxu0 %v295
    %408 = vmatpush1.bf16.msra.mxu0 %v294
    %409 = vmatprep.subr.bf16.mxu0 %v291
    %410 = vmatpush1.bf16.msra.mxu0 %v290
    %411 = vmatprep.subr.bf16.mxu0 %v287
    %412 = vmatpush1.bf16.msra.mxu0 %v286
    %413 = vmatprep.subr.bf16.mxu0 %v283
    %414 = vmatpush1.bf16.msra.mxu0 %v282
    %415 = vmatprep.subr.bf16.mxu0 %v279
    %416 = vmatpush1.bf16.msra.mxu0 %v278
    %417 = vmatprep.subr.bf16.mxu0 %v275
    %418 = vmatpush1.bf16.msra.mxu0 %v274
    %419 = vmatprep.subr.bf16.mxu0 %v271
    %420 = vmatpush1.bf16.msra.mxu0 %v270
    %421 = vmatprep.subr.bf16.mxu0 0
    %422 = vmatpush2.bf16.msra.mxu0 0
    %423 = vmatprep.subr.bf16.mxu0 0
    %424 = vmatpush2.bf16.msra.mxu0 0
    %425 = vmatprep.subr.bf16.mxu0 0
    %426 = vmatpush2.bf16.msra.mxu0 0
    %427 = vmatprep.subr.bf16.mxu0 0
    %428 = vmatpush2.bf16.msra.mxu0 0
    %429 = vmatprep.subr.bf16.mxu0 0
    %430 = vmatpush2.bf16.msra.mxu0 0
    %431 = vmatprep.subr.bf16.mxu0 0
    %432 = vmatpush2.bf16.msra.mxu0 0
    %433 = vmatprep.subr.bf16.mxu0 0
    %434 = vmatpush2.bf16.msra.mxu0 0
    %435 = vmatprep.subr.bf16.mxu0 0
    %436 = vmatpush2.bf16.msra.mxu0 0
    %437 = vmatprep.mubr.bf16.mxu0 0
    %438 = vmatmul.mubr.bf16.gmra.mxu0 %v164
    %v439 = vpop.f32.mrf.mxu0
    %v440 = vadd.f32 %v139, %v439
    %v441 = vpop.f32.mrf.mxu0
    %v442 = vadd.f32 %v143, %v441
    %v443 = vpop.f32.mrf.mxu0
    %v444 = vadd.f32 %v139, %v443
    %v445 = vpop.f32.mrf.mxu0
    %v446 = vadd.f32 %v143, %v445
    %447 = vmatprep.mubr.bf16.mxu0 0
    %448 = vmatmul.mubr.bf16.gmra.mxu0 %v165
    %v449 = vpop.f32.mrf.mxu0
    %v450 = vadd.f32 %v139, %v449
    %v451 = vpop.f32.mrf.mxu0
    %v452 = vadd.f32 %v143, %v451
    %v453 = vpop.f32.mrf.mxu0
    %v454 = vadd.f32 %v139, %v453
    %v455 = vpop.f32.mrf.mxu0
    %v456 = vadd.f32 %v143, %v455
    %457 = vmatprep.mubr.bf16.mxu0 0
    %458 = vmatmul.mubr.bf16.gmra.mxu0 %v166
    %v459 = vpop.f32.mrf.mxu0
    %v460 = vadd.f32 %v139, %v459
    %v461 = vpop.f32.mrf.mxu0
    %v462 = vadd.f32 %v143, %v461
    %v463 = vpop.f32.mrf.mxu0
    %v464 = vadd.f32 %v139, %v463
    %v465 = vpop.f32.mrf.mxu0
    %v466 = vadd.f32 %v143, %v465
    %467 = vmatprep.mubr.bf16.mxu0 0
    %468 = vmatmul.mubr.bf16.gmra.mxu0 %v167
    %v469 = vpop.f32.mrf.mxu0
    %v470 = vadd.f32 %v139, %v469
    %v471 = vpop.f32.mrf.mxu0
    %v472 = vadd.f32 %v143, %v471
    %v473 = vpop.f32.mrf.mxu0
    %v474 = vadd.f32 %v139, %v473
    %v475 = vpop.f32.mrf.mxu0
    %v476 = vadd.f32 %v143, %v475
    %477 = vdwg.mxu0
    %478 = vst [vmem:[#allocation2] sm:$0xff] %v367
    %479 = vst [vmem:[#allocation2 + $0x8] sm:$0xff] %v369
    %480 = vst [vmem:[#allocation2 + $0x10] sm:$0xff] %v440
    %481 = vst [vmem:[#allocation2 + $0x18] sm:$0xff] %v442
    %482 = vst [vmem:[#allocation2 + $0x20] sm:$0xff] %v371
    %483 = vst [vmem:[#allocation2 + $0x28] sm:$0xff] %v373
    %484 = vst [vmem:[#allocation2 + $0x30] sm:$0xff] %v444
    %485 = vst [vmem:[#allocation2 + $0x38] sm:$0xff] %v446
    %486 = vst [vmem:[#allocation2 + $0x40] sm:$0xff] %v377
    %487 = vst [vmem:[#allocation2 + $0x48] sm:$0xff] %v379
    %488 = vst [vmem:[#allocation2 + $0x50] sm:$0xff] %v450
    %489 = vst [vmem:[#allocation2 + $0x58] sm:$0xff] %v452
    %490 = vst [vmem:[#allocation2 + $0x60] sm:$0xff] %v381
    %491 = vst [vmem:[#allocation2 + $0x68] sm:$0xff] %v383
    %492 = vst [vmem:[#allocation2 + $0x70] sm:$0xff] %v454
    %493 = vst [vmem:[#allocation2 + $0x78] sm:$0xff] %v456
    %494 = vst [vmem:[#allocation2 + $0x80] sm:$0xff] %v387
    %495 = vst [vmem:[#allocation2 + $0x88] sm:$0xff] %v389
    %496 = vst [vmem:[#allocation2 + $0x90] sm:$0xff] %v460
    %497 = vst [vmem:[#allocation2 + $0x98] sm:$0xff] %v462
    %498 = vst [vmem:[#allocation2 + $0xa0] sm:$0xff] %v391
    %499 = vst [vmem:[#allocation2 + $0xa8] sm:$0xff] %v393
    %500 = vst [vmem:[#allocation2 + $0xb0] sm:$0xff] %v464
    %501 = vst [vmem:[#allocation2 + $0xb8] sm:$0xff] %v466
    %502 = vst [vmem:[#allocation2 + $0xc0] sm:$0xff] %v397
    %503 = vst [vmem:[#allocation2 + $0xc8] sm:$0xff] %v399
    %504 = vst [vmem:[#allocation2 + $0xd0] sm:$0xff] %v470
    %505 = vst [vmem:[#allocation2 + $0xd8] sm:$0xff] %v472
    %506 = vst [vmem:[#allocation2 + $0xe0] sm:$0xff] %v401
    %507 = vst [vmem:[#allocation2 + $0xe8] sm:$0xff] %v403
    %508 = vst [vmem:[#allocation2 + $0xf0] sm:$0xff] %v474
    %509 = vst [vmem:[#allocation2 + $0xf8] sm:$0xff] %v476
    %v510 = vld [vmem:[%s4] sm:$0xf]
    %v512 = vlaneseq
    %v513 = vshrl.u32 %v512, 7
    %v514 = vsub.s32 0, %v513
    %v515 = vrot.slane %v510, %v514
    %v516 = vlaneseq
    %v517 = vshrl.u32 %v516, 7
    %v518 = vsub.s32 1, %v517
    %v519 = vrot.slane %v510, %v518
    %v520 = vlaneseq
    %v521 = vshrl.u32 %v520, 7
    %v522 = vsub.s32 2, %v521
    %v523 = vrot.slane %v510, %v522
    %v524 = vlaneseq
    %v525 = vshrl.u32 %v524, 7
    %v526 = vsub.s32 3, %v525
    %v527 = vrot.slane %v510, %v526
    %s532 = smul.u32 4, 32
    %s533 = smul.u32 %s532, 8
    %s534 = sshll.u32 %s533, 4
    %535 = dma.done [#allocation5], %s534
    %s536 = smul.u32 0, 4
    %s537 = smul.addr %s536, 8
    %s538 = scalar_lea.vmem [#allocation2], %s537
    %v539 = vld [vmem:[%s538] sm:$0xff]
    %v540 = vld [vmem:[%s538 + $0x8] sm:$0xff]
    %v541 = vld [vmem:[%s538 + $0x10] sm:$0xff]
    %v542 = vld [vmem:[%s538 + $0x18] sm:$0xff]
    %v543 = vadd.f32 %v539, 0.0
    %v544 = vadd.f32 %v540, 0.0
    %v545 = vadd.f32 %v541, 0.0
    %v546 = vadd.f32 %v542, 0.0
    %v547 = vxor.u32 %v543, 2147483648
    %v548 = vmul.f32 %v547, 1.442695
    %v549 = vpow.pop %v548
    %v550 = vadd.f32 %v549, 1.0
    %v551 = vrcp.pop %v550
    %v552 = vmul.f32 1.0, %v551
    %v553 = vxor.u32 %v544, 2147483648
    %v554 = vmul.f32 %v553, 1.442695
    %v555 = vpow.pop %v554
    %v556 = vadd.f32 %v555, 1.0
    %v557 = vrcp.pop %v556
    %v558 = vmul.f32 1.0, %v557
    %v559 = vtanh.pop %v545
    %v560 = vxor.u32 %v546, 2147483648
    %v561 = vmul.f32 %v560, 1.442695
    %v562 = vpow.pop %v561
    %v563 = vadd.f32 %v562, 1.0
    %v564 = vrcp.pop %v563
    %v565 = vmul.f32 1.0, %v564
    %v566 = vmul.f32 %v558, 0.0
    %v567 = vmul.f32 %v552, %v559
    %v568 = vadd.f32 %v566, %v567
    %v569 = vtanh.pop %v568
    %v570 = vmul.f32 %v565, %v569
    %v571 = vpack.c.bf16 %v570, %v570
    %v572 = vpack.c.bf16 0.0, 0.0
    %v573 = vld [vmem:[#allocation3] sm:$0xff]
    %v574 = vld [vmem:[#allocation3 + $0x8] sm:$0xff]
    %v575 = vld [vmem:[#allocation3 + $0x10] sm:$0xff]
    %v576 = vld [vmem:[#allocation3 + $0x18] sm:$0xff]
    %v577 = vld [vmem:[#allocation3 + $0x20] sm:$0xff]
    %v578 = vld [vmem:[#allocation3 + $0x28] sm:$0xff]
    %v579 = vld [vmem:[#allocation3 + $0x30] sm:$0xff]
    %v580 = vld [vmem:[#allocation3 + $0x38] sm:$0xff]
    %v581 = vld [vmem:[#allocation3 + $0x40] sm:$0xff]
    %v582 = vld [vmem:[#allocation3 + $0x48] sm:$0xff]
    %v583 = vld [vmem:[#allocation3 + $0x50] sm:$0xff]
    %v584 = vld [vmem:[#allocation3 + $0x58] sm:$0xff]
    %v585 = vld [vmem:[#allocation3 + $0x60] sm:$0xff]
    %v586 = vld [vmem:[#allocation3 + $0x68] sm:$0xff]
    %v587 = vld [vmem:[#allocation3 + $0x70] sm:$0xff]
    %v588 = vld [vmem:[#allocation3 + $0x78] sm:$0xff]
    %v589 = vld [vmem:[#allocation3 + $0x80] sm:$0xff]
    %v590 = vld [vmem:[#allocation3 + $0x88] sm:$0xff]
    %v591 = vld [vmem:[#allocation3 + $0x90] sm:$0xff]
    %v592 = vld [vmem:[#allocation3 + $0x98] sm:$0xff]
    %v593 = vld [vmem:[#allocation3 + $0xa0] sm:$0xff]
    %v594 = vld [vmem:[#allocation3 + $0xa8] sm:$0xff]
    %v595 = vld [vmem:[#allocation3 + $0xb0] sm:$0xff]
    %v596 = vld [vmem:[#allocation3 + $0xb8] sm:$0xff]
    %v597 = vld [vmem:[#allocation3 + $0xc0] sm:$0xff]
    %v598 = vld [vmem:[#allocation3 + $0xc8] sm:$0xff]
    %v599 = vld [vmem:[#allocation3 + $0xd0] sm:$0xff]
    %v600 = vld [vmem:[#allocation3 + $0xd8] sm:$0xff]
    %v601 = vld [vmem:[#allocation3 + $0xe0] sm:$0xff]
    %v602 = vld [vmem:[#allocation3 + $0xe8] sm:$0xff]
    %v603 = vld [vmem:[#allocation3 + $0xf0] sm:$0xff]
    %v604 = vld [vmem:[#allocation3 + $0xf8] sm:$0xff]
    %v605 = vld [vmem:[#allocation3 + $0x100] sm:$0xff]
    %v606 = vld [vmem:[#allocation3 + $0x108] sm:$0xff]
    %v607 = vld [vmem:[#allocation3 + $0x110] sm:$0xff]
    %v608 = vld [vmem:[#allocation3 + $0x118] sm:$0xff]
    %v609 = vld [vmem:[#allocation3 + $0x120] sm:$0xff]
    %v610 = vld [vmem:[#allocation3 + $0x128] sm:$0xff]
    %v611 = vld [vmem:[#allocation3 + $0x130] sm:$0xff]
    %v612 = vld [vmem:[#allocation3 + $0x138] sm:$0xff]
    %v613 = vld [vmem:[#allocation3 + $0x140] sm:$0xff]
    %v614 = vld [vmem:[#allocation3 + $0x148] sm:$0xff]
    %v615 = vld [vmem:[#allocation3 + $0x150] sm:$0xff]
    %v616 = vld [vmem:[#allocation3 + $0x158] sm:$0xff]
    %v617 = vld [vmem:[#allocation3 + $0x160] sm:$0xff]
    %v618 = vld [vmem:[#allocation3 + $0x168] sm:$0xff]
    %v619 = vld [vmem:[#allocation3 + $0x170] sm:$0xff]
    %v620 = vld [vmem:[#allocation3 + $0x178] sm:$0xff]
    %v621 = vld [vmem:[#allocation3 + $0x180] sm:$0xff]
    %v622 = vld [vmem:[#allocation3 + $0x188] sm:$0xff]
    %v623 = vld [vmem:[#allocation3 + $0x190] sm:$0xff]
    %v624 = vld [vmem:[#allocation3 + $0x198] sm:$0xff]
    %v625 = vld [vmem:[#allocation3 + $0x1a0] sm:$0xff]
    %v626 = vld [vmem:[#allocation3 + $0x1a8] sm:$0xff]
    %v627 = vld [vmem:[#allocation3 + $0x1b0] sm:$0xff]
    %v628 = vld [vmem:[#allocation3 + $0x1b8] sm:$0xff]
    %v629 = vld [vmem:[#allocation3 + $0x1c0] sm:$0xff]
    %v630 = vld [vmem:[#allocation3 + $0x1c8] sm:$0xff]
    %v631 = vld [vmem:[#allocation3 + $0x1d0] sm:$0xff]
    %v632 = vld [vmem:[#allocation3 + $0x1d8] sm:$0xff]
    %v633 = vld [vmem:[#allocation3 + $0x1e0] sm:$0xff]
    %v634 = vld [vmem:[#allocation3 + $0x1e8] sm:$0xff]
    %v635 = vld [vmem:[#allocation3 + $0x1f0] sm:$0xff]
    %v636 = vld [vmem:[#allocation3 + $0x1f8] sm:$0xff]
    %v637 = vld [vmem:[#allocation3 + $0x200] sm:$0xff]
    %v638 = vld [vmem:[#allocation3 + $0x208] sm:$0xff]
    %v639 = vld [vmem:[#allocation3 + $0x210] sm:$0xff]
    %v640 = vld [vmem:[#allocation3 + $0x218] sm:$0xff]
    %v641 = vld [vmem:[#allocation3 + $0x220] sm:$0xff]
    %v642 = vld [vmem:[#allocation3 + $0x228] sm:$0xff]
    %v643 = vld [vmem:[#allocation3 + $0x230] sm:$0xff]
    %v644 = vld [vmem:[#allocation3 + $0x238] sm:$0xff]
    %v645 = vld [vmem:[#allocation3 + $0x240] sm:$0xff]
    %v646 = vld [vmem:[#allocation3 + $0x248] sm:$0xff]
    %v647 = vld [vmem:[#allocation3 + $0x250] sm:$0xff]
    %v648 = vld [vmem:[#allocation3 + $0x258] sm:$0xff]
    %v649 = vld [vmem:[#allocation3 + $0x260] sm:$0xff]
    %v650 = vld [vmem:[#allocation3 + $0x268] sm:$0xff]
    %v651 = vld [vmem:[#allocation3 + $0x270] sm:$0xff]
    %v652 = vld [vmem:[#allocation3 + $0x278] sm:$0xff]
    %v653 = vld [vmem:[#allocation3 + $0x280] sm:$0xff]
    %v654 = vld [vmem:[#allocation3 + $0x288] sm:$0xff]
    %v655 = vld [vmem:[#allocation3 + $0x290] sm:$0xff]
    %v656 = vld [vmem:[#allocation3 + $0x298] sm:$0xff]
    %v657 = vld [vmem:[#allocation3 + $0x2a0] sm:$0xff]
    %v658 = vld [vmem:[#allocation3 + $0x2a8] sm:$0xff]
    %v659 = vld [vmem:[#allocation3 + $0x2b0] sm:$0xff]
    %v660 = vld [vmem:[#allocation3 + $0x2b8] sm:$0xff]
    %v661 = vld [vmem:[#allocation3 + $0x2c0] sm:$0xff]
    %v662 = vld [vmem:[#allocation3 + $0x2c8] sm:$0xff]
    %v663 = vld [vmem:[#allocation3 + $0x2d0] sm:$0xff]
    %v664 = vld [vmem:[#allocation3 + $0x2d8] sm:$0xff]
    %v665 = vld [vmem:[#allocation3 + $0x2e0] sm:$0xff]
    %v666 = vld [vmem:[#allocation3 + $0x2e8] sm:$0xff]
    %v667 = vld [vmem:[#allocation3 + $0x2f0] sm:$0xff]
    %v668 = vld [vmem:[#allocation3 + $0x2f8] sm:$0xff]
    %v669 = vld [vmem:[#allocation3 + $0x300] sm:$0xff]
    %v670 = vld [vmem:[#allocation3 + $0x308] sm:$0xff]
    %v671 = vld [vmem:[#allocation3 + $0x310] sm:$0xff]
    %v672 = vld [vmem:[#allocation3 + $0x318] sm:$0xff]
    %v673 = vld [vmem:[#allocation3 + $0x320] sm:$0xff]
    %v674 = vld [vmem:[#allocation3 + $0x328] sm:$0xff]
    %v675 = vld [vmem:[#allocation3 + $0x330] sm:$0xff]
    %v676 = vld [vmem:[#allocation3 + $0x338] sm:$0xff]
    %v677 = vld [vmem:[#allocation3 + $0x340] sm:$0xff]
    %v678 = vld [vmem:[#allocation3 + $0x348] sm:$0xff]
    %v679 = vld [vmem:[#allocation3 + $0x350] sm:$0xff]
    %v680 = vld [vmem:[#allocation3 + $0x358] sm:$0xff]
    %v681 = vld [vmem:[#allocation3 + $0x360] sm:$0xff]
    %v682 = vld [vmem:[#allocation3 + $0x368] sm:$0xff]
    %v683 = vld [vmem:[#allocation3 + $0x370] sm:$0xff]
    %v684 = vld [vmem:[#allocation3 + $0x378] sm:$0xff]
    %v685 = vld [vmem:[#allocation3 + $0x380] sm:$0xff]
    %v686 = vld [vmem:[#allocation3 + $0x388] sm:$0xff]
    %v687 = vld [vmem:[#allocation3 + $0x390] sm:$0xff]
    %v688 = vld [vmem:[#allocation3 + $0x398] sm:$0xff]
    %v689 = vld [vmem:[#allocation3 + $0x3a0] sm:$0xff]
    %v690 = vld [vmem:[#allocation3 + $0x3a8] sm:$0xff]
    %v691 = vld [vmem:[#allocation3 + $0x3b0] sm:$0xff]
    %v692 = vld [vmem:[#allocation3 + $0x3b8] sm:$0xff]
    %v693 = vld [vmem:[#allocation3 + $0x3c0] sm:$0xff]
    %v694 = vld [vmem:[#allocation3 + $0x3c8] sm:$0xff]
    %v695 = vld [vmem:[#allocation3 + $0x3d0] sm:$0xff]
    %v696 = vld [vmem:[#allocation3 + $0x3d8] sm:$0xff]
    %v697 = vld [vmem:[#allocation3 + $0x3e0] sm:$0xff]
    %v698 = vld [vmem:[#allocation3 + $0x3e8] sm:$0xff]
    %v699 = vld [vmem:[#allocation3 + $0x3f0] sm:$0xff]
    %v700 = vld [vmem:[#allocation3 + $0x3f8] sm:$0xff]
    %v829 = vunpack.c.l.b16 %v573
    %v830 = vunpack.c.h.b16 %v573
    %v831 = vunpack.c.l.b16 %v574
    %v832 = vunpack.c.h.b16 %v574
    %v833 = vunpack.c.l.b16 %v575
    %v834 = vunpack.c.h.b16 %v575
    %v835 = vunpack.c.l.b16 %v576
    %v836 = vunpack.c.h.b16 %v576
    %v837 = vunpack.c.l.b16 %v577
    %v838 = vunpack.c.h.b16 %v577
    %v839 = vunpack.c.l.b16 %v578
    %v840 = vunpack.c.h.b16 %v578
    %v841 = vunpack.c.l.b16 %v579
    %v842 = vunpack.c.h.b16 %v579
    %v843 = vunpack.c.l.b16 %v580
    %v844 = vunpack.c.h.b16 %v580
    %v845 = vunpack.c.l.b16 %v581
    %v846 = vunpack.c.h.b16 %v581
    %v847 = vunpack.c.l.b16 %v582
    %v848 = vunpack.c.h.b16 %v582
    %v849 = vunpack.c.l.b16 %v583
    %v850 = vunpack.c.h.b16 %v583
    %v851 = vunpack.c.l.b16 %v584
    %v852 = vunpack.c.h.b16 %v584
    %v853 = vunpack.c.l.b16 %v585
    %v854 = vunpack.c.h.b16 %v585
    %v855 = vunpack.c.l.b16 %v586
    %v856 = vunpack.c.h.b16 %v586
    %v857 = vunpack.c.l.b16 %v587
    %v858 = vunpack.c.h.b16 %v587
    %v859 = vunpack.c.l.b16 %v588
    %v860 = vunpack.c.h.b16 %v588
    %v861 = vunpack.c.l.b16 %v589
    %v862 = vunpack.c.h.b16 %v589
    %v863 = vunpack.c.l.b16 %v590
    %v864 = vunpack.c.h.b16 %v590
    %v865 = vunpack.c.l.b16 %v591
    %v866 = vunpack.c.h.b16 %v591
    %v867 = vunpack.c.l.b16 %v592
    %v868 = vunpack.c.h.b16 %v592
    %v869 = vunpack.c.l.b16 %v593
    %v870 = vunpack.c.h.b16 %v593
    %v871 = vunpack.c.l.b16 %v594
    %v872 = vunpack.c.h.b16 %v594
    %v873 = vunpack.c.l.b16 %v595
    %v874 = vunpack.c.h.b16 %v595
    %v875 = vunpack.c.l.b16 %v596
    %v876 = vunpack.c.h.b16 %v596
    %v877 = vunpack.c.l.b16 %v597
    %v878 = vunpack.c.h.b16 %v597
    %v879 = vunpack.c.l.b16 %v598
    %v880 = vunpack.c.h.b16 %v598
    %v881 = vunpack.c.l.b16 %v599
    %v882 = vunpack.c.h.b16 %v599
    %v883 = vunpack.c.l.b16 %v600
    %v884 = vunpack.c.h.b16 %v600
    %v885 = vunpack.c.l.b16 %v601
    %v886 = vunpack.c.h.b16 %v601
    %v887 = vunpack.c.l.b16 %v602
    %v888 = vunpack.c.h.b16 %v602
    %v889 = vunpack.c.l.b16 %v603
    %v890 = vunpack.c.h.b16 %v603
    %v891 = vunpack.c.l.b16 %v604
    %v892 = vunpack.c.h.b16 %v604
    %v893 = vunpack.c.l.b16 %v605
    %v894 = vunpack.c.h.b16 %v605
    %v895 = vunpack.c.l.b16 %v606
    %v896 = vunpack.c.h.b16 %v606
    %v897 = vunpack.c.l.b16 %v607
    %v898 = vunpack.c.h.b16 %v607
    %v899 = vunpack.c.l.b16 %v608
    %v900 = vunpack.c.h.b16 %v608
    %v901 = vunpack.c.l.b16 %v609
    %v902 = vunpack.c.h.b16 %v609
    %v903 = vunpack.c.l.b16 %v610
    %v904 = vunpack.c.h.b16 %v610
    %v905 = vunpack.c.l.b16 %v611
    %v906 = vunpack.c.h.b16 %v611
    %v907 = vunpack.c.l.b16 %v612
    %v908 = vunpack.c.h.b16 %v612
    %v909 = vunpack.c.l.b16 %v613
    %v910 = vunpack.c.h.b16 %v613
    %v911 = vunpack.c.l.b16 %v614
    %v912 = vunpack.c.h.b16 %v614
    %v913 = vunpack.c.l.b16 %v615
    %v914 = vunpack.c.h.b16 %v615
    %v915 = vunpack.c.l.b16 %v616
    %v916 = vunpack.c.h.b16 %v616
    %v917 = vunpack.c.l.b16 %v617
    %v918 = vunpack.c.h.b16 %v617
    %v919 = vunpack.c.l.b16 %v618
    %v920 = vunpack.c.h.b16 %v618
    %v921 = vunpack.c.l.b16 %v619
    %v922 = vunpack.c.h.b16 %v619
    %v923 = vunpack.c.l.b16 %v620
    %v924 = vunpack.c.h.b16 %v620
    %v925 = vunpack.c.l.b16 %v621
    %v926 = vunpack.c.h.b16 %v621
    %v927 = vunpack.c.l.b16 %v622
    %v928 = vunpack.c.h.b16 %v622
    %v929 = vunpack.c.l.b16 %v623
    %v930 = vunpack.c.h.b16 %v623
    %v931 = vunpack.c.l.b16 %v624
    %v932 = vunpack.c.h.b16 %v624
    %v933 = vunpack.c.l.b16 %v625
    %v934 = vunpack.c.h.b16 %v625
    %v935 = vunpack.c.l.b16 %v626
    %v936 = vunpack.c.h.b16 %v626
    %v937 = vunpack.c.l.b16 %v627
    %v938 = vunpack.c.h.b16 %v627
    %v939 = vunpack.c.l.b16 %v628
    %v940 = vunpack.c.h.b16 %v628
    %v941 = vunpack.c.l.b16 %v629
    %v942 = vunpack.c.h.b16 %v629
    %v943 = vunpack.c.l.b16 %v630
    %v944 = vunpack.c.h.b16 %v630
    %v945 = vunpack.c.l.b16 %v631
    %v946 = vunpack.c.h.b16 %v631
    %v947 = vunpack.c.l.b16 %v632
    %v948 = vunpack.c.h.b16 %v632
    %v949 = vunpack.c.l.b16 %v633
    %v950 = vunpack.c.h.b16 %v633
    %v951 = vunpack.c.l.b16 %v634
    %v952 = vunpack.c.h.b16 %v634
    %v953 = vunpack.c.l.b16 %v635
    %v954 = vunpack.c.h.b16 %v635
    %v955 = vunpack.c.l.b16 %v636
    %v956 = vunpack.c.h.b16 %v636
    %v957 = vunpack.c.l.b16 %v637
    %v958 = vunpack.c.h.b16 %v637
    %v959 = vunpack.c.l.b16 %v638
    %v960 = vunpack.c.h.b16 %v638
    %v961 = vunpack.c.l.b16 %v639
    %v962 = vunpack.c.h.b16 %v639
    %v963 = vunpack.c.l.b16 %v640
    %v964 = vunpack.c.h.b16 %v640
    %v965 = vunpack.c.l.b16 %v641
    %v966 = vunpack.c.h.b16 %v641
    %v967 = vunpack.c.l.b16 %v642
    %v968 = vunpack.c.h.b16 %v642
    %v969 = vunpack.c.l.b16 %v643
    %v970 = vunpack.c.h.b16 %v643
    %v971 = vunpack.c.l.b16 %v644
    %v972 = vunpack.c.h.b16 %v644
    %v973 = vunpack.c.l.b16 %v645
    %v974 = vunpack.c.h.b16 %v645
    %v975 = vunpack.c.l.b16 %v646
    %v976 = vunpack.c.h.b16 %v646
    %v977 = vunpack.c.l.b16 %v647
    %v978 = vunpack.c.h.b16 %v647
    %v979 = vunpack.c.l.b16 %v648
    %v980 = vunpack.c.h.b16 %v648
    %v981 = vunpack.c.l.b16 %v649
    %v982 = vunpack.c.h.b16 %v649
    %v983 = vunpack.c.l.b16 %v650
    %v984 = vunpack.c.h.b16 %v650
    %v985 = vunpack.c.l.b16 %v651
    %v986 = vunpack.c.h.b16 %v651
    %v987 = vunpack.c.l.b16 %v652
    %v988 = vunpack.c.h.b16 %v652
    %v989 = vunpack.c.l.b16 %v653
    %v990 = vunpack.c.h.b16 %v653
    %v991 = vunpack.c.l.b16 %v654
    %v992 = vunpack.c.h.b16 %v654
    %v993 = vunpack.c.l.b16 %v655
    %v994 = vunpack.c.h.b16 %v655
    %v995 = vunpack.c.l.b16 %v656
    %v996 = vunpack.c.h.b16 %v656
    %v997 = vunpack.c.l.b16 %v657
    %v998 = vunpack.c.h.b16 %v657
    %v999 = vunpack.c.l.b16 %v658
    %v1000 = vunpack.c.h.b16 %v658
    %v1001 = vunpack.c.l.b16 %v659
    %v1002 = vunpack.c.h.b16 %v659
    %v1003 = vunpack.c.l.b16 %v660
    %v1004 = vunpack.c.h.b16 %v660
    %v1005 = vunpack.c.l.b16 %v661
    %v1006 = vunpack.c.h.b16 %v661
    %v1007 = vunpack.c.l.b16 %v662
    %v1008 = vunpack.c.h.b16 %v662
    %v1009 = vunpack.c.l.b16 %v663
    %v1010 = vunpack.c.h.b16 %v663
    %v1011 = vunpack.c.l.b16 %v664
    %v1012 = vunpack.c.h.b16 %v664
    %v1013 = vunpack.c.l.b16 %v665
    %v1014 = vunpack.c.h.b16 %v665
    %v1015 = vunpack.c.l.b16 %v666
    %v1016 = vunpack.c.h.b16 %v666
    %v1017 = vunpack.c.l.b16 %v667
    %v1018 = vunpack.c.h.b16 %v667
    %v1019 = vunpack.c.l.b16 %v668
    %v1020 = vunpack.c.h.b16 %v668
    %v1021 = vunpack.c.l.b16 %v669
    %v1022 = vunpack.c.h.b16 %v669
    %v1023 = vunpack.c.l.b16 %v670
    %v1024 = vunpack.c.h.b16 %v670
    %v1025 = vunpack.c.l.b16 %v671
    %v1026 = vunpack.c.h.b16 %v671
    %v1027 = vunpack.c.l.b16 %v672
    %v1028 = vunpack.c.h.b16 %v672
    %v1029 = vunpack.c.l.b16 %v673
    %v1030 = vunpack.c.h.b16 %v673
    %v1031 = vunpack.c.l.b16 %v674
    %v1032 = vunpack.c.h.b16 %v674
    %v1033 = vunpack.c.l.b16 %v675
    %v1034 = vunpack.c.h.b16 %v675
    %v1035 = vunpack.c.l.b16 %v676
    %v1036 = vunpack.c.h.b16 %v676
    %v1037 = vunpack.c.l.b16 %v677
    %v1038 = vunpack.c.h.b16 %v677
    %v1039 = vunpack.c.l.b16 %v678
    %v1040 = vunpack.c.h.b16 %v678
    %v1041 = vunpack.c.l.b16 %v679
    %v1042 = vunpack.c.h.b16 %v679
    %v1043 = vunpack.c.l.b16 %v680
    %v1044 = vunpack.c.h.b16 %v680
    %v1045 = vunpack.c.l.b16 %v681
    %v1046 = vunpack.c.h.b16 %v681
    %v1047 = vunpack.c.l.b16 %v682
    %v1048 = vunpack.c.h.b16 %v682
    %v1049 = vunpack.c.l.b16 %v683
    %v1050 = vunpack.c.h.b16 %v683
    %v1051 = vunpack.c.l.b16 %v684
    %v1052 = vunpack.c.h.b16 %v684
    %v1053 = vunpack.c.l.b16 %v685
    %v1054 = vunpack.c.h.b16 %v685
    %v1055 = vunpack.c.l.b16 %v686
    %v1056 = vunpack.c.h.b16 %v686
    %v1057 = vunpack.c.l.b16 %v687
    %v1058 = vunpack.c.h.b16 %v687
    %v1059 = vunpack.c.l.b16 %v688
    %v1060 = vunpack.c.h.b16 %v688
    %v1061 = vunpack.c.l.b16 %v689
    %v1062 = vunpack.c.h.b16 %v689
    %v1063 = vunpack.c.l.b16 %v690
    %v1064 = vunpack.c.h.b16 %v690
    %v1065 = vunpack.c.l.b16 %v691
    %v1066 = vunpack.c.h.b16 %v691
    %v1067 = vunpack.c.l.b16 %v692
    %v1068 = vunpack.c.h.b16 %v692
    %v1069 = vunpack.c.l.b16 %v693
    %v1070 = vunpack.c.h.b16 %v693
    %v1071 = vunpack.c.l.b16 %v694
    %v1072 = vunpack.c.h.b16 %v694
    %v1073 = vunpack.c.l.b16 %v695
    %v1074 = vunpack.c.h.b16 %v695
    %v1075 = vunpack.c.l.b16 %v696
    %v1076 = vunpack.c.h.b16 %v696
    %v1077 = vunpack.c.l.b16 %v697
    %v1078 = vunpack.c.h.b16 %v697
    %v1079 = vunpack.c.l.b16 %v698
    %v1080 = vunpack.c.h.b16 %v698
    %v1081 = vunpack.c.l.b16 %v699
    %v1082 = vunpack.c.h.b16 %v699
    %v1083 = vunpack.c.l.b16 %v700
    %v1084 = vunpack.c.h.b16 %v700
    %v1085 = vpack.c.b16 %v837, %v829
    %v1086 = vpack.c.b16 %v838, %v830
    %v1087 = vpack.c.b16 %v839, %v831
    %v1088 = vpack.c.b16 %v840, %v832
    %v1089 = vpack.c.b16 %v841, %v833
    %v1090 = vpack.c.b16 %v842, %v834
    %v1091 = vpack.c.b16 %v843, %v835
    %v1092 = vpack.c.b16 %v844, %v836
    %v1093 = vpack.c.b16 %v853, %v845
    %v1094 = vpack.c.b16 %v854, %v846
    %v1095 = vpack.c.b16 %v855, %v847
    %v1096 = vpack.c.b16 %v856, %v848
    %v1097 = vpack.c.b16 %v857, %v849
    %v1098 = vpack.c.b16 %v858, %v850
    %v1099 = vpack.c.b16 %v859, %v851
    %v1100 = vpack.c.b16 %v860, %v852
    %v1101 = vpack.c.b16 %v869, %v861
    %v1102 = vpack.c.b16 %v870, %v862
    %v1103 = vpack.c.b16 %v871, %v863
    %v1104 = vpack.c.b16 %v872, %v864
    %v1105 = vpack.c.b16 %v873, %v865
    %v1106 = vpack.c.b16 %v874, %v866
    %v1107 = vpack.c.b16 %v875, %v867
    %v1108 = vpack.c.b16 %v876, %v868
    %v1109 = vpack.c.b16 %v885, %v877
    %v1110 = vpack.c.b16 %v886, %v878
    %v1111 = vpack.c.b16 %v887, %v879
    %v1112 = vpack.c.b16 %v888, %v880
    %v1113 = vpack.c.b16 %v889, %v881
    %v1114 = vpack.c.b16 %v890, %v882
    %v1115 = vpack.c.b16 %v891, %v883
    %v1116 = vpack.c.b16 %v892, %v884
    %v1117 = vpack.c.b16 %v901, %v893
    %v1118 = vpack.c.b16 %v902, %v894
    %v1119 = vpack.c.b16 %v903, %v895
    %v1120 = vpack.c.b16 %v904, %v896
    %v1121 = vpack.c.b16 %v905, %v897
    %v1122 = vpack.c.b16 %v906, %v898
    %v1123 = vpack.c.b16 %v907, %v899
    %v1124 = vpack.c.b16 %v908, %v900
    %v1125 = vpack.c.b16 %v917, %v909
    %v1126 = vpack.c.b16 %v918, %v910
    %v1127 = vpack.c.b16 %v919, %v911
    %v1128 = vpack.c.b16 %v920, %v912
    %v1129 = vpack.c.b16 %v921, %v913
    %v1130 = vpack.c.b16 %v922, %v914
    %v1131 = vpack.c.b16 %v923, %v915
    %v1132 = vpack.c.b16 %v924, %v916
    %v1133 = vpack.c.b16 %v933, %v925
    %v1134 = vpack.c.b16 %v934, %v926
    %v1135 = vpack.c.b16 %v935, %v927
    %v1136 = vpack.c.b16 %v936, %v928
    %v1137 = vpack.c.b16 %v937, %v929
    %v1138 = vpack.c.b16 %v938, %v930
    %v1139 = vpack.c.b16 %v939, %v931
    %v1140 = vpack.c.b16 %v940, %v932
    %v1141 = vpack.c.b16 %v949, %v941
    %v1142 = vpack.c.b16 %v950, %v942
    %v1143 = vpack.c.b16 %v951, %v943
    %v1144 = vpack.c.b16 %v952, %v944
    %v1145 = vpack.c.b16 %v953, %v945
    %v1146 = vpack.c.b16 %v954, %v946
    %v1147 = vpack.c.b16 %v955, %v947
    %v1148 = vpack.c.b16 %v956, %v948
    %v1149 = vpack.c.b16 %v965, %v957
    %v1150 = vpack.c.b16 %v966, %v958
    %v1151 = vpack.c.b16 %v967, %v959
    %v1152 = vpack.c.b16 %v968, %v960
    %v1153 = vpack.c.b16 %v969, %v961
    %v1154 = vpack.c.b16 %v970, %v962
    %v1155 = vpack.c.b16 %v971, %v963
    %v1156 = vpack.c.b16 %v972, %v964
    %v1157 = vpack.c.b16 %v981, %v973
    %v1158 = vpack.c.b16 %v982, %v974
    %v1159 = vpack.c.b16 %v983, %v975
    %v1160 = vpack.c.b16 %v984, %v976
    %v1161 = vpack.c.b16 %v985, %v977
    %v1162 = vpack.c.b16 %v986, %v978
    %v1163 = vpack.c.b16 %v987, %v979
    %v1164 = vpack.c.b16 %v988, %v980
    %v1165 = vpack.c.b16 %v997, %v989
    %v1166 = vpack.c.b16 %v998, %v990
    %v1167 = vpack.c.b16 %v999, %v991
    %v1168 = vpack.c.b16 %v1000, %v992
    %v1169 = vpack.c.b16 %v1001, %v993
    %v1170 = vpack.c.b16 %v1002, %v994
    %v1171 = vpack.c.b16 %v1003, %v995
    %v1172 = vpack.c.b16 %v1004, %v996
    %v1173 = vpack.c.b16 %v1013, %v1005
    %v1174 = vpack.c.b16 %v1014, %v1006
    %v1175 = vpack.c.b16 %v1015, %v1007
    %v1176 = vpack.c.b16 %v1016, %v1008
    %v1177 = vpack.c.b16 %v1017, %v1009
    %v1178 = vpack.c.b16 %v1018, %v1010
    %v1179 = vpack.c.b16 %v1019, %v1011
    %v1180 = vpack.c.b16 %v1020, %v1012
    %v1181 = vpack.c.b16 %v1029, %v1021
    %v1182 = vpack.c.b16 %v1030, %v1022
    %v1183 = vpack.c.b16 %v1031, %v1023
    %v1184 = vpack.c.b16 %v1032, %v1024
    %v1185 = vpack.c.b16 %v1033, %v1025
    %v1186 = vpack.c.b16 %v1034, %v1026
    %v1187 = vpack.c.b16 %v1035, %v1027
    %v1188 = vpack.c.b16 %v1036, %v1028
    %v1189 = vpack.c.b16 %v1045, %v1037
    %v1190 = vpack.c.b16 %v1046, %v1038
    %v1191 = vpack.c.b16 %v1047, %v1039
    %v1192 = vpack.c.b16 %v1048, %v1040
    %v1193 = vpack.c.b16 %v1049, %v1041
    %v1194 = vpack.c.b16 %v1050, %v1042
    %v1195 = vpack.c.b16 %v1051, %v1043
    %v1196 = vpack.c.b16 %v1052, %v1044
    %v1197 = vpack.c.b16 %v1061, %v1053
    %v1198 = vpack.c.b16 %v1062, %v1054
    %v1199 = vpack.c.b16 %v1063, %v1055
    %v1200 = vpack.c.b16 %v1064, %v1056
    %v1201 = vpack.c.b16 %v1065, %v1057
    %v1202 = vpack.c.b16 %v1066, %v1058
    %v1203 = vpack.c.b16 %v1067, %v1059
    %v1204 = vpack.c.b16 %v1068, %v1060
    %v1205 = vpack.c.b16 %v1077, %v1069
    %v1206 = vpack.c.b16 %v1078, %v1070
    %v1207 = vpack.c.b16 %v1079, %v1071
    %v1208 = vpack.c.b16 %v1080, %v1072
    %v1209 = vpack.c.b16 %v1081, %v1073
    %v1210 = vpack.c.b16 %v1082, %v1074
    %v1211 = vpack.c.b16 %v1083, %v1075
    %v1212 = vpack.c.b16 %v1084, %v1076
    %1341 = vmatprep.subr.bf16.mxu0 %v1142
    %1342 = vmatpush1.bf16.msra.mxu0 %v1141
    %1343 = vmatprep.subr.bf16.mxu0 %v1134
    %1344 = vmatpush1.bf16.msra.mxu0 %v1133
    %1345 = vmatprep.subr.bf16.mxu0 %v1126
    %1346 = vmatpush1.bf16.msra.mxu0 %v1125
    %1347 = vmatprep.subr.bf16.mxu0 %v1118
    %1348 = vmatpush1.bf16.msra.mxu0 %v1117
    %1349 = vmatprep.subr.bf16.mxu0 %v1110
    %1350 = vmatpush1.bf16.msra.mxu0 %v1109
    %1351 = vmatprep.subr.bf16.mxu0 %v1102
    %1352 = vmatpush1.bf16.msra.mxu0 %v1101
    %1353 = vmatprep.subr.bf16.mxu0 %v1094
    %1354 = vmatpush1.bf16.msra.mxu0 %v1093
    %1355 = vmatprep.subr.bf16.mxu0 %v1086
    %1356 = vmatpush1.bf16.msra.mxu0 %v1085
    %1357 = vmatprep.subr.bf16.mxu0 %v1206
    %1358 = vmatpush2.bf16.msra.mxu0 %v1205
    %1359 = vmatprep.subr.bf16.mxu0 %v1198
    %1360 = vmatpush2.bf16.msra.mxu0 %v1197
    %1361 = vmatprep.subr.bf16.mxu0 %v1190
    %1362 = vmatpush2.bf16.msra.mxu0 %v1189
    %1363 = vmatprep.subr.bf16.mxu0 %v1182
    %1364 = vmatpush2.bf16.msra.mxu0 %v1181
    %1365 = vmatprep.subr.bf16.mxu0 %v1174
    %1366 = vmatpush2.bf16.msra.mxu0 %v1173
    %1367 = vmatprep.subr.bf16.mxu0 %v1166
    %1368 = vmatpush2.bf16.msra.mxu0 %v1165
    %1369 = vmatprep.subr.bf16.mxu0 %v1158
    %1370 = vmatpush2.bf16.msra.mxu0 %v1157
    %1371 = vmatprep.subr.bf16.mxu0 %v1150
    %1372 = vmatpush2.bf16.msra.mxu0 %v1149
    %1373 = vmatprep.mubr.bf16.mxu0 %v572
    %1374 = vmatmul.mubr.bf16.gmra.mxu0 %v571
    %v1375 = vpop.f32.mrf.mxu0
    %v1376 = vadd.f32 0.0, %v1375
    %v1377 = vpop.f32.mrf.mxu0
    %v1378 = vadd.f32 0.0, %v1377
    %v1379 = vpop.f32.mrf.mxu0
    %v1380 = vpop.f32.mrf.mxu0
    %1381 = vdwg.mxu0
    %1382 = vmatprep.subr.bf16.mxu0 %v1144
    %1383 = vmatpush1.bf16.msra.mxu0 %v1143
    %1384 = vmatprep.subr.bf16.mxu0 %v1136
    %1385 = vmatpush1.bf16.msra.mxu0 %v1135
    %1386 = vmatprep.subr.bf16.mxu0 %v1128
    %1387 = vmatpush1.bf16.msra.mxu0 %v1127
    %1388 = vmatprep.subr.bf16.mxu0 %v1120
    %1389 = vmatpush1.bf16.msra.mxu0 %v1119
    %1390 = vmatprep.subr.bf16.mxu0 %v1112
    %1391 = vmatpush1.bf16.msra.mxu0 %v1111
    %1392 = vmatprep.subr.bf16.mxu0 %v1104
    %1393 = vmatpush1.bf16.msra.mxu0 %v1103
    %1394 = vmatprep.subr.bf16.mxu0 %v1096
    %1395 = vmatpush1.bf16.msra.mxu0 %v1095
    %1396 = vmatprep.subr.bf16.mxu0 %v1088
    %1397 = vmatpush1.bf16.msra.mxu0 %v1087
    %1398 = vmatprep.subr.bf16.mxu0 %v1208
    %1399 = vmatpush2.bf16.msra.mxu0 %v1207
    %1400 = vmatprep.subr.bf16.mxu0 %v1200
    %1401 = vmatpush2.bf16.msra.mxu0 %v1199
    %1402 = vmatprep.subr.bf16.mxu0 %v1192
    %1403 = vmatpush2.bf16.msra.mxu0 %v1191
    %1404 = vmatprep.subr.bf16.mxu0 %v1184
    %1405 = vmatpush2.bf16.msra.mxu0 %v1183
    %1406 = vmatprep.subr.bf16.mxu0 %v1176
    %1407 = vmatpush2.bf16.msra.mxu0 %v1175
    %1408 = vmatprep.subr.bf16.mxu0 %v1168
    %1409 = vmatpush2.bf16.msra.mxu0 %v1167
    %1410 = vmatprep.subr.bf16.mxu0 %v1160
    %1411 = vmatpush2.bf16.msra.mxu0 %v1159
    %1412 = vmatprep.subr.bf16.mxu0 %v1152
    %1413 = vmatpush2.bf16.msra.mxu0 %v1151
    %1414 = vmatprep.mubr.bf16.mxu0 %v572
    %1415 = vmatmul.mubr.bf16.gmra.mxu0 %v571
    %v1416 = vpop.f32.mrf.mxu0
    %v1417 = vadd.f32 0.0, %v1416
    %v1418 = vpop.f32.mrf.mxu0
    %v1419 = vadd.f32 0.0, %v1418
    %v1420 = vpop.f32.mrf.mxu0
    %v1421 = vpop.f32.mrf.mxu0
    %1422 = vdwg.mxu0
    %1423 = vmatprep.subr.bf16.mxu0 %v1146
    %1424 = vmatpush1.bf16.msra.mxu0 %v1145
    %1425 = vmatprep.subr.bf16.mxu0 %v1138
    %1426 = vmatpush1.bf16.msra.mxu0 %v1137
    %1427 = vmatprep.subr.bf16.mxu0 %v1130
    %1428 = vmatpush1.bf16.msra.mxu0 %v1129
    %1429 = vmatprep.subr.bf16.mxu0 %v1122
    %1430 = vmatpush1.bf16.msra.mxu0 %v1121
    %1431 = vmatprep.subr.bf16.mxu0 %v1114
    %1432 = vmatpush1.bf16.msra.mxu0 %v1113
    %1433 = vmatprep.subr.bf16.mxu0 %v1106
    %1434 = vmatpush1.bf16.msra.mxu0 %v1105
    %1435 = vmatprep.subr.bf16.mxu0 %v1098
    %1436 = vmatpush1.bf16.msra.mxu0 %v1097
    %1437 = vmatprep.subr.bf16.mxu0 %v1090
    %1438 = vmatpush1.bf16.msra.mxu0 %v1089
    %1439 = vmatprep.subr.bf16.mxu0 %v1210
    %1440 = vmatpush2.bf16.msra.mxu0 %v1209
    %1441 = vmatprep.subr.bf16.mxu0 %v1202
    %1442 = vmatpush2.bf16.msra.mxu0 %v1201
    %1443 = vmatprep.subr.bf16.mxu0 %v1194
    %1444 = vmatpush2.bf16.msra.mxu0 %v1193
    %1445 = vmatprep.subr.bf16.mxu0 %v1186
    %1446 = vmatpush2.bf16.msra.mxu0 %v1185
    %1447 = vmatprep.subr.bf16.mxu0 %v1178
    %1448 = vmatpush2.bf16.msra.mxu0 %v1177
    %1449 = vmatprep.subr.bf16.mxu0 %v1170
    %1450 = vmatpush2.bf16.msra.mxu0 %v1169
    %1451 = vmatprep.subr.bf16.mxu0 %v1162
    %1452 = vmatpush2.bf16.msra.mxu0 %v1161
    %1453 = vmatprep.subr.bf16.mxu0 %v1154
    %1454 = vmatpush2.bf16.msra.mxu0 %v1153
    %1455 = vmatprep.mubr.bf16.mxu0 %v572
    %1456 = vmatmul.mubr.bf16.gmra.mxu0 %v571
    %v1457 = vpop.f32.mrf.mxu0
    %v1458 = vadd.f32 0.0, %v1457
    %v1459 = vpop.f32.mrf.mxu0
    %v1460 = vadd.f32 0.0, %v1459
    %v1461 = vpop.f32.mrf.mxu0
    %v1462 = vpop.f32.mrf.mxu0
    %1463 = vdwg.mxu0
    %1464 = vmatprep.subr.bf16.mxu0 %v1148
    %1465 = vmatpush1.bf16.msra.mxu0 %v1147
    %1466 = vmatprep.subr.bf16.mxu0 %v1140
    %1467 = vmatpush1.bf16.msra.mxu0 %v1139
    %1468 = vmatprep.subr.bf16.mxu0 %v1132
    %1469 = vmatpush1.bf16.msra.mxu0 %v1131
    %1470 = vmatprep.subr.bf16.mxu0 %v1124
    %1471 = vmatpush1.bf16.msra.mxu0 %v1123
    %1472 = vmatprep.subr.bf16.mxu0 %v1116
    %1473 = vmatpush1.bf16.msra.mxu0 %v1115
    %1474 = vmatprep.subr.bf16.mxu0 %v1108
    %1475 = vmatpush1.bf16.msra.mxu0 %v1107
    %1476 = vmatprep.subr.bf16.mxu0 %v1100
    %1477 = vmatpush1.bf16.msra.mxu0 %v1099
    %1478 = vmatprep.subr.bf16.mxu0 %v1092
    %1479 = vmatpush1.bf16.msra.mxu0 %v1091
    %1480 = vmatprep.subr.bf16.mxu0 %v1212
    %1481 = vmatpush2.bf16.msra.mxu0 %v1211
    %1482 = vmatprep.subr.bf16.mxu0 %v1204
    %1483 = vmatpush2.bf16.msra.mxu0 %v1203
    %1484 = vmatprep.subr.bf16.mxu0 %v1196
    %1485 = vmatpush2.bf16.msra.mxu0 %v1195
    %1486 = vmatprep.subr.bf16.mxu0 %v1188
    %1487 = vmatpush2.bf16.msra.mxu0 %v1187
    %1488 = vmatprep.subr.bf16.mxu0 %v1180
    %1489 = vmatpush2.bf16.msra.mxu0 %v1179
    %1490 = vmatprep.subr.bf16.mxu0 %v1172
    %1491 = vmatpush2.bf16.msra.mxu0 %v1171
    %1492 = vmatprep.subr.bf16.mxu0 %v1164
    %1493 = vmatpush2.bf16.msra.mxu0 %v1163
    %1494 = vmatprep.subr.bf16.mxu0 %v1156
    %1495 = vmatpush2.bf16.msra.mxu0 %v1155
    %1496 = vmatprep.mubr.bf16.mxu0 %v572
    %1497 = vmatmul.mubr.bf16.gmra.mxu0 %v571
    %v1498 = vpop.f32.mrf.mxu0
    %v1499 = vadd.f32 0.0, %v1498
    %v1500 = vpop.f32.mrf.mxu0
    %v1501 = vadd.f32 0.0, %v1500
    %v1502 = vpop.f32.mrf.mxu0
    %v1503 = vpop.f32.mrf.mxu0
    %1504 = vdwg.mxu0
    %v1505 = vadd.f32 %v1376, %v515
    %v1506 = vadd.f32 %v1378, %v519
    %v1507 = vadd.f32 %v1417, %v523
    %v1508 = vadd.f32 %v1419, %v527
    %v1509 = vxor.u32 %v1505, 2147483648
    %v1510 = vmul.f32 %v1509, 1.442695
    %v1511 = vpow.pop %v1510
    %v1512 = vadd.f32 %v1511, 1.0
    %v1513 = vrcp.pop %v1512
    %v1514 = vmul.f32 1.0, %v1513
    %v1515 = vxor.u32 %v1506, 2147483648
    %v1516 = vmul.f32 %v1515, 1.442695
    %v1517 = vpow.pop %v1516
    %v1518 = vadd.f32 %v1517, 1.0
    %v1519 = vrcp.pop %v1518
    %v1520 = vmul.f32 1.0, %v1519
    %v1521 = vtanh.pop %v1507
    %v1522 = vxor.u32 %v1508, 2147483648
    %v1523 = vmul.f32 %v1522, 1.442695
    %v1524 = vpow.pop %v1523
    %v1525 = vadd.f32 %v1524, 1.0
    %v1526 = vrcp.pop %v1525
    %v1527 = vmul.f32 1.0, %v1526
    %v1528 = vmul.f32 %v1520, 0.0
    %v1529 = vmul.f32 %v1514, %v1521
    %v1530 = vadd.f32 %v1528, %v1529
    %v1531 = vtanh.pop %v1530
    %v1532 = vmul.f32 %v1527, %v1531
    %s1533 = smul.u32 1, 4
    %s1534 = smul.addr %s1533, 8
    %s1535 = scalar_lea.vmem [#allocation2], %s1534
    %v1536 = vld [vmem:[%s1535] sm:$0xff]
    %v1537 = vld [vmem:[%s1535 + $0x8] sm:$0xff]
    %v1538 = vld [vmem:[%s1535 + $0x10] sm:$0xff]
    %v1539 = vld [vmem:[%s1535 + $0x18] sm:$0xff]
    %v1540 = vadd.f32 %v1536, %v1458
    %v1541 = vadd.f32 %v1537, %v1460
    %v1542 = vadd.f32 %v1538, %v1499
    %v1543 = vadd.f32 %v1539, %v1501
    %v1544 = vxor.u32 %v1540, 2147483648
    %v1545 = vmul.f32 %v1544, 1.442695
    %v1546 = vpow.pop %v1545
    %v1547 = vadd.f32 %v1546, 1.0
    %v1548 = vrcp.pop %v1547
    %v1549 = vmul.f32 1.0, %v1548
    %v1550 = vxor.u32 %v1541, 2147483648
    %v1551 = vmul.f32 %v1550, 1.442695
    %v1552 = vpow.pop %v1551
    %v1553 = vadd.f32 %v1552, 1.0
    %v1554 = vrcp.pop %v1553
    %v1555 = vmul.f32 1.0, %v1554
    %v1556 = vtanh.pop %v1542
    %v1557 = vxor.u32 %v1543, 2147483648
    %v1558 = vmul.f32 %v1557, 1.442695
    %v1559 = vpow.pop %v1558
    %v1560 = vadd.f32 %v1559, 1.0
    %v1561 = vrcp.pop %v1560
    %v1562 = vmul.f32 1.0, %v1561
    %v1563 = vmul.f32 %v1555, %v568
    %v1564 = vmul.f32 %v1549, %v1556
    %v1565 = vadd.f32 %v1563, %v1564
    %v1566 = vtanh.pop %v1565
    %v1567 = vmul.f32 %v1562, %v1566
    %v1568 = vpack.c.bf16 %v1567, %v1567
    %v1569 = vpack.c.bf16 %v1532, %v1532
    %1570 = vmatprep.subr.bf16.mxu0 %v1142
    %1571 = vmatpush1.bf16.msra.mxu0 %v1141
    %1572 = vmatprep.subr.bf16.mxu0 %v1134
    %1573 = vmatpush1.bf16.msra.mxu0 %v1133
    %1574 = vmatprep.subr.bf16.mxu0 %v1126
    %1575 = vmatpush1.bf16.msra.mxu0 %v1125
    %1576 = vmatprep.subr.bf16.mxu0 %v1118
    %1577 = vmatpush1.bf16.msra.mxu0 %v1117
    %1578 = vmatprep.subr.bf16.mxu0 %v1110
    %1579 = vmatpush1.bf16.msra.mxu0 %v1109
    %1580 = vmatprep.subr.bf16.mxu0 %v1102
    %1581 = vmatpush1.bf16.msra.mxu0 %v1101
    %1582 = vmatprep.subr.bf16.mxu0 %v1094
    %1583 = vmatpush1.bf16.msra.mxu0 %v1093
    %1584 = vmatprep.subr.bf16.mxu0 %v1086
    %1585 = vmatpush1.bf16.msra.mxu0 %v1085
    %1586 = vmatprep.subr.bf16.mxu0 %v1206
    %1587 = vmatpush2.bf16.msra.mxu0 %v1205
    %1588 = vmatprep.subr.bf16.mxu0 %v1198
    %1589 = vmatpush2.bf16.msra.mxu0 %v1197
    %1590 = vmatprep.subr.bf16.mxu0 %v1190
    %1591 = vmatpush2.bf16.msra.mxu0 %v1189
    %1592 = vmatprep.subr.bf16.mxu0 %v1182
    %1593 = vmatpush2.bf16.msra.mxu0 %v1181
    %1594 = vmatprep.subr.bf16.mxu0 %v1174
    %1595 = vmatpush2.bf16.msra.mxu0 %v1173
    %1596 = vmatprep.subr.bf16.mxu0 %v1166
    %1597 = vmatpush2.bf16.msra.mxu0 %v1165
    %1598 = vmatprep.subr.bf16.mxu0 %v1158
    %1599 = vmatpush2.bf16.msra.mxu0 %v1157
    %1600 = vmatprep.subr.bf16.mxu0 %v1150
    %1601 = vmatpush2.bf16.msra.mxu0 %v1149
    %1602 = vmatprep.mubr.bf16.mxu0 %v1569
    %1603 = vmatmul.mubr.bf16.gmra.mxu0 %v1568
    %v1604 = vpop.f32.mrf.mxu0
    %v1605 = vadd.f32 0.0, %v1604
    %v1606 = vpop.f32.mrf.mxu0
    %v1607 = vadd.f32 0.0, %v1606
    %v1608 = vpop.f32.mrf.mxu0
    %v1609 = vpop.f32.mrf.mxu0
    %1610 = vdwg.mxu0
    %1611 = vmatprep.subr.bf16.mxu0 %v1144
    %1612 = vmatpush1.bf16.msra.mxu0 %v1143
    %1613 = vmatprep.subr.bf16.mxu0 %v1136
    %1614 = vmatpush1.bf16.msra.mxu0 %v1135
    %1615 = vmatprep.subr.bf16.mxu0 %v1128
    %1616 = vmatpush1.bf16.msra.mxu0 %v1127
    %1617 = vmatprep.subr.bf16.mxu0 %v1120
    %1618 = vmatpush1.bf16.msra.mxu0 %v1119
    %1619 = vmatprep.subr.bf16.mxu0 %v1112
    %1620 = vmatpush1.bf16.msra.mxu0 %v1111
    %1621 = vmatprep.subr.bf16.mxu0 %v1104
    %1622 = vmatpush1.bf16.msra.mxu0 %v1103
    %1623 = vmatprep.subr.bf16.mxu0 %v1096
    %1624 = vmatpush1.bf16.msra.mxu0 %v1095
    %1625 = vmatprep.subr.bf16.mxu0 %v1088
    %1626 = vmatpush1.bf16.msra.mxu0 %v1087
    %1627 = vmatprep.subr.bf16.mxu0 %v1208
    %1628 = vmatpush2.bf16.msra.mxu0 %v1207
    %1629 = vmatprep.subr.bf16.mxu0 %v1200
    %1630 = vmatpush2.bf16.msra.mxu0 %v1199
    %1631 = vmatprep.subr.bf16.mxu0 %v1192
    %1632 = vmatpush2.bf16.msra.mxu0 %v1191
    %1633 = vmatprep.subr.bf16.mxu0 %v1184
    %1634 = vmatpush2.bf16.msra.mxu0 %v1183
    %1635 = vmatprep.subr.bf16.mxu0 %v1176
    %1636 = vmatpush2.bf16.msra.mxu0 %v1175
    %1637 = vmatprep.subr.bf16.mxu0 %v1168
    %1638 = vmatpush2.bf16.msra.mxu0 %v1167
    %1639 = vmatprep.subr.bf16.mxu0 %v1160
    %1640 = vmatpush2.bf16.msra.mxu0 %v1159
    %1641 = vmatprep.subr.bf16.mxu0 %v1152
    %1642 = vmatpush2.bf16.msra.mxu0 %v1151
    %1643 = vmatprep.mubr.bf16.mxu0 %v1569
    %1644 = vmatmul.mubr.bf16.gmra.mxu0 %v1568
    %v1645 = vpop.f32.mrf.mxu0
    %v1646 = vadd.f32 0.0, %v1645
    %v1647 = vpop.f32.mrf.mxu0
    %v1648 = vadd.f32 0.0, %v1647
    %v1649 = vpop.f32.mrf.mxu0
    %v1650 = vpop.f32.mrf.mxu0
    %1651 = vdwg.mxu0
    %1652 = vmatprep.subr.bf16.mxu0 %v1146
    %1653 = vmatpush1.bf16.msra.mxu0 %v1145
    %1654 = vmatprep.subr.bf16.mxu0 %v1138
    %1655 = vmatpush1.bf16.msra.mxu0 %v1137
    %1656 = vmatprep.subr.bf16.mxu0 %v1130
    %1657 = vmatpush1.bf16.msra.mxu0 %v1129
    %1658 = vmatprep.subr.bf16.mxu0 %v1122
    %1659 = vmatpush1.bf16.msra.mxu0 %v1121
    %1660 = vmatprep.subr.bf16.mxu0 %v1114
    %1661 = vmatpush1.bf16.msra.mxu0 %v1113
    %1662 = vmatprep.subr.bf16.mxu0 %v1106
    %1663 = vmatpush1.bf16.msra.mxu0 %v1105
    %1664 = vmatprep.subr.bf16.mxu0 %v1098
    %1665 = vmatpush1.bf16.msra.mxu0 %v1097
    %1666 = vmatprep.subr.bf16.mxu0 %v1090
    %1667 = vmatpush1.bf16.msra.mxu0 %v1089
    %1668 = vmatprep.subr.bf16.mxu0 %v1210
    %1669 = vmatpush2.bf16.msra.mxu0 %v1209
    %1670 = vmatprep.subr.bf16.mxu0 %v1202
    %1671 = vmatpush2.bf16.msra.mxu0 %v1201
    %1672 = vmatprep.subr.bf16.mxu0 %v1194
    %1673 = vmatpush2.bf16.msra.mxu0 %v1193
    %1674 = vmatprep.subr.bf16.mxu0 %v1186
    %1675 = vmatpush2.bf16.msra.mxu0 %v1185
    %1676 = vmatprep.subr.bf16.mxu0 %v1178
    %1677 = vmatpush2.bf16.msra.mxu0 %v1177
    %1678 = vmatprep.subr.bf16.mxu0 %v1170
    %1679 = vmatpush2.bf16.msra.mxu0 %v1169
    %1680 = vmatprep.subr.bf16.mxu0 %v1162
    %1681 = vmatpush2.bf16.msra.mxu0 %v1161
    %1682 = vmatprep.subr.bf16.mxu0 %v1154
    %1683 = vmatpush2.bf16.msra.mxu0 %v1153
    %1684 = vmatprep.mubr.bf16.mxu0 %v1569
    %1685 = vmatmul.mubr.bf16.gmra.mxu0 %v1568
    %v1686 = vpop.f32.mrf.mxu0
    %v1687 = vadd.f32 0.0, %v1686
    %v1688 = vpop.f32.mrf.mxu0
    %v1689 = vadd.f32 0.0, %v1688
    %v1690 = vpop.f32.mrf.mxu0
    %v1691 = vpop.f32.mrf.mxu0
    %1692 = vdwg.mxu0
    %1693 = vmatprep.subr.bf16.mxu0 %v1148
    %1694 = vmatpush1.bf16.msra.mxu0 %v1147
    %1695 = vmatprep.subr.bf16.mxu0 %v1140
    %1696 = vmatpush1.bf16.msra.mxu0 %v1139
    %1697 = vmatprep.subr.bf16.mxu0 %v1132
    %1698 = vmatpush1.bf16.msra.mxu0 %v1131
    %1699 = vmatprep.subr.bf16.mxu0 %v1124
    %1700 = vmatpush1.bf16.msra.mxu0 %v1123
    %1701 = vmatprep.subr.bf16.mxu0 %v1116
    %1702 = vmatpush1.bf16.msra.mxu0 %v1115
    %1703 = vmatprep.subr.bf16.mxu0 %v1108
    %1704 = vmatpush1.bf16.msra.mxu0 %v1107
    %1705 = vmatprep.subr.bf16.mxu0 %v1100
    %1706 = vmatpush1.bf16.msra.mxu0 %v1099
    %1707 = vmatprep.subr.bf16.mxu0 %v1092
    %1708 = vmatpush1.bf16.msra.mxu0 %v1091
    %1709 = vmatprep.subr.bf16.mxu0 %v1212
    %1710 = vmatpush2.bf16.msra.mxu0 %v1211
    %1711 = vmatprep.subr.bf16.mxu0 %v1204
    %1712 = vmatpush2.bf16.msra.mxu0 %v1203
    %1713 = vmatprep.subr.bf16.mxu0 %v1196
    %1714 = vmatpush2.bf16.msra.mxu0 %v1195
    %1715 = vmatprep.subr.bf16.mxu0 %v1188
    %1716 = vmatpush2.bf16.msra.mxu0 %v1187
    %1717 = vmatprep.subr.bf16.mxu0 %v1180
    %1718 = vmatpush2.bf16.msra.mxu0 %v1179
    %1719 = vmatprep.subr.bf16.mxu0 %v1172
    %1720 = vmatpush2.bf16.msra.mxu0 %v1171
    %1721 = vmatprep.subr.bf16.mxu0 %v1164
    %1722 = vmatpush2.bf16.msra.mxu0 %v1163
    %1723 = vmatprep.subr.bf16.mxu0 %v1156
    %1724 = vmatpush2.bf16.msra.mxu0 %v1155
    %1725 = vmatprep.mubr.bf16.mxu0 %v1569
    %1726 = vmatmul.mubr.bf16.gmra.mxu0 %v1568
    %v1727 = vpop.f32.mrf.mxu0
    %v1728 = vadd.f32 0.0, %v1727
    %v1729 = vpop.f32.mrf.mxu0
    %v1730 = vadd.f32 0.0, %v1729
    %v1731 = vpop.f32.mrf.mxu0
    %v1732 = vpop.f32.mrf.mxu0
    %1733 = vdwg.mxu0
    %v1734 = vadd.f32 %v1605, %v515
    %v1735 = vadd.f32 %v1607, %v519
    %v1736 = vadd.f32 %v1646, %v523
    %v1737 = vadd.f32 %v1648, %v527
    %v1738 = vxor.u32 %v1734, 2147483648
    %v1739 = vmul.f32 %v1738, 1.442695
    %v1740 = vpow.pop %v1739
    %v1741 = vadd.f32 %v1740, 1.0
    %v1742 = vrcp.pop %v1741
    %v1743 = vmul.f32 1.0, %v1742
    %v1744 = vxor.u32 %v1735, 2147483648
    %v1745 = vmul.f32 %v1744, 1.442695
    %v1746 = vpow.pop %v1745
    %v1747 = vadd.f32 %v1746, 1.0
    %v1748 = vrcp.pop %v1747
    %v1749 = vmul.f32 1.0, %v1748
    %v1750 = vtanh.pop %v1736
    %v1751 = vxor.u32 %v1737, 2147483648
    %v1752 = vmul.f32 %v1751, 1.442695
    %v1753 = vpow.pop %v1752
    %v1754 = vadd.f32 %v1753, 1.0
    %v1755 = vrcp.pop %v1754
    %v1756 = vmul.f32 1.0, %v1755
    %v1757 = vmul.f32 %v1749, %v1530
    %v1758 = vmul.f32 %v1743, %v1750
    %v1759 = vadd.f32 %v1757, %v1758
    %v1760 = vtanh.pop %v1759
    %v1761 = vmul.f32 %v1756, %v1760
    %s1762 = smul.u32 2, 4
    %s1763 = smul.addr %s1762, 8
    %s1764 = scalar_lea.vmem [#allocation2], %s1763
    %v1765 = vld [vmem:[%s1764] sm:$0xff]
    %v1766 = vld [vmem:[%s1764 + $0x8] sm:$0xff]
    %v1767 = vld [vmem:[%s1764 + $0x10] sm:$0xff]
    %v1768 = vld [vmem:[%s1764 + $0x18] sm:$0xff]
    %v1769 = vadd.f32 %v1765, %v1687
    %v1770 = vadd.f32 %v1766, %v1689
    %v1771 = vadd.f32 %v1767, %v1728
    %v1772 = vadd.f32 %v1768, %v1730
    %v1773 = vxor.u32 %v1769, 2147483648
    %v1774 = vmul.f32 %v1773, 1.442695
    %v1775 = vpow.pop %v1774
    %v1776 = vadd.f32 %v1775, 1.0
    %v1777 = vrcp.pop %v1776
    %v1778 = vmul.f32 1.0, %v1777
    %v1779 = vxor.u32 %v1770, 2147483648
    %v1780 = vmul.f32 %v1779, 1.442695
    %v1781 = vpow.pop %v1780
    %v1782 = vadd.f32 %v1781, 1.0
    %v1783 = vrcp.pop %v1782
    %v1784 = vmul.f32 1.0, %v1783
    %v1785 = vtanh.pop %v1771
    %v1786 = vxor.u32 %v1772, 2147483648
    %v1787 = vmul.f32 %v1786, 1.442695
    %v1788 = vpow.pop %v1787
    %v1789 = vadd.f32 %v1788, 1.0
    %v1790 = vrcp.pop %v1789
    %v1791 = vmul.f32 1.0, %v1790
    %v1792 = vmul.f32 %v1784, %v1565
    %v1793 = vmul.f32 %v1778, %v1785
    %v1794 = vadd.f32 %v1792, %v1793
    %v1795 = vtanh.pop %v1794
    %v1796 = vmul.f32 %v1791, %v1795
    %v1797 = vpack.c.bf16 %v1796, %v1796
    %v1798 = vpack.c.bf16 %v1761, %v1761
    %1799 = vmatprep.subr.bf16.mxu0 %v1142
    %1800 = vmatpush1.bf16.msra.mxu0 %v1141
    %1801 = vmatprep.subr.bf16.mxu0 %v1134
    %1802 = vmatpush1.bf16.msra.mxu0 %v1133
    %1803 = vmatprep.subr.bf16.mxu0 %v1126
    %1804 = vmatpush1.bf16.msra.mxu0 %v1125
    %1805 = vmatprep.subr.bf16.mxu0 %v1118
    %1806 = vmatpush1.bf16.msra.mxu0 %v1117
    %1807 = vmatprep.subr.bf16.mxu0 %v1110
    %1808 = vmatpush1.bf16.msra.mxu0 %v1109
    %1809 = vmatprep.subr.bf16.mxu0 %v1102
    %1810 = vmatpush1.bf16.msra.mxu0 %v1101
    %1811 = vmatprep.subr.bf16.mxu0 %v1094
    %1812 = vmatpush1.bf16.msra.mxu0 %v1093
    %1813 = vmatprep.subr.bf16.mxu0 %v1086
    %1814 = vmatpush1.bf16.msra.mxu0 %v1085
    %1815 = vmatprep.subr.bf16.mxu0 %v1206
    %1816 = vmatpush2.bf16.msra.mxu0 %v1205
    %1817 = vmatprep.subr.bf16.mxu0 %v1198
    %1818 = vmatpush2.bf16.msra.mxu0 %v1197
    %1819 = vmatprep.subr.bf16.mxu0 %v1190
    %1820 = vmatpush2.bf16.msra.mxu0 %v1189
    %1821 = vmatprep.subr.bf16.mxu0 %v1182
    %1822 = vmatpush2.bf16.msra.mxu0 %v1181
    %1823 = vmatprep.subr.bf16.mxu0 %v1174
    %1824 = vmatpush2.bf16.msra.mxu0 %v1173
    %1825 = vmatprep.subr.bf16.mxu0 %v1166
    %1826 = vmatpush2.bf16.msra.mxu0 %v1165
    %1827 = vmatprep.subr.bf16.mxu0 %v1158
    %1828 = vmatpush2.bf16.msra.mxu0 %v1157
    %1829 = vmatprep.subr.bf16.mxu0 %v1150
    %1830 = vmatpush2.bf16.msra.mxu0 %v1149
    %1831 = vmatprep.mubr.bf16.mxu0 %v1798
    %1832 = vmatmul.mubr.bf16.gmra.mxu0 %v1797
    %v1833 = vpop.f32.mrf.mxu0
    %v1834 = vadd.f32 0.0, %v1833
    %v1835 = vpop.f32.mrf.mxu0
    %v1836 = vadd.f32 0.0, %v1835
    %v1837 = vpop.f32.mrf.mxu0
    %v1838 = vpop.f32.mrf.mxu0
    %1839 = vdwg.mxu0
    %1840 = vmatprep.subr.bf16.mxu0 %v1144
    %1841 = vmatpush1.bf16.msra.mxu0 %v1143
    %1842 = vmatprep.subr.bf16.mxu0 %v1136
    %1843 = vmatpush1.bf16.msra.mxu0 %v1135
    %1844 = vmatprep.subr.bf16.mxu0 %v1128
    %1845 = vmatpush1.bf16.msra.mxu0 %v1127
    %1846 = vmatprep.subr.bf16.mxu0 %v1120
    %1847 = vmatpush1.bf16.msra.mxu0 %v1119
    %1848 = vmatprep.subr.bf16.mxu0 %v1112
    %1849 = vmatpush1.bf16.msra.mxu0 %v1111
    %1850 = vmatprep.subr.bf16.mxu0 %v1104
    %1851 = vmatpush1.bf16.msra.mxu0 %v1103
    %1852 = vmatprep.subr.bf16.mxu0 %v1096
    %1853 = vmatpush1.bf16.msra.mxu0 %v1095
    %1854 = vmatprep.subr.bf16.mxu0 %v1088
    %1855 = vmatpush1.bf16.msra.mxu0 %v1087
    %1856 = vmatprep.subr.bf16.mxu0 %v1208
    %1857 = vmatpush2.bf16.msra.mxu0 %v1207
    %1858 = vmatprep.subr.bf16.mxu0 %v1200
    %1859 = vmatpush2.bf16.msra.mxu0 %v1199
    %1860 = vmatprep.subr.bf16.mxu0 %v1192
    %1861 = vmatpush2.bf16.msra.mxu0 %v1191
    %1862 = vmatprep.subr.bf16.mxu0 %v1184
    %1863 = vmatpush2.bf16.msra.mxu0 %v1183
    %1864 = vmatprep.subr.bf16.mxu0 %v1176
    %1865 = vmatpush2.bf16.msra.mxu0 %v1175
    %1866 = vmatprep.subr.bf16.mxu0 %v1168
    %1867 = vmatpush2.bf16.msra.mxu0 %v1167
    %1868 = vmatprep.subr.bf16.mxu0 %v1160
    %1869 = vmatpush2.bf16.msra.mxu0 %v1159
    %1870 = vmatprep.subr.bf16.mxu0 %v1152
    %1871 = vmatpush2.bf16.msra.mxu0 %v1151
    %1872 = vmatprep.mubr.bf16.mxu0 %v1798
    %1873 = vmatmul.mubr.bf16.gmra.mxu0 %v1797
    %v1874 = vpop.f32.mrf.mxu0
    %v1875 = vadd.f32 0.0, %v1874
    %v1876 = vpop.f32.mrf.mxu0
    %v1877 = vadd.f32 0.0, %v1876
    %v1878 = vpop.f32.mrf.mxu0
    %v1879 = vpop.f32.mrf.mxu0
    %1880 = vdwg.mxu0
    %1881 = vmatprep.subr.bf16.mxu0 %v1146
    %1882 = vmatpush1.bf16.msra.mxu0 %v1145
    %1883 = vmatprep.subr.bf16.mxu0 %v1138
    %1884 = vmatpush1.bf16.msra.mxu0 %v1137
    %1885 = vmatprep.subr.bf16.mxu0 %v1130
    %1886 = vmatpush1.bf16.msra.mxu0 %v1129
    %1887 = vmatprep.subr.bf16.mxu0 %v1122
    %1888 = vmatpush1.bf16.msra.mxu0 %v1121
    %1889 = vmatprep.subr.bf16.mxu0 %v1114
    %1890 = vmatpush1.bf16.msra.mxu0 %v1113
    %1891 = vmatprep.subr.bf16.mxu0 %v1106
    %1892 = vmatpush1.bf16.msra.mxu0 %v1105
    %1893 = vmatprep.subr.bf16.mxu0 %v1098
    %1894 = vmatpush1.bf16.msra.mxu0 %v1097
    %1895 = vmatprep.subr.bf16.mxu0 %v1090
    %1896 = vmatpush1.bf16.msra.mxu0 %v1089
    %1897 = vmatprep.subr.bf16.mxu0 %v1210
    %1898 = vmatpush2.bf16.msra.mxu0 %v1209
    %1899 = vmatprep.subr.bf16.mxu0 %v1202
    %1900 = vmatpush2.bf16.msra.mxu0 %v1201
    %1901 = vmatprep.subr.bf16.mxu0 %v1194
    %1902 = vmatpush2.bf16.msra.mxu0 %v1193
    %1903 = vmatprep.subr.bf16.mxu0 %v1186
    %1904 = vmatpush2.bf16.msra.mxu0 %v1185
    %1905 = vmatprep.subr.bf16.mxu0 %v1178
    %1906 = vmatpush2.bf16.msra.mxu0 %v1177
    %1907 = vmatprep.subr.bf16.mxu0 %v1170
    %1908 = vmatpush2.bf16.msra.mxu0 %v1169
    %1909 = vmatprep.subr.bf16.mxu0 %v1162
    %1910 = vmatpush2.bf16.msra.mxu0 %v1161
    %1911 = vmatprep.subr.bf16.mxu0 %v1154
    %1912 = vmatpush2.bf16.msra.mxu0 %v1153
    %1913 = vmatprep.mubr.bf16.mxu0 %v1798
    %1914 = vmatmul.mubr.bf16.gmra.mxu0 %v1797
    %v1915 = vpop.f32.mrf.mxu0
    %v1916 = vadd.f32 0.0, %v1915
    %v1917 = vpop.f32.mrf.mxu0
    %v1918 = vadd.f32 0.0, %v1917
    %v1919 = vpop.f32.mrf.mxu0
    %v1920 = vpop.f32.mrf.mxu0
    %1921 = vdwg.mxu0
    %1922 = vmatprep.subr.bf16.mxu0 %v1148
    %1923 = vmatpush1.bf16.msra.mxu0 %v1147
    %1924 = vmatprep.subr.bf16.mxu0 %v1140
    %1925 = vmatpush1.bf16.msra.mxu0 %v1139
    %1926 = vmatprep.subr.bf16.mxu0 %v1132
    %1927 = vmatpush1.bf16.msra.mxu0 %v1131
    %1928 = vmatprep.subr.bf16.mxu0 %v1124
    %1929 = vmatpush1.bf16.msra.mxu0 %v1123
    %1930 = vmatprep.subr.bf16.mxu0 %v1116
    %1931 = vmatpush1.bf16.msra.mxu0 %v1115
    %1932 = vmatprep.subr.bf16.mxu0 %v1108
    %1933 = vmatpush1.bf16.msra.mxu0 %v1107
    %1934 = vmatprep.subr.bf16.mxu0 %v1100
    %1935 = vmatpush1.bf16.msra.mxu0 %v1099
    %1936 = vmatprep.subr.bf16.mxu0 %v1092
    %1937 = vmatpush1.bf16.msra.mxu0 %v1091
    %1938 = vmatprep.subr.bf16.mxu0 %v1212
    %1939 = vmatpush2.bf16.msra.mxu0 %v1211
    %1940 = vmatprep.subr.bf16.mxu0 %v1204
    %1941 = vmatpush2.bf16.msra.mxu0 %v1203
    %1942 = vmatprep.subr.bf16.mxu0 %v1196
    %1943 = vmatpush2.bf16.msra.mxu0 %v1195
    %1944 = vmatprep.subr.bf16.mxu0 %v1188
    %1945 = vmatpush2.bf16.msra.mxu0 %v1187
    %1946 = vmatprep.subr.bf16.mxu0 %v1180
    %1947 = vmatpush2.bf16.msra.mxu0 %v1179
    %1948 = vmatprep.subr.bf16.mxu0 %v1172
    %1949 = vmatpush2.bf16.msra.mxu0 %v1171
    %1950 = vmatprep.subr.bf16.mxu0 %v1164
    %1951 = vmatpush2.bf16.msra.mxu0 %v1163
    %1952 = vmatprep.subr.bf16.mxu0 %v1156
    %1953 = vmatpush2.bf16.msra.mxu0 %v1155
    %1954 = vmatprep.mubr.bf16.mxu0 %v1798
    %1955 = vmatmul.mubr.bf16.gmra.mxu0 %v1797
    %v1956 = vpop.f32.mrf.mxu0
    %v1957 = vadd.f32 0.0, %v1956
    %v1958 = vpop.f32.mrf.mxu0
    %v1959 = vadd.f32 0.0, %v1958
    %v1960 = vpop.f32.mrf.mxu0
    %v1961 = vpop.f32.mrf.mxu0
    %1962 = vdwg.mxu0
    %v1963 = vadd.f32 %v1834, %v515
    %v1964 = vadd.f32 %v1836, %v519
    %v1965 = vadd.f32 %v1875, %v523
    %v1966 = vadd.f32 %v1877, %v527
    %v1967 = vxor.u32 %v1963, 2147483648
    %v1968 = vmul.f32 %v1967, 1.442695
    %v1969 = vpow.pop %v1968
    %v1970 = vadd.f32 %v1969, 1.0
    %v1971 = vrcp.pop %v1970
    %v1972 = vmul.f32 1.0, %v1971
    %v1973 = vxor.u32 %v1964, 2147483648
    %v1974 = vmul.f32 %v1973, 1.442695
    %v1975 = vpow.pop %v1974
    %v1976 = vadd.f32 %v1975, 1.0
    %v1977 = vrcp.pop %v1976
    %v1978 = vmul.f32 1.0, %v1977
    %v1979 = vtanh.pop %v1965
    %v1980 = vxor.u32 %v1966, 2147483648
    %v1981 = vmul.f32 %v1980, 1.442695
    %v1982 = vpow.pop %v1981
    %v1983 = vadd.f32 %v1982, 1.0
    %v1984 = vrcp.pop %v1983
    %v1985 = vmul.f32 1.0, %v1984
    %v1986 = vmul.f32 %v1978, %v1759
    %v1987 = vmul.f32 %v1972, %v1979
    %v1988 = vadd.f32 %v1986, %v1987
    %v1989 = vtanh.pop %v1988
    %v1990 = vmul.f32 %v1985, %v1989
    %s1991 = smul.u32 3, 4
    %s1992 = smul.addr %s1991, 8
    %s1993 = scalar_lea.vmem [#allocation2], %s1992
    %v1994 = vld [vmem:[%s1993] sm:$0xff]
    %v1995 = vld [vmem:[%s1993 + $0x8] sm:$0xff]
    %v1996 = vld [vmem:[%s1993 + $0x10] sm:$0xff]
    %v1997 = vld [vmem:[%s1993 + $0x18] sm:$0xff]
    %v1998 = vadd.f32 %v1994, %v1916
    %v1999 = vadd.f32 %v1995, %v1918
    %v2000 = vadd.f32 %v1996, %v1957
    %v2001 = vadd.f32 %v1997, %v1959
    %v2002 = vxor.u32 %v1998, 2147483648
    %v2003 = vmul.f32 %v2002, 1.442695
    %v2004 = vpow.pop %v2003
    %v2005 = vadd.f32 %v2004, 1.0
    %v2006 = vrcp.pop %v2005
    %v2007 = vmul.f32 1.0, %v2006
    %v2008 = vxor.u32 %v1999, 2147483648
    %v2009 = vmul.f32 %v2008, 1.442695
    %v2010 = vpow.pop %v2009
    %v2011 = vadd.f32 %v2010, 1.0
    %v2012 = vrcp.pop %v2011
    %v2013 = vmul.f32 1.0, %v2012
    %v2014 = vtanh.pop %v2000
    %v2015 = vxor.u32 %v2001, 2147483648
    %v2016 = vmul.f32 %v2015, 1.442695
    %v2017 = vpow.pop %v2016
    %v2018 = vadd.f32 %v2017, 1.0
    %v2019 = vrcp.pop %v2018
    %v2020 = vmul.f32 1.0, %v2019
    %v2021 = vmul.f32 %v2013, %v1794
    %v2022 = vmul.f32 %v2007, %v2014
    %v2023 = vadd.f32 %v2021, %v2022
    %v2024 = vtanh.pop %v2023
    %v2025 = vmul.f32 %v2020, %v2024
    %v2026 = vpack.c.bf16 %v2025, %v2025
    %v2027 = vpack.c.bf16 %v1990, %v1990
    %2028 = vmatprep.subr.bf16.mxu0 %v1142
    %2029 = vmatpush1.bf16.msra.mxu0 %v1141
    %2030 = vmatprep.subr.bf16.mxu0 %v1134
    %2031 = vmatpush1.bf16.msra.mxu0 %v1133
    %2032 = vmatprep.subr.bf16.mxu0 %v1126
    %2033 = vmatpush1.bf16.msra.mxu0 %v1125
    %2034 = vmatprep.subr.bf16.mxu0 %v1118
    %2035 = vmatpush1.bf16.msra.mxu0 %v1117
    %2036 = vmatprep.subr.bf16.mxu0 %v1110
    %2037 = vmatpush1.bf16.msra.mxu0 %v1109
    %2038 = vmatprep.subr.bf16.mxu0 %v1102
    %2039 = vmatpush1.bf16.msra.mxu0 %v1101
    %2040 = vmatprep.subr.bf16.mxu0 %v1094
    %2041 = vmatpush1.bf16.msra.mxu0 %v1093
    %2042 = vmatprep.subr.bf16.mxu0 %v1086
    %2043 = vmatpush1.bf16.msra.mxu0 %v1085
    %2044 = vmatprep.subr.bf16.mxu0 %v1206
    %2045 = vmatpush2.bf16.msra.mxu0 %v1205
    %2046 = vmatprep.subr.bf16.mxu0 %v1198
    %2047 = vmatpush2.bf16.msra.mxu0 %v1197
    %2048 = vmatprep.subr.bf16.mxu0 %v1190
    %2049 = vmatpush2.bf16.msra.mxu0 %v1189
    %2050 = vmatprep.subr.bf16.mxu0 %v1182
    %2051 = vmatpush2.bf16.msra.mxu0 %v1181
    %2052 = vmatprep.subr.bf16.mxu0 %v1174
    %2053 = vmatpush2.bf16.msra.mxu0 %v1173
    %2054 = vmatprep.subr.bf16.mxu0 %v1166
    %2055 = vmatpush2.bf16.msra.mxu0 %v1165
    %2056 = vmatprep.subr.bf16.mxu0 %v1158
    %2057 = vmatpush2.bf16.msra.mxu0 %v1157
    %2058 = vmatprep.subr.bf16.mxu0 %v1150
    %2059 = vmatpush2.bf16.msra.mxu0 %v1149
    %2060 = vmatprep.mubr.bf16.mxu0 %v2027
    %2061 = vmatmul.mubr.bf16.gmra.mxu0 %v2026
    %v2062 = vpop.f32.mrf.mxu0
    %v2063 = vadd.f32 0.0, %v2062
    %v2064 = vpop.f32.mrf.mxu0
    %v2065 = vadd.f32 0.0, %v2064
    %v2066 = vpop.f32.mrf.mxu0
    %v2067 = vpop.f32.mrf.mxu0
    %2068 = vdwg.mxu0
    %2069 = vmatprep.subr.bf16.mxu0 %v1144
    %2070 = vmatpush1.bf16.msra.mxu0 %v1143
    %2071 = vmatprep.subr.bf16.mxu0 %v1136
    %2072 = vmatpush1.bf16.msra.mxu0 %v1135
    %2073 = vmatprep.subr.bf16.mxu0 %v1128
    %2074 = vmatpush1.bf16.msra.mxu0 %v1127
    %2075 = vmatprep.subr.bf16.mxu0 %v1120
    %2076 = vmatpush1.bf16.msra.mxu0 %v1119
    %2077 = vmatprep.subr.bf16.mxu0 %v1112
    %2078 = vmatpush1.bf16.msra.mxu0 %v1111
    %2079 = vmatprep.subr.bf16.mxu0 %v1104
    %2080 = vmatpush1.bf16.msra.mxu0 %v1103
    %2081 = vmatprep.subr.bf16.mxu0 %v1096
    %2082 = vmatpush1.bf16.msra.mxu0 %v1095
    %2083 = vmatprep.subr.bf16.mxu0 %v1088
    %2084 = vmatpush1.bf16.msra.mxu0 %v1087
    %2085 = vmatprep.subr.bf16.mxu0 %v1208
    %2086 = vmatpush2.bf16.msra.mxu0 %v1207
    %2087 = vmatprep.subr.bf16.mxu0 %v1200
    %2088 = vmatpush2.bf16.msra.mxu0 %v1199
    %2089 = vmatprep.subr.bf16.mxu0 %v1192
    %2090 = vmatpush2.bf16.msra.mxu0 %v1191
    %2091 = vmatprep.subr.bf16.mxu0 %v1184
    %2092 = vmatpush2.bf16.msra.mxu0 %v1183
    %2093 = vmatprep.subr.bf16.mxu0 %v1176
    %2094 = vmatpush2.bf16.msra.mxu0 %v1175
    %2095 = vmatprep.subr.bf16.mxu0 %v1168
    %2096 = vmatpush2.bf16.msra.mxu0 %v1167
    %2097 = vmatprep.subr.bf16.mxu0 %v1160
    %2098 = vmatpush2.bf16.msra.mxu0 %v1159
    %2099 = vmatprep.subr.bf16.mxu0 %v1152
    %2100 = vmatpush2.bf16.msra.mxu0 %v1151
    %2101 = vmatprep.mubr.bf16.mxu0 %v2027
    %2102 = vmatmul.mubr.bf16.gmra.mxu0 %v2026
    %v2103 = vpop.f32.mrf.mxu0
    %v2104 = vadd.f32 0.0, %v2103
    %v2105 = vpop.f32.mrf.mxu0
    %v2106 = vadd.f32 0.0, %v2105
    %v2107 = vpop.f32.mrf.mxu0
    %v2108 = vpop.f32.mrf.mxu0
    %2109 = vdwg.mxu0
    %2110 = vmatprep.subr.bf16.mxu0 %v1146
    %2111 = vmatpush1.bf16.msra.mxu0 %v1145
    %2112 = vmatprep.subr.bf16.mxu0 %v1138
    %2113 = vmatpush1.bf16.msra.mxu0 %v1137
    %2114 = vmatprep.subr.bf16.mxu0 %v1130
    %2115 = vmatpush1.bf16.msra.mxu0 %v1129
    %2116 = vmatprep.subr.bf16.mxu0 %v1122
    %2117 = vmatpush1.bf16.msra.mxu0 %v1121
    %2118 = vmatprep.subr.bf16.mxu0 %v1114
    %2119 = vmatpush1.bf16.msra.mxu0 %v1113
    %2120 = vmatprep.subr.bf16.mxu0 %v1106
    %2121 = vmatpush1.bf16.msra.mxu0 %v1105
    %2122 = vmatprep.subr.bf16.mxu0 %v1098
    %2123 = vmatpush1.bf16.msra.mxu0 %v1097
    %2124 = vmatprep.subr.bf16.mxu0 %v1090
    %2125 = vmatpush1.bf16.msra.mxu0 %v1089
    %2126 = vmatprep.subr.bf16.mxu0 %v1210
    %2127 = vmatpush2.bf16.msra.mxu0 %v1209
    %2128 = vmatprep.subr.bf16.mxu0 %v1202
    %2129 = vmatpush2.bf16.msra.mxu0 %v1201
    %2130 = vmatprep.subr.bf16.mxu0 %v1194
    %2131 = vmatpush2.bf16.msra.mxu0 %v1193
    %2132 = vmatprep.subr.bf16.mxu0 %v1186
    %2133 = vmatpush2.bf16.msra.mxu0 %v1185
    %2134 = vmatprep.subr.bf16.mxu0 %v1178
    %2135 = vmatpush2.bf16.msra.mxu0 %v1177
    %2136 = vmatprep.subr.bf16.mxu0 %v1170
    %2137 = vmatpush2.bf16.msra.mxu0 %v1169
    %2138 = vmatprep.subr.bf16.mxu0 %v1162
    %2139 = vmatpush2.bf16.msra.mxu0 %v1161
    %2140 = vmatprep.subr.bf16.mxu0 %v1154
    %2141 = vmatpush2.bf16.msra.mxu0 %v1153
    %2142 = vmatprep.mubr.bf16.mxu0 %v2027
    %2143 = vmatmul.mubr.bf16.gmra.mxu0 %v2026
    %v2144 = vpop.f32.mrf.mxu0
    %v2145 = vadd.f32 0.0, %v2144
    %v2146 = vpop.f32.mrf.mxu0
    %v2147 = vadd.f32 0.0, %v2146
    %v2148 = vpop.f32.mrf.mxu0
    %v2149 = vpop.f32.mrf.mxu0
    %2150 = vdwg.mxu0
    %2151 = vmatprep.subr.bf16.mxu0 %v1148
    %2152 = vmatpush1.bf16.msra.mxu0 %v1147
    %2153 = vmatprep.subr.bf16.mxu0 %v1140
    %2154 = vmatpush1.bf16.msra.mxu0 %v1139
    %2155 = vmatprep.subr.bf16.mxu0 %v1132
    %2156 = vmatpush1.bf16.msra.mxu0 %v1131
    %2157 = vmatprep.subr.bf16.mxu0 %v1124
    %2158 = vmatpush1.bf16.msra.mxu0 %v1123
    %2159 = vmatprep.subr.bf16.mxu0 %v1116
    %2160 = vmatpush1.bf16.msra.mxu0 %v1115
    %2161 = vmatprep.subr.bf16.mxu0 %v1108
    %2162 = vmatpush1.bf16.msra.mxu0 %v1107
    %2163 = vmatprep.subr.bf16.mxu0 %v1100
    %2164 = vmatpush1.bf16.msra.mxu0 %v1099
    %2165 = vmatprep.subr.bf16.mxu0 %v1092
    %2166 = vmatpush1.bf16.msra.mxu0 %v1091
    %2167 = vmatprep.subr.bf16.mxu0 %v1212
    %2168 = vmatpush2.bf16.msra.mxu0 %v1211
    %2169 = vmatprep.subr.bf16.mxu0 %v1204
    %2170 = vmatpush2.bf16.msra.mxu0 %v1203
    %2171 = vmatprep.subr.bf16.mxu0 %v1196
    %2172 = vmatpush2.bf16.msra.mxu0 %v1195
    %2173 = vmatprep.subr.bf16.mxu0 %v1188
    %2174 = vmatpush2.bf16.msra.mxu0 %v1187
    %2175 = vmatprep.subr.bf16.mxu0 %v1180
    %2176 = vmatpush2.bf16.msra.mxu0 %v1179
    %2177 = vmatprep.subr.bf16.mxu0 %v1172
    %2178 = vmatpush2.bf16.msra.mxu0 %v1171
    %2179 = vmatprep.subr.bf16.mxu0 %v1164
    %2180 = vmatpush2.bf16.msra.mxu0 %v1163
    %2181 = vmatprep.subr.bf16.mxu0 %v1156
    %2182 = vmatpush2.bf16.msra.mxu0 %v1155
    %2183 = vmatprep.mubr.bf16.mxu0 %v2027
    %2184 = vmatmul.mubr.bf16.gmra.mxu0 %v2026
    %v2185 = vpop.f32.mrf.mxu0
    %v2186 = vadd.f32 0.0, %v2185
    %v2187 = vpop.f32.mrf.mxu0
    %v2188 = vadd.f32 0.0, %v2187
    %v2189 = vpop.f32.mrf.mxu0
    %v2190 = vpop.f32.mrf.mxu0
    %2191 = vdwg.mxu0
    %v2192 = vadd.f32 %v2063, %v515
    %v2193 = vadd.f32 %v2065, %v519
    %v2194 = vadd.f32 %v2104, %v523
    %v2195 = vadd.f32 %v2106, %v527
    %v2196 = vxor.u32 %v2192, 2147483648
    %v2197 = vmul.f32 %v2196, 1.442695
    %v2198 = vpow.pop %v2197
    %v2199 = vadd.f32 %v2198, 1.0
    %v2200 = vrcp.pop %v2199
    %v2201 = vmul.f32 1.0, %v2200
    %v2202 = vxor.u32 %v2193, 2147483648
    %v2203 = vmul.f32 %v2202, 1.442695
    %v2204 = vpow.pop %v2203
    %v2205 = vadd.f32 %v2204, 1.0
    %v2206 = vrcp.pop %v2205
    %v2207 = vmul.f32 1.0, %v2206
    %v2208 = vtanh.pop %v2194
    %v2209 = vxor.u32 %v2195, 2147483648
    %v2210 = vmul.f32 %v2209, 1.442695
    %v2211 = vpow.pop %v2210
    %v2212 = vadd.f32 %v2211, 1.0
    %v2213 = vrcp.pop %v2212
    %v2214 = vmul.f32 1.0, %v2213
    %v2215 = vmul.f32 %v2207, %v1988
    %v2216 = vmul.f32 %v2201, %v2208
    %v2217 = vadd.f32 %v2215, %v2216
    %v2218 = vtanh.pop %v2217
    %v2219 = vmul.f32 %v2214, %v2218
    %s2220 = smul.u32 4, 4
    %s2221 = smul.addr %s2220, 8
    %s2222 = scalar_lea.vmem [#allocation2], %s2221
    %v2223 = vld [vmem:[%s2222] sm:$0xff]
    %v2224 = vld [vmem:[%s2222 + $0x8] sm:$0xff]
    %v2225 = vld [vmem:[%s2222 + $0x10] sm:$0xff]
    %v2226 = vld [vmem:[%s2222 + $0x18] sm:$0xff]
    %v2227 = vadd.f32 %v2223, %v2145
    %v2228 = vadd.f32 %v2224, %v2147
    %v2229 = vadd.f32 %v2225, %v2186
    %v2230 = vadd.f32 %v2226, %v2188
    %v2231 = vxor.u32 %v2227, 2147483648
    %v2232 = vmul.f32 %v2231, 1.442695
    %v2233 = vpow.pop %v2232
    %v2234 = vadd.f32 %v2233, 1.0
    %v2235 = vrcp.pop %v2234
    %v2236 = vmul.f32 1.0, %v2235
    %v2237 = vxor.u32 %v2228, 2147483648
    %v2238 = vmul.f32 %v2237, 1.442695
    %v2239 = vpow.pop %v2238
    %v2240 = vadd.f32 %v2239, 1.0
    %v2241 = vrcp.pop %v2240
    %v2242 = vmul.f32 1.0, %v2241
    %v2243 = vtanh.pop %v2229
    %v2244 = vxor.u32 %v2230, 2147483648
    %v2245 = vmul.f32 %v2244, 1.442695
    %v2246 = vpow.pop %v2245
    %v2247 = vadd.f32 %v2246, 1.0
    %v2248 = vrcp.pop %v2247
    %v2249 = vmul.f32 1.0, %v2248
    %v2250 = vmul.f32 %v2242, %v2023
    %v2251 = vmul.f32 %v2236, %v2243
    %v2252 = vadd.f32 %v2250, %v2251
    %v2253 = vtanh.pop %v2252
    %v2254 = vmul.f32 %v2249, %v2253
    %v2255 = vpack.c.bf16 %v2254, %v2254
    %v2256 = vpack.c.bf16 %v2219, %v2219
    %2257 = vmatprep.subr.bf16.mxu0 %v1142
    %2258 = vmatpush1.bf16.msra.mxu0 %v1141
    %2259 = vmatprep.subr.bf16.mxu0 %v1134
    %2260 = vmatpush1.bf16.msra.mxu0 %v1133
    %2261 = vmatprep.subr.bf16.mxu0 %v1126
    %2262 = vmatpush1.bf16.msra.mxu0 %v1125
    %2263 = vmatprep.subr.bf16.mxu0 %v1118
    %2264 = vmatpush1.bf16.msra.mxu0 %v1117
    %2265 = vmatprep.subr.bf16.mxu0 %v1110
    %2266 = vmatpush1.bf16.msra.mxu0 %v1109
    %2267 = vmatprep.subr.bf16.mxu0 %v1102
    %2268 = vmatpush1.bf16.msra.mxu0 %v1101
    %2269 = vmatprep.subr.bf16.mxu0 %v1094
    %2270 = vmatpush1.bf16.msra.mxu0 %v1093
    %2271 = vmatprep.subr.bf16.mxu0 %v1086
    %2272 = vmatpush1.bf16.msra.mxu0 %v1085
    %2273 = vmatprep.subr.bf16.mxu0 %v1206
    %2274 = vmatpush2.bf16.msra.mxu0 %v1205
    %2275 = vmatprep.subr.bf16.mxu0 %v1198
    %2276 = vmatpush2.bf16.msra.mxu0 %v1197
    %2277 = vmatprep.subr.bf16.mxu0 %v1190
    %2278 = vmatpush2.bf16.msra.mxu0 %v1189
    %2279 = vmatprep.subr.bf16.mxu0 %v1182
    %2280 = vmatpush2.bf16.msra.mxu0 %v1181
    %2281 = vmatprep.subr.bf16.mxu0 %v1174
    %2282 = vmatpush2.bf16.msra.mxu0 %v1173
    %2283 = vmatprep.subr.bf16.mxu0 %v1166
    %2284 = vmatpush2.bf16.msra.mxu0 %v1165
    %2285 = vmatprep.subr.bf16.mxu0 %v1158
    %2286 = vmatpush2.bf16.msra.mxu0 %v1157
    %2287 = vmatprep.subr.bf16.mxu0 %v1150
    %2288 = vmatpush2.bf16.msra.mxu0 %v1149
    %2289 = vmatprep.mubr.bf16.mxu0 %v2256
    %2290 = vmatmul.mubr.bf16.gmra.mxu0 %v2255
    %v2291 = vpop.f32.mrf.mxu0
    %v2292 = vadd.f32 0.0, %v2291
    %v2293 = vpop.f32.mrf.mxu0
    %v2294 = vadd.f32 0.0, %v2293
    %v2295 = vpop.f32.mrf.mxu0
    %v2296 = vpop.f32.mrf.mxu0
    %2297 = vdwg.mxu0
    %2298 = vmatprep.subr.bf16.mxu0 %v1144
    %2299 = vmatpush1.bf16.msra.mxu0 %v1143
    %2300 = vmatprep.subr.bf16.mxu0 %v1136
    %2301 = vmatpush1.bf16.msra.mxu0 %v1135
    %2302 = vmatprep.subr.bf16.mxu0 %v1128
    %2303 = vmatpush1.bf16.msra.mxu0 %v1127
    %2304 = vmatprep.subr.bf16.mxu0 %v1120
    %2305 = vmatpush1.bf16.msra.mxu0 %v1119
    %2306 = vmatprep.subr.bf16.mxu0 %v1112
    %2307 = vmatpush1.bf16.msra.mxu0 %v1111
    %2308 = vmatprep.subr.bf16.mxu0 %v1104
    %2309 = vmatpush1.bf16.msra.mxu0 %v1103
    %2310 = vmatprep.subr.bf16.mxu0 %v1096
    %2311 = vmatpush1.bf16.msra.mxu0 %v1095
    %2312 = vmatprep.subr.bf16.mxu0 %v1088
    %2313 = vmatpush1.bf16.msra.mxu0 %v1087
    %2314 = vmatprep.subr.bf16.mxu0 %v1208
    %2315 = vmatpush2.bf16.msra.mxu0 %v1207
    %2316 = vmatprep.subr.bf16.mxu0 %v1200
    %2317 = vmatpush2.bf16.msra.mxu0 %v1199
    %2318 = vmatprep.subr.bf16.mxu0 %v1192
    %2319 = vmatpush2.bf16.msra.mxu0 %v1191
    %2320 = vmatprep.subr.bf16.mxu0 %v1184
    %2321 = vmatpush2.bf16.msra.mxu0 %v1183
    %2322 = vmatprep.subr.bf16.mxu0 %v1176
    %2323 = vmatpush2.bf16.msra.mxu0 %v1175
    %2324 = vmatprep.subr.bf16.mxu0 %v1168
    %2325 = vmatpush2.bf16.msra.mxu0 %v1167
    %2326 = vmatprep.subr.bf16.mxu0 %v1160
    %2327 = vmatpush2.bf16.msra.mxu0 %v1159
    %2328 = vmatprep.subr.bf16.mxu0 %v1152
    %2329 = vmatpush2.bf16.msra.mxu0 %v1151
    %2330 = vmatprep.mubr.bf16.mxu0 %v2256
    %2331 = vmatmul.mubr.bf16.gmra.mxu0 %v2255
    %v2332 = vpop.f32.mrf.mxu0
    %v2333 = vadd.f32 0.0, %v2332
    %v2334 = vpop.f32.mrf.mxu0
    %v2335 = vadd.f32 0.0, %v2334
    %v2336 = vpop.f32.mrf.mxu0
    %v2337 = vpop.f32.mrf.mxu0
    %2338 = vdwg.mxu0
    %2339 = vmatprep.subr.bf16.mxu0 %v1146
    %2340 = vmatpush1.bf16.msra.mxu0 %v1145
    %2341 = vmatprep.subr.bf16.mxu0 %v1138
    %2342 = vmatpush1.bf16.msra.mxu0 %v1137
    %2343 = vmatprep.subr.bf16.mxu0 %v1130
    %2344 = vmatpush1.bf16.msra.mxu0 %v1129
    %2345 = vmatprep.subr.bf16.mxu0 %v1122
    %2346 = vmatpush1.bf16.msra.mxu0 %v1121
    %2347 = vmatprep.subr.bf16.mxu0 %v1114
    %2348 = vmatpush1.bf16.msra.mxu0 %v1113
    %2349 = vmatprep.subr.bf16.mxu0 %v1106
    %2350 = vmatpush1.bf16.msra.mxu0 %v1105
    %2351 = vmatprep.subr.bf16.mxu0 %v1098
    %2352 = vmatpush1.bf16.msra.mxu0 %v1097
    %2353 = vmatprep.subr.bf16.mxu0 %v1090
    %2354 = vmatpush1.bf16.msra.mxu0 %v1089
    %2355 = vmatprep.subr.bf16.mxu0 %v1210
    %2356 = vmatpush2.bf16.msra.mxu0 %v1209
    %2357 = vmatprep.subr.bf16.mxu0 %v1202
    %2358 = vmatpush2.bf16.msra.mxu0 %v1201
    %2359 = vmatprep.subr.bf16.mxu0 %v1194
    %2360 = vmatpush2.bf16.msra.mxu0 %v1193
    %2361 = vmatprep.subr.bf16.mxu0 %v1186
    %2362 = vmatpush2.bf16.msra.mxu0 %v1185
    %2363 = vmatprep.subr.bf16.mxu0 %v1178
    %2364 = vmatpush2.bf16.msra.mxu0 %v1177
    %2365 = vmatprep.subr.bf16.mxu0 %v1170
    %2366 = vmatpush2.bf16.msra.mxu0 %v1169
    %2367 = vmatprep.subr.bf16.mxu0 %v1162
    %2368 = vmatpush2.bf16.msra.mxu0 %v1161
    %2369 = vmatprep.subr.bf16.mxu0 %v1154
    %2370 = vmatpush2.bf16.msra.mxu0 %v1153
    %2371 = vmatprep.mubr.bf16.mxu0 %v2256
    %2372 = vmatmul.mubr.bf16.gmra.mxu0 %v2255
    %v2373 = vpop.f32.mrf.mxu0
    %v2374 = vadd.f32 0.0, %v2373
    %v2375 = vpop.f32.mrf.mxu0
    %v2376 = vadd.f32 0.0, %v2375
    %v2377 = vpop.f32.mrf.mxu0
    %v2378 = vpop.f32.mrf.mxu0
    %2379 = vdwg.mxu0
    %2380 = vmatprep.subr.bf16.mxu0 %v1148
    %2381 = vmatpush1.bf16.msra.mxu0 %v1147
    %2382 = vmatprep.subr.bf16.mxu0 %v1140
    %2383 = vmatpush1.bf16.msra.mxu0 %v1139
    %2384 = vmatprep.subr.bf16.mxu0 %v1132
    %2385 = vmatpush1.bf16.msra.mxu0 %v1131
    %2386 = vmatprep.subr.bf16.mxu0 %v1124
    %2387 = vmatpush1.bf16.msra.mxu0 %v1123
    %2388 = vmatprep.subr.bf16.mxu0 %v1116
    %2389 = vmatpush1.bf16.msra.mxu0 %v1115
    %2390 = vmatprep.subr.bf16.mxu0 %v1108
    %2391 = vmatpush1.bf16.msra.mxu0 %v1107
    %2392 = vmatprep.subr.bf16.mxu0 %v1100
    %2393 = vmatpush1.bf16.msra.mxu0 %v1099
    %2394 = vmatprep.subr.bf16.mxu0 %v1092
    %2395 = vmatpush1.bf16.msra.mxu0 %v1091
    %2396 = vmatprep.subr.bf16.mxu0 %v1212
    %2397 = vmatpush2.bf16.msra.mxu0 %v1211
    %2398 = vmatprep.subr.bf16.mxu0 %v1204
    %2399 = vmatpush2.bf16.msra.mxu0 %v1203
    %2400 = vmatprep.subr.bf16.mxu0 %v1196
    %2401 = vmatpush2.bf16.msra.mxu0 %v1195
    %2402 = vmatprep.subr.bf16.mxu0 %v1188
    %2403 = vmatpush2.bf16.msra.mxu0 %v1187
    %2404 = vmatprep.subr.bf16.mxu0 %v1180
    %2405 = vmatpush2.bf16.msra.mxu0 %v1179
    %2406 = vmatprep.subr.bf16.mxu0 %v1172
    %2407 = vmatpush2.bf16.msra.mxu0 %v1171
    %2408 = vmatprep.subr.bf16.mxu0 %v1164
    %2409 = vmatpush2.bf16.msra.mxu0 %v1163
    %2410 = vmatprep.subr.bf16.mxu0 %v1156
    %2411 = vmatpush2.bf16.msra.mxu0 %v1155
    %2412 = vmatprep.mubr.bf16.mxu0 %v2256
    %2413 = vmatmul.mubr.bf16.gmra.mxu0 %v2255
    %v2414 = vpop.f32.mrf.mxu0
    %v2415 = vadd.f32 0.0, %v2414
    %v2416 = vpop.f32.mrf.mxu0
    %v2417 = vadd.f32 0.0, %v2416
    %v2418 = vpop.f32.mrf.mxu0
    %v2419 = vpop.f32.mrf.mxu0
    %2420 = vdwg.mxu0
    %v2421 = vadd.f32 %v2292, %v515
    %v2422 = vadd.f32 %v2294, %v519
    %v2423 = vadd.f32 %v2333, %v523
    %v2424 = vadd.f32 %v2335, %v527
    %v2425 = vxor.u32 %v2421, 2147483648
    %v2426 = vmul.f32 %v2425, 1.442695
    %v2427 = vpow.pop %v2426
    %v2428 = vadd.f32 %v2427, 1.0
    %v2429 = vrcp.pop %v2428
    %v2430 = vmul.f32 1.0, %v2429
    %v2431 = vxor.u32 %v2422, 2147483648
    %v2432 = vmul.f32 %v2431, 1.442695
    %v2433 = vpow.pop %v2432
    %v2434 = vadd.f32 %v2433, 1.0
    %v2435 = vrcp.pop %v2434
    %v2436 = vmul.f32 1.0, %v2435
    %v2437 = vtanh.pop %v2423
    %v2438 = vxor.u32 %v2424, 2147483648
    %v2439 = vmul.f32 %v2438, 1.442695
    %v2440 = vpow.pop %v2439
    %v2441 = vadd.f32 %v2440, 1.0
    %v2442 = vrcp.pop %v2441
    %v2443 = vmul.f32 1.0, %v2442
    %v2444 = vmul.f32 %v2436, %v2217
    %v2445 = vmul.f32 %v2430, %v2437
    %v2446 = vadd.f32 %v2444, %v2445
    %v2447 = vtanh.pop %v2446
    %v2448 = vmul.f32 %v2443, %v2447
    %s2449 = smul.u32 5, 4
    %s2450 = smul.addr %s2449, 8
    %s2451 = scalar_lea.vmem [#allocation2], %s2450
    %v2452 = vld [vmem:[%s2451] sm:$0xff]
    %v2453 = vld [vmem:[%s2451 + $0x8] sm:$0xff]
    %v2454 = vld [vmem:[%s2451 + $0x10] sm:$0xff]
    %v2455 = vld [vmem:[%s2451 + $0x18] sm:$0xff]
    %v2456 = vadd.f32 %v2452, %v2374
    %v2457 = vadd.f32 %v2453, %v2376
    %v2458 = vadd.f32 %v2454, %v2415
    %v2459 = vadd.f32 %v2455, %v2417
    %v2460 = vxor.u32 %v2456, 2147483648
    %v2461 = vmul.f32 %v2460, 1.442695
    %v2462 = vpow.pop %v2461
    %v2463 = vadd.f32 %v2462, 1.0
    %v2464 = vrcp.pop %v2463
    %v2465 = vmul.f32 1.0, %v2464
    %v2466 = vxor.u32 %v2457, 2147483648
    %v2467 = vmul.f32 %v2466, 1.442695
    %v2468 = vpow.pop %v2467
    %v2469 = vadd.f32 %v2468, 1.0
    %v2470 = vrcp.pop %v2469
    %v2471 = vmul.f32 1.0, %v2470
    %v2472 = vtanh.pop %v2458
    %v2473 = vxor.u32 %v2459, 2147483648
    %v2474 = vmul.f32 %v2473, 1.442695
    %v2475 = vpow.pop %v2474
    %v2476 = vadd.f32 %v2475, 1.0
    %v2477 = vrcp.pop %v2476
    %v2478 = vmul.f32 1.0, %v2477
    %v2479 = vmul.f32 %v2471, %v2252
    %v2480 = vmul.f32 %v2465, %v2472
    %v2481 = vadd.f32 %v2479, %v2480
    %v2482 = vtanh.pop %v2481
    %v2483 = vmul.f32 %v2478, %v2482
    %v2484 = vpack.c.bf16 %v2483, %v2483
    %v2485 = vpack.c.bf16 %v2448, %v2448
    %2486 = vmatprep.subr.bf16.mxu0 %v1142
    %2487 = vmatpush1.bf16.msra.mxu0 %v1141
    %2488 = vmatprep.subr.bf16.mxu0 %v1134
    %2489 = vmatpush1.bf16.msra.mxu0 %v1133
    %2490 = vmatprep.subr.bf16.mxu0 %v1126
    %2491 = vmatpush1.bf16.msra.mxu0 %v1125
    %2492 = vmatprep.subr.bf16.mxu0 %v1118
    %2493 = vmatpush1.bf16.msra.mxu0 %v1117
    %2494 = vmatprep.subr.bf16.mxu0 %v1110
    %2495 = vmatpush1.bf16.msra.mxu0 %v1109
    %2496 = vmatprep.subr.bf16.mxu0 %v1102
    %2497 = vmatpush1.bf16.msra.mxu0 %v1101
    %2498 = vmatprep.subr.bf16.mxu0 %v1094
    %2499 = vmatpush1.bf16.msra.mxu0 %v1093
    %2500 = vmatprep.subr.bf16.mxu0 %v1086
    %2501 = vmatpush1.bf16.msra.mxu0 %v1085
    %2502 = vmatprep.subr.bf16.mxu0 %v1206
    %2503 = vmatpush2.bf16.msra.mxu0 %v1205
    %2504 = vmatprep.subr.bf16.mxu0 %v1198
    %2505 = vmatpush2.bf16.msra.mxu0 %v1197
    %2506 = vmatprep.subr.bf16.mxu0 %v1190
    %2507 = vmatpush2.bf16.msra.mxu0 %v1189
    %2508 = vmatprep.subr.bf16.mxu0 %v1182
    %2509 = vmatpush2.bf16.msra.mxu0 %v1181
    %2510 = vmatprep.subr.bf16.mxu0 %v1174
    %2511 = vmatpush2.bf16.msra.mxu0 %v1173
    %2512 = vmatprep.subr.bf16.mxu0 %v1166
    %2513 = vmatpush2.bf16.msra.mxu0 %v1165
    %2514 = vmatprep.subr.bf16.mxu0 %v1158
    %2515 = vmatpush2.bf16.msra.mxu0 %v1157
    %2516 = vmatprep.subr.bf16.mxu0 %v1150
    %2517 = vmatpush2.bf16.msra.mxu0 %v1149
    %2518 = vmatprep.mubr.bf16.mxu0 %v2485
    %2519 = vmatmul.mubr.bf16.gmra.mxu0 %v2484
    %v2520 = vpop.f32.mrf.mxu0
    %v2521 = vadd.f32 0.0, %v2520
    %v2522 = vpop.f32.mrf.mxu0
    %v2523 = vadd.f32 0.0, %v2522
    %v2524 = vpop.f32.mrf.mxu0
    %v2525 = vpop.f32.mrf.mxu0
    %2526 = vdwg.mxu0
    %2527 = vmatprep.subr.bf16.mxu0 %v1144
    %2528 = vmatpush1.bf16.msra.mxu0 %v1143
    %2529 = vmatprep.subr.bf16.mxu0 %v1136
    %2530 = vmatpush1.bf16.msra.mxu0 %v1135
    %2531 = vmatprep.subr.bf16.mxu0 %v1128
    %2532 = vmatpush1.bf16.msra.mxu0 %v1127
    %2533 = vmatprep.subr.bf16.mxu0 %v1120
    %2534 = vmatpush1.bf16.msra.mxu0 %v1119
    %2535 = vmatprep.subr.bf16.mxu0 %v1112
    %2536 = vmatpush1.bf16.msra.mxu0 %v1111
    %2537 = vmatprep.subr.bf16.mxu0 %v1104
    %2538 = vmatpush1.bf16.msra.mxu0 %v1103
    %2539 = vmatprep.subr.bf16.mxu0 %v1096
    %2540 = vmatpush1.bf16.msra.mxu0 %v1095
    %2541 = vmatprep.subr.bf16.mxu0 %v1088
    %2542 = vmatpush1.bf16.msra.mxu0 %v1087
    %2543 = vmatprep.subr.bf16.mxu0 %v1208
    %2544 = vmatpush2.bf16.msra.mxu0 %v1207
    %2545 = vmatprep.subr.bf16.mxu0 %v1200
    %2546 = vmatpush2.bf16.msra.mxu0 %v1199
    %2547 = vmatprep.subr.bf16.mxu0 %v1192
    %2548 = vmatpush2.bf16.msra.mxu0 %v1191
    %2549 = vmatprep.subr.bf16.mxu0 %v1184
    %2550 = vmatpush2.bf16.msra.mxu0 %v1183
    %2551 = vmatprep.subr.bf16.mxu0 %v1176
    %2552 = vmatpush2.bf16.msra.mxu0 %v1175
    %2553 = vmatprep.subr.bf16.mxu0 %v1168
    %2554 = vmatpush2.bf16.msra.mxu0 %v1167
    %2555 = vmatprep.subr.bf16.mxu0 %v1160
    %2556 = vmatpush2.bf16.msra.mxu0 %v1159
    %2557 = vmatprep.subr.bf16.mxu0 %v1152
    %2558 = vmatpush2.bf16.msra.mxu0 %v1151
    %2559 = vmatprep.mubr.bf16.mxu0 %v2485
    %2560 = vmatmul.mubr.bf16.gmra.mxu0 %v2484
    %v2561 = vpop.f32.mrf.mxu0
    %v2562 = vadd.f32 0.0, %v2561
    %v2563 = vpop.f32.mrf.mxu0
    %v2564 = vadd.f32 0.0, %v2563
    %v2565 = vpop.f32.mrf.mxu0
    %v2566 = vpop.f32.mrf.mxu0
    %2567 = vdwg.mxu0
    %2568 = vmatprep.subr.bf16.mxu0 %v1146
    %2569 = vmatpush1.bf16.msra.mxu0 %v1145
    %2570 = vmatprep.subr.bf16.mxu0 %v1138
    %2571 = vmatpush1.bf16.msra.mxu0 %v1137
    %2572 = vmatprep.subr.bf16.mxu0 %v1130
    %2573 = vmatpush1.bf16.msra.mxu0 %v1129
    %2574 = vmatprep.subr.bf16.mxu0 %v1122
    %2575 = vmatpush1.bf16.msra.mxu0 %v1121
    %2576 = vmatprep.subr.bf16.mxu0 %v1114
    %2577 = vmatpush1.bf16.msra.mxu0 %v1113
    %2578 = vmatprep.subr.bf16.mxu0 %v1106
    %2579 = vmatpush1.bf16.msra.mxu0 %v1105
    %2580 = vmatprep.subr.bf16.mxu0 %v1098
    %2581 = vmatpush1.bf16.msra.mxu0 %v1097
    %2582 = vmatprep.subr.bf16.mxu0 %v1090
    %2583 = vmatpush1.bf16.msra.mxu0 %v1089
    %2584 = vmatprep.subr.bf16.mxu0 %v1210
    %2585 = vmatpush2.bf16.msra.mxu0 %v1209
    %2586 = vmatprep.subr.bf16.mxu0 %v1202
    %2587 = vmatpush2.bf16.msra.mxu0 %v1201
    %2588 = vmatprep.subr.bf16.mxu0 %v1194
    %2589 = vmatpush2.bf16.msra.mxu0 %v1193
    %2590 = vmatprep.subr.bf16.mxu0 %v1186
    %2591 = vmatpush2.bf16.msra.mxu0 %v1185
    %2592 = vmatprep.subr.bf16.mxu0 %v1178
    %2593 = vmatpush2.bf16.msra.mxu0 %v1177
    %2594 = vmatprep.subr.bf16.mxu0 %v1170
    %2595 = vmatpush2.bf16.msra.mxu0 %v1169
    %2596 = vmatprep.subr.bf16.mxu0 %v1162
    %2597 = vmatpush2.bf16.msra.mxu0 %v1161
    %2598 = vmatprep.subr.bf16.mxu0 %v1154
    %2599 = vmatpush2.bf16.msra.mxu0 %v1153
    %2600 = vmatprep.mubr.bf16.mxu0 %v2485
    %2601 = vmatmul.mubr.bf16.gmra.mxu0 %v2484
    %v2602 = vpop.f32.mrf.mxu0
    %v2603 = vadd.f32 0.0, %v2602
    %v2604 = vpop.f32.mrf.mxu0
    %v2605 = vadd.f32 0.0, %v2604
    %v2606 = vpop.f32.mrf.mxu0
    %v2607 = vpop.f32.mrf.mxu0
    %2608 = vdwg.mxu0
    %2609 = vmatprep.subr.bf16.mxu0 %v1148
    %2610 = vmatpush1.bf16.msra.mxu0 %v1147
    %2611 = vmatprep.subr.bf16.mxu0 %v1140
    %2612 = vmatpush1.bf16.msra.mxu0 %v1139
    %2613 = vmatprep.subr.bf16.mxu0 %v1132
    %2614 = vmatpush1.bf16.msra.mxu0 %v1131
    %2615 = vmatprep.subr.bf16.mxu0 %v1124
    %2616 = vmatpush1.bf16.msra.mxu0 %v1123
    %2617 = vmatprep.subr.bf16.mxu0 %v1116
    %2618 = vmatpush1.bf16.msra.mxu0 %v1115
    %2619 = vmatprep.subr.bf16.mxu0 %v1108
    %2620 = vmatpush1.bf16.msra.mxu0 %v1107
    %2621 = vmatprep.subr.bf16.mxu0 %v1100
    %2622 = vmatpush1.bf16.msra.mxu0 %v1099
    %2623 = vmatprep.subr.bf16.mxu0 %v1092
    %2624 = vmatpush1.bf16.msra.mxu0 %v1091
    %2625 = vmatprep.subr.bf16.mxu0 %v1212
    %2626 = vmatpush2.bf16.msra.mxu0 %v1211
    %2627 = vmatprep.subr.bf16.mxu0 %v1204
    %2628 = vmatpush2.bf16.msra.mxu0 %v1203
    %2629 = vmatprep.subr.bf16.mxu0 %v1196
    %2630 = vmatpush2.bf16.msra.mxu0 %v1195
    %2631 = vmatprep.subr.bf16.mxu0 %v1188
    %2632 = vmatpush2.bf16.msra.mxu0 %v1187
    %2633 = vmatprep.subr.bf16.mxu0 %v1180
    %2634 = vmatpush2.bf16.msra.mxu0 %v1179
    %2635 = vmatprep.subr.bf16.mxu0 %v1172
    %2636 = vmatpush2.bf16.msra.mxu0 %v1171
    %2637 = vmatprep.subr.bf16.mxu0 %v1164
    %2638 = vmatpush2.bf16.msra.mxu0 %v1163
    %2639 = vmatprep.subr.bf16.mxu0 %v1156
    %2640 = vmatpush2.bf16.msra.mxu0 %v1155
    %2641 = vmatprep.mubr.bf16.mxu0 %v2485
    %2642 = vmatmul.mubr.bf16.gmra.mxu0 %v2484
    %v2643 = vpop.f32.mrf.mxu0
    %v2644 = vadd.f32 0.0, %v2643
    %v2645 = vpop.f32.mrf.mxu0
    %v2646 = vadd.f32 0.0, %v2645
    %v2647 = vpop.f32.mrf.mxu0
    %v2648 = vpop.f32.mrf.mxu0
    %2649 = vdwg.mxu0
    %v2650 = vadd.f32 %v2521, %v515
    %v2651 = vadd.f32 %v2523, %v519
    %v2652 = vadd.f32 %v2562, %v523
    %v2653 = vadd.f32 %v2564, %v527
    %v2654 = vxor.u32 %v2650, 2147483648
    %v2655 = vmul.f32 %v2654, 1.442695
    %v2656 = vpow.pop %v2655
    %v2657 = vadd.f32 %v2656, 1.0
    %v2658 = vrcp.pop %v2657
    %v2659 = vmul.f32 1.0, %v2658
    %v2660 = vxor.u32 %v2651, 2147483648
    %v2661 = vmul.f32 %v2660, 1.442695
    %v2662 = vpow.pop %v2661
    %v2663 = vadd.f32 %v2662, 1.0
    %v2664 = vrcp.pop %v2663
    %v2665 = vmul.f32 1.0, %v2664
    %v2666 = vtanh.pop %v2652
    %v2667 = vxor.u32 %v2653, 2147483648
    %v2668 = vmul.f32 %v2667, 1.442695
    %v2669 = vpow.pop %v2668
    %v2670 = vadd.f32 %v2669, 1.0
    %v2671 = vrcp.pop %v2670
    %v2672 = vmul.f32 1.0, %v2671
    %v2673 = vmul.f32 %v2665, %v2446
    %v2674 = vmul.f32 %v2659, %v2666
    %v2675 = vadd.f32 %v2673, %v2674
    %v2676 = vtanh.pop %v2675
    %v2677 = vmul.f32 %v2672, %v2676
    %s2678 = smul.u32 6, 4
    %s2679 = smul.addr %s2678, 8
    %s2680 = scalar_lea.vmem [#allocation2], %s2679
    %v2681 = vld [vmem:[%s2680] sm:$0xff]
    %v2682 = vld [vmem:[%s2680 + $0x8] sm:$0xff]
    %v2683 = vld [vmem:[%s2680 + $0x10] sm:$0xff]
    %v2684 = vld [vmem:[%s2680 + $0x18] sm:$0xff]
    %v2685 = vadd.f32 %v2681, %v2603
    %v2686 = vadd.f32 %v2682, %v2605
    %v2687 = vadd.f32 %v2683, %v2644
    %v2688 = vadd.f32 %v2684, %v2646
    %v2689 = vxor.u32 %v2685, 2147483648
    %v2690 = vmul.f32 %v2689, 1.442695
    %v2691 = vpow.pop %v2690
    %v2692 = vadd.f32 %v2691, 1.0
    %v2693 = vrcp.pop %v2692
    %v2694 = vmul.f32 1.0, %v2693
    %v2695 = vxor.u32 %v2686, 2147483648
    %v2696 = vmul.f32 %v2695, 1.442695
    %v2697 = vpow.pop %v2696
    %v2698 = vadd.f32 %v2697, 1.0
    %v2699 = vrcp.pop %v2698
    %v2700 = vmul.f32 1.0, %v2699
    %v2701 = vtanh.pop %v2687
    %v2702 = vxor.u32 %v2688, 2147483648
    %v2703 = vmul.f32 %v2702, 1.442695
    %v2704 = vpow.pop %v2703
    %v2705 = vadd.f32 %v2704, 1.0
    %v2706 = vrcp.pop %v2705
    %v2707 = vmul.f32 1.0, %v2706
    %v2708 = vmul.f32 %v2700, %v2481
    %v2709 = vmul.f32 %v2694, %v2701
    %v2710 = vadd.f32 %v2708, %v2709
    %v2711 = vtanh.pop %v2710
    %v2712 = vmul.f32 %v2707, %v2711
    %v2713 = vpack.c.bf16 %v2712, %v2712
    %v2714 = vpack.c.bf16 %v2677, %v2677
    %2715 = vmatprep.subr.bf16.mxu0 %v1142
    %2716 = vmatpush1.bf16.msra.mxu0 %v1141
    %2717 = vmatprep.subr.bf16.mxu0 %v1134
    %2718 = vmatpush1.bf16.msra.mxu0 %v1133
    %2719 = vmatprep.subr.bf16.mxu0 %v1126
    %2720 = vmatpush1.bf16.msra.mxu0 %v1125
    %2721 = vmatprep.subr.bf16.mxu0 %v1118
    %2722 = vmatpush1.bf16.msra.mxu0 %v1117
    %2723 = vmatprep.subr.bf16.mxu0 %v1110
    %2724 = vmatpush1.bf16.msra.mxu0 %v1109
    %2725 = vmatprep.subr.bf16.mxu0 %v1102
    %2726 = vmatpush1.bf16.msra.mxu0 %v1101
    %2727 = vmatprep.subr.bf16.mxu0 %v1094
    %2728 = vmatpush1.bf16.msra.mxu0 %v1093
    %2729 = vmatprep.subr.bf16.mxu0 %v1086
    %2730 = vmatpush1.bf16.msra.mxu0 %v1085
    %2731 = vmatprep.subr.bf16.mxu0 %v1206
    %2732 = vmatpush2.bf16.msra.mxu0 %v1205
    %2733 = vmatprep.subr.bf16.mxu0 %v1198
    %2734 = vmatpush2.bf16.msra.mxu0 %v1197
    %2735 = vmatprep.subr.bf16.mxu0 %v1190
    %2736 = vmatpush2.bf16.msra.mxu0 %v1189
    %2737 = vmatprep.subr.bf16.mxu0 %v1182
    %2738 = vmatpush2.bf16.msra.mxu0 %v1181
    %2739 = vmatprep.subr.bf16.mxu0 %v1174
    %2740 = vmatpush2.bf16.msra.mxu0 %v1173
    %2741 = vmatprep.subr.bf16.mxu0 %v1166
    %2742 = vmatpush2.bf16.msra.mxu0 %v1165
    %2743 = vmatprep.subr.bf16.mxu0 %v1158
    %2744 = vmatpush2.bf16.msra.mxu0 %v1157
    %2745 = vmatprep.subr.bf16.mxu0 %v1150
    %2746 = vmatpush2.bf16.msra.mxu0 %v1149
    %2747 = vmatprep.mubr.bf16.mxu0 %v2714
    %2748 = vmatmul.mubr.bf16.gmra.mxu0 %v2713
    %v2749 = vpop.f32.mrf.mxu0
    %v2750 = vadd.f32 0.0, %v2749
    %v2751 = vpop.f32.mrf.mxu0
    %v2752 = vadd.f32 0.0, %v2751
    %v2753 = vpop.f32.mrf.mxu0
    %v2754 = vpop.f32.mrf.mxu0
    %2755 = vdwg.mxu0
    %2756 = vmatprep.subr.bf16.mxu0 %v1144
    %2757 = vmatpush1.bf16.msra.mxu0 %v1143
    %2758 = vmatprep.subr.bf16.mxu0 %v1136
    %2759 = vmatpush1.bf16.msra.mxu0 %v1135
    %2760 = vmatprep.subr.bf16.mxu0 %v1128
    %2761 = vmatpush1.bf16.msra.mxu0 %v1127
    %2762 = vmatprep.subr.bf16.mxu0 %v1120
    %2763 = vmatpush1.bf16.msra.mxu0 %v1119
    %2764 = vmatprep.subr.bf16.mxu0 %v1112
    %2765 = vmatpush1.bf16.msra.mxu0 %v1111
    %2766 = vmatprep.subr.bf16.mxu0 %v1104
    %2767 = vmatpush1.bf16.msra.mxu0 %v1103
    %2768 = vmatprep.subr.bf16.mxu0 %v1096
    %2769 = vmatpush1.bf16.msra.mxu0 %v1095
    %2770 = vmatprep.subr.bf16.mxu0 %v1088
    %2771 = vmatpush1.bf16.msra.mxu0 %v1087
    %2772 = vmatprep.subr.bf16.mxu0 %v1208
    %2773 = vmatpush2.bf16.msra.mxu0 %v1207
    %2774 = vmatprep.subr.bf16.mxu0 %v1200
    %2775 = vmatpush2.bf16.msra.mxu0 %v1199
    %2776 = vmatprep.subr.bf16.mxu0 %v1192
    %2777 = vmatpush2.bf16.msra.mxu0 %v1191
    %2778 = vmatprep.subr.bf16.mxu0 %v1184
    %2779 = vmatpush2.bf16.msra.mxu0 %v1183
    %2780 = vmatprep.subr.bf16.mxu0 %v1176
    %2781 = vmatpush2.bf16.msra.mxu0 %v1175
    %2782 = vmatprep.subr.bf16.mxu0 %v1168
    %2783 = vmatpush2.bf16.msra.mxu0 %v1167
    %2784 = vmatprep.subr.bf16.mxu0 %v1160
    %2785 = vmatpush2.bf16.msra.mxu0 %v1159
    %2786 = vmatprep.subr.bf16.mxu0 %v1152
    %2787 = vmatpush2.bf16.msra.mxu0 %v1151
    %2788 = vmatprep.mubr.bf16.mxu0 %v2714
    %2789 = vmatmul.mubr.bf16.gmra.mxu0 %v2713
    %v2790 = vpop.f32.mrf.mxu0
    %v2791 = vadd.f32 0.0, %v2790
    %v2792 = vpop.f32.mrf.mxu0
    %v2793 = vadd.f32 0.0, %v2792
    %v2794 = vpop.f32.mrf.mxu0
    %v2795 = vpop.f32.mrf.mxu0
    %2796 = vdwg.mxu0
    %2797 = vmatprep.subr.bf16.mxu0 %v1146
    %2798 = vmatpush1.bf16.msra.mxu0 %v1145
    %2799 = vmatprep.subr.bf16.mxu0 %v1138
    %2800 = vmatpush1.bf16.msra.mxu0 %v1137
    %2801 = vmatprep.subr.bf16.mxu0 %v1130
    %2802 = vmatpush1.bf16.msra.mxu0 %v1129
    %2803 = vmatprep.subr.bf16.mxu0 %v1122
    %2804 = vmatpush1.bf16.msra.mxu0 %v1121
    %2805 = vmatprep.subr.bf16.mxu0 %v1114
    %2806 = vmatpush1.bf16.msra.mxu0 %v1113
    %2807 = vmatprep.subr.bf16.mxu0 %v1106
    %2808 = vmatpush1.bf16.msra.mxu0 %v1105
    %2809 = vmatprep.subr.bf16.mxu0 %v1098
    %2810 = vmatpush1.bf16.msra.mxu0 %v1097
    %2811 = vmatprep.subr.bf16.mxu0 %v1090
    %2812 = vmatpush1.bf16.msra.mxu0 %v1089
    %2813 = vmatprep.subr.bf16.mxu0 %v1210
    %2814 = vmatpush2.bf16.msra.mxu0 %v1209
    %2815 = vmatprep.subr.bf16.mxu0 %v1202
    %2816 = vmatpush2.bf16.msra.mxu0 %v1201
    %2817 = vmatprep.subr.bf16.mxu0 %v1194
    %2818 = vmatpush2.bf16.msra.mxu0 %v1193
    %2819 = vmatprep.subr.bf16.mxu0 %v1186
    %2820 = vmatpush2.bf16.msra.mxu0 %v1185
    %2821 = vmatprep.subr.bf16.mxu0 %v1178
    %2822 = vmatpush2.bf16.msra.mxu0 %v1177
    %2823 = vmatprep.subr.bf16.mxu0 %v1170
    %2824 = vmatpush2.bf16.msra.mxu0 %v1169
    %2825 = vmatprep.subr.bf16.mxu0 %v1162
    %2826 = vmatpush2.bf16.msra.mxu0 %v1161
    %2827 = vmatprep.subr.bf16.mxu0 %v1154
    %2828 = vmatpush2.bf16.msra.mxu0 %v1153
    %2829 = vmatprep.mubr.bf16.mxu0 %v2714
    %2830 = vmatmul.mubr.bf16.gmra.mxu0 %v2713
    %v2831 = vpop.f32.mrf.mxu0
    %v2832 = vadd.f32 0.0, %v2831
    %v2833 = vpop.f32.mrf.mxu0
    %v2834 = vadd.f32 0.0, %v2833
    %v2835 = vpop.f32.mrf.mxu0
    %v2836 = vpop.f32.mrf.mxu0
    %2837 = vdwg.mxu0
    %2838 = vmatprep.subr.bf16.mxu0 %v1148
    %2839 = vmatpush1.bf16.msra.mxu0 %v1147
    %2840 = vmatprep.subr.bf16.mxu0 %v1140
    %2841 = vmatpush1.bf16.msra.mxu0 %v1139
    %2842 = vmatprep.subr.bf16.mxu0 %v1132
    %2843 = vmatpush1.bf16.msra.mxu0 %v1131
    %2844 = vmatprep.subr.bf16.mxu0 %v1124
    %2845 = vmatpush1.bf16.msra.mxu0 %v1123
    %2846 = vmatprep.subr.bf16.mxu0 %v1116
    %2847 = vmatpush1.bf16.msra.mxu0 %v1115
    %2848 = vmatprep.subr.bf16.mxu0 %v1108
    %2849 = vmatpush1.bf16.msra.mxu0 %v1107
    %2850 = vmatprep.subr.bf16.mxu0 %v1100
    %2851 = vmatpush1.bf16.msra.mxu0 %v1099
    %2852 = vmatprep.subr.bf16.mxu0 %v1092
    %2853 = vmatpush1.bf16.msra.mxu0 %v1091
    %2854 = vmatprep.subr.bf16.mxu0 %v1212
    %2855 = vmatpush2.bf16.msra.mxu0 %v1211
    %2856 = vmatprep.subr.bf16.mxu0 %v1204
    %2857 = vmatpush2.bf16.msra.mxu0 %v1203
    %2858 = vmatprep.subr.bf16.mxu0 %v1196
    %2859 = vmatpush2.bf16.msra.mxu0 %v1195
    %2860 = vmatprep.subr.bf16.mxu0 %v1188
    %2861 = vmatpush2.bf16.msra.mxu0 %v1187
    %2862 = vmatprep.subr.bf16.mxu0 %v1180
    %2863 = vmatpush2.bf16.msra.mxu0 %v1179
    %2864 = vmatprep.subr.bf16.mxu0 %v1172
    %2865 = vmatpush2.bf16.msra.mxu0 %v1171
    %2866 = vmatprep.subr.bf16.mxu0 %v1164
    %2867 = vmatpush2.bf16.msra.mxu0 %v1163
    %2868 = vmatprep.subr.bf16.mxu0 %v1156
    %2869 = vmatpush2.bf16.msra.mxu0 %v1155
    %2870 = vmatprep.mubr.bf16.mxu0 %v2714
    %2871 = vmatmul.mubr.bf16.gmra.mxu0 %v2713
    %v2872 = vpop.f32.mrf.mxu0
    %v2873 = vadd.f32 0.0, %v2872
    %v2874 = vpop.f32.mrf.mxu0
    %v2875 = vadd.f32 0.0, %v2874
    %v2876 = vpop.f32.mrf.mxu0
    %v2877 = vpop.f32.mrf.mxu0
    %2878 = vdwg.mxu0
    %v2879 = vadd.f32 %v2750, %v515
    %v2880 = vadd.f32 %v2752, %v519
    %v2881 = vadd.f32 %v2791, %v523
    %v2882 = vadd.f32 %v2793, %v527
    %v2883 = vxor.u32 %v2879, 2147483648
    %v2884 = vmul.f32 %v2883, 1.442695
    %v2885 = vpow.pop %v2884
    %v2886 = vadd.f32 %v2885, 1.0
    %v2887 = vrcp.pop %v2886
    %v2888 = vmul.f32 1.0, %v2887
    %v2889 = vxor.u32 %v2880, 2147483648
    %v2890 = vmul.f32 %v2889, 1.442695
    %v2891 = vpow.pop %v2890
    %v2892 = vadd.f32 %v2891, 1.0
    %v2893 = vrcp.pop %v2892
    %v2894 = vmul.f32 1.0, %v2893
    %v2895 = vtanh.pop %v2881
    %v2896 = vxor.u32 %v2882, 2147483648
    %v2897 = vmul.f32 %v2896, 1.442695
    %v2898 = vpow.pop %v2897
    %v2899 = vadd.f32 %v2898, 1.0
    %v2900 = vrcp.pop %v2899
    %v2901 = vmul.f32 1.0, %v2900
    %v2902 = vmul.f32 %v2894, %v2675
    %v2903 = vmul.f32 %v2888, %v2895
    %v2904 = vadd.f32 %v2902, %v2903
    %v2905 = vtanh.pop %v2904
    %v2906 = vmul.f32 %v2901, %v2905
    %s2907 = smul.u32 7, 4
    %s2908 = smul.addr %s2907, 8
    %s2909 = scalar_lea.vmem [#allocation2], %s2908
    %v2910 = vld [vmem:[%s2909] sm:$0xff]
    %v2911 = vld [vmem:[%s2909 + $0x8] sm:$0xff]
    %v2912 = vld [vmem:[%s2909 + $0x10] sm:$0xff]
    %v2913 = vld [vmem:[%s2909 + $0x18] sm:$0xff]
    %v2914 = vadd.f32 %v2910, %v2832
    %v2915 = vadd.f32 %v2911, %v2834
    %v2916 = vadd.f32 %v2912, %v2873
    %v2917 = vadd.f32 %v2913, %v2875
    %v2918 = vxor.u32 %v2914, 2147483648
    %v2919 = vmul.f32 %v2918, 1.442695
    %v2920 = vpow.pop %v2919
    %v2921 = vadd.f32 %v2920, 1.0
    %v2922 = vrcp.pop %v2921
    %v2923 = vmul.f32 1.0, %v2922
    %v2924 = vxor.u32 %v2915, 2147483648
    %v2925 = vmul.f32 %v2924, 1.442695
    %v2926 = vpow.pop %v2925
    %v2927 = vadd.f32 %v2926, 1.0
    %v2928 = vrcp.pop %v2927
    %v2929 = vmul.f32 1.0, %v2928
    %v2930 = vtanh.pop %v2916
    %v2931 = vxor.u32 %v2917, 2147483648
    %v2932 = vmul.f32 %v2931, 1.442695
    %v2933 = vpow.pop %v2932
    %v2934 = vadd.f32 %v2933, 1.0
    %v2935 = vrcp.pop %v2934
    %v2936 = vmul.f32 1.0, %v2935
    %v2937 = vmul.f32 %v2929, %v2710
    %v2938 = vmul.f32 %v2923, %v2930
    %v2939 = vadd.f32 %v2937, %v2938
    %v2940 = vtanh.pop %v2939
    %v2941 = vmul.f32 %v2936, %v2940
    %v2942 = vpack.c.bf16 %v2941, %v2941
    %v2943 = vpack.c.bf16 %v2906, %v2906
    %2944 = vmatprep.subr.bf16.mxu0 %v1142
    %2945 = vmatpush1.bf16.msra.mxu0 %v1141
    %2946 = vmatprep.subr.bf16.mxu0 %v1134
    %2947 = vmatpush1.bf16.msra.mxu0 %v1133
    %2948 = vmatprep.subr.bf16.mxu0 %v1126
    %2949 = vmatpush1.bf16.msra.mxu0 %v1125
    %2950 = vmatprep.subr.bf16.mxu0 %v1118
    %2951 = vmatpush1.bf16.msra.mxu0 %v1117
    %2952 = vmatprep.subr.bf16.mxu0 %v1110
    %2953 = vmatpush1.bf16.msra.mxu0 %v1109
    %2954 = vmatprep.subr.bf16.mxu0 %v1102
    %2955 = vmatpush1.bf16.msra.mxu0 %v1101
    %2956 = vmatprep.subr.bf16.mxu0 %v1094
    %2957 = vmatpush1.bf16.msra.mxu0 %v1093
    %2958 = vmatprep.subr.bf16.mxu0 %v1086
    %2959 = vmatpush1.bf16.msra.mxu0 %v1085
    %2960 = vmatprep.subr.bf16.mxu0 %v1206
    %2961 = vmatpush2.bf16.msra.mxu0 %v1205
    %2962 = vmatprep.subr.bf16.mxu0 %v1198
    %2963 = vmatpush2.bf16.msra.mxu0 %v1197
    %2964 = vmatprep.subr.bf16.mxu0 %v1190
    %2965 = vmatpush2.bf16.msra.mxu0 %v1189
    %2966 = vmatprep.subr.bf16.mxu0 %v1182
    %2967 = vmatpush2.bf16.msra.mxu0 %v1181
    %2968 = vmatprep.subr.bf16.mxu0 %v1174
    %2969 = vmatpush2.bf16.msra.mxu0 %v1173
    %2970 = vmatprep.subr.bf16.mxu0 %v1166
    %2971 = vmatpush2.bf16.msra.mxu0 %v1165
    %2972 = vmatprep.subr.bf16.mxu0 %v1158
    %2973 = vmatpush2.bf16.msra.mxu0 %v1157
    %2974 = vmatprep.subr.bf16.mxu0 %v1150
    %2975 = vmatpush2.bf16.msra.mxu0 %v1149
    %2976 = vmatprep.mubr.bf16.mxu0 %v2943
    %2977 = vmatmul.mubr.bf16.gmra.mxu0 %v2942
    %v2978 = vpop.f32.mrf.mxu0
    %v2979 = vadd.f32 0.0, %v2978
    %v2980 = vpop.f32.mrf.mxu0
    %v2981 = vadd.f32 0.0, %v2980
    %v2982 = vpop.f32.mrf.mxu0
    %v2983 = vpop.f32.mrf.mxu0
    %2984 = vdwg.mxu0
    %2985 = vmatprep.subr.bf16.mxu0 %v1144
    %2986 = vmatpush1.bf16.msra.mxu0 %v1143
    %2987 = vmatprep.subr.bf16.mxu0 %v1136
    %2988 = vmatpush1.bf16.msra.mxu0 %v1135
    %2989 = vmatprep.subr.bf16.mxu0 %v1128
    %2990 = vmatpush1.bf16.msra.mxu0 %v1127
    %2991 = vmatprep.subr.bf16.mxu0 %v1120
    %2992 = vmatpush1.bf16.msra.mxu0 %v1119
    %2993 = vmatprep.subr.bf16.mxu0 %v1112
    %2994 = vmatpush1.bf16.msra.mxu0 %v1111
    %2995 = vmatprep.subr.bf16.mxu0 %v1104
    %2996 = vmatpush1.bf16.msra.mxu0 %v1103
    %2997 = vmatprep.subr.bf16.mxu0 %v1096
    %2998 = vmatpush1.bf16.msra.mxu0 %v1095
    %2999 = vmatprep.subr.bf16.mxu0 %v1088
    %3000 = vmatpush1.bf16.msra.mxu0 %v1087
    %3001 = vmatprep.subr.bf16.mxu0 %v1208
    %3002 = vmatpush2.bf16.msra.mxu0 %v1207
    %3003 = vmatprep.subr.bf16.mxu0 %v1200
    %3004 = vmatpush2.bf16.msra.mxu0 %v1199
    %3005 = vmatprep.subr.bf16.mxu0 %v1192
    %3006 = vmatpush2.bf16.msra.mxu0 %v1191
    %3007 = vmatprep.subr.bf16.mxu0 %v1184
    %3008 = vmatpush2.bf16.msra.mxu0 %v1183
    %3009 = vmatprep.subr.bf16.mxu0 %v1176
    %3010 = vmatpush2.bf16.msra.mxu0 %v1175
    %3011 = vmatprep.subr.bf16.mxu0 %v1168
    %3012 = vmatpush2.bf16.msra.mxu0 %v1167
    %3013 = vmatprep.subr.bf16.mxu0 %v1160
    %3014 = vmatpush2.bf16.msra.mxu0 %v1159
    %3015 = vmatprep.subr.bf16.mxu0 %v1152
    %3016 = vmatpush2.bf16.msra.mxu0 %v1151
    %3017 = vmatprep.mubr.bf16.mxu0 %v2943
    %3018 = vmatmul.mubr.bf16.gmra.mxu0 %v2942
    %v3019 = vpop.f32.mrf.mxu0
    %v3020 = vadd.f32 0.0, %v3019
    %v3021 = vpop.f32.mrf.mxu0
    %v3022 = vadd.f32 0.0, %v3021
    %v3023 = vpop.f32.mrf.mxu0
    %v3024 = vpop.f32.mrf.mxu0
    %3025 = vdwg.mxu0
    %v3026 = vadd.f32 %v2979, %v515
    %v3027 = vadd.f32 %v2981, %v519
    %v3028 = vadd.f32 %v3020, %v523
    %v3029 = vadd.f32 %v3022, %v527
    %v3030 = vxor.u32 %v3026, 2147483648
    %v3031 = vmul.f32 %v3030, 1.442695
    %v3032 = vpow.pop %v3031
    %v3033 = vadd.f32 %v3032, 1.0
    %v3034 = vrcp.pop %v3033
    %v3035 = vmul.f32 1.0, %v3034
    %v3036 = vxor.u32 %v3027, 2147483648
    %v3037 = vmul.f32 %v3036, 1.442695
    %v3038 = vpow.pop %v3037
    %v3039 = vadd.f32 %v3038, 1.0
    %v3040 = vrcp.pop %v3039
    %v3041 = vmul.f32 1.0, %v3040
    %v3042 = vtanh.pop %v3028
    %v3043 = vxor.u32 %v3029, 2147483648
    %v3044 = vmul.f32 %v3043, 1.442695
    %v3045 = vpow.pop %v3044
    %v3046 = vadd.f32 %v3045, 1.0
    %v3047 = vrcp.pop %v3046
    %v3048 = vmul.f32 1.0, %v3047
    %v3049 = vmul.f32 %v3041, %v2904
    %v3050 = vmul.f32 %v3035, %v3042
    %v3051 = vadd.f32 %v3049, %v3050
    %v3052 = vtanh.pop %v3051
    %v3053 = vmul.f32 %v3048, %v3052
    %s3054 = smul.u32 4, 16
    %s3055 = smul.u32 %s3054, 1
    %s3056 = sshll.u32 %s3055, 4
    %3057 = dma.done %s74, %s3056
    %v3058 = vpack.c.bf16 %v3053, %v3053
    %v3059 = vld [vmem:[#allocation4] sm:$0xf]
    %v3060 = vld [vmem:[#allocation4 + $0x4] sm:$0xf]
    %v3061 = vld [vmem:[#allocation4 + $0x8] sm:$0xf]
    %v3062 = vld [vmem:[#allocation4 + $0xc] sm:$0xf]
    %v3063 = vld [vmem:[#allocation4 + $0x10] sm:$0xf]
    %v3064 = vld [vmem:[#allocation4 + $0x14] sm:$0xf]
    %v3065 = vld [vmem:[#allocation4 + $0x18] sm:$0xf]
    %v3066 = vld [vmem:[#allocation4 + $0x1c] sm:$0xf]
    %v3067 = vld [vmem:[#allocation4 + $0x20] sm:$0xf]
    %v3068 = vld [vmem:[#allocation4 + $0x24] sm:$0xf]
    %v3069 = vld [vmem:[#allocation4 + $0x28] sm:$0xf]
    %v3070 = vld [vmem:[#allocation4 + $0x2c] sm:$0xf]
    %v3071 = vld [vmem:[#allocation4 + $0x30] sm:$0xf]
    %v3072 = vld [vmem:[#allocation4 + $0x34] sm:$0xf]
    %v3073 = vld [vmem:[#allocation4 + $0x38] sm:$0xf]
    %v3074 = vld [vmem:[#allocation4 + $0x3c] sm:$0xf]
    %v3075 = vld [vmem:[%s6] sm:$0x1]
    %v3077 = vlaneseq
    %v3078 = vshrl.u32 %v3077, 7
    %v3079 = vsub.s32 0, %v3078
    %v3080 = vrot.slane %v3075, %v3079
    %v3098 = vunpack.c.l.b16 %v3059
    %v3099 = vunpack.c.l.b16 %v3060
    %v3100 = vunpack.c.l.b16 %v3061
    %v3101 = vunpack.c.l.b16 %v3062
    %v3102 = vunpack.c.l.b16 %v3063
    %v3103 = vunpack.c.l.b16 %v3064
    %v3104 = vunpack.c.l.b16 %v3065
    %v3105 = vunpack.c.l.b16 %v3066
    %v3106 = vunpack.c.l.b16 %v3067
    %v3107 = vunpack.c.l.b16 %v3068
    %v3108 = vunpack.c.l.b16 %v3069
    %v3109 = vunpack.c.l.b16 %v3070
    %v3110 = vunpack.c.l.b16 %v3071
    %v3111 = vunpack.c.l.b16 %v3072
    %v3112 = vunpack.c.l.b16 %v3073
    %v3113 = vunpack.c.l.b16 %v3074
    %v3114 = vpack.c.b16 %v3099, %v3098
    %v3115 = vpack.c.b16 %v3101, %v3100
    %v3116 = vpack.c.b16 %v3103, %v3102
    %v3117 = vpack.c.b16 %v3105, %v3104
    %v3118 = vpack.c.b16 %v3107, %v3106
    %v3119 = vpack.c.b16 %v3109, %v3108
    %v3120 = vpack.c.b16 %v3111, %v3110
    %v3121 = vpack.c.b16 %v3113, %v3112
    %3130 = vmatprep.subr.bf16.mxu0 0
    %3131 = vmatpush1.bf16.msra.mxu0 %v3121
    %3132 = vmatprep.subr.bf16.mxu0 0
    %3133 = vmatpush1.bf16.msra.mxu0 %v3120
    %3134 = vmatprep.subr.bf16.mxu0 0
    %3135 = vmatpush1.bf16.msra.mxu0 %v3119
    %3136 = vmatprep.subr.bf16.mxu0 0
    %3137 = vmatpush1.bf16.msra.mxu0 %v3118
    %3138 = vmatprep.subr.bf16.mxu0 0
    %3139 = vmatpush1.bf16.msra.mxu0 %v3117
    %3140 = vmatprep.subr.bf16.mxu0 0
    %3141 = vmatpush1.bf16.msra.mxu0 %v3116
    %3142 = vmatprep.subr.bf16.mxu0 0
    %3143 = vmatpush1.bf16.msra.mxu0 %v3115
    %3144 = vmatprep.subr.bf16.mxu0 0
    %3145 = vmatpush1.bf16.msra.mxu0 %v3114
    %3146 = vmatprep.subr.bf16.mxu0 0
    %3147 = vmatpush2.bf16.msra.mxu0 0
    %3148 = vmatprep.subr.bf16.mxu0 0
    %3149 = vmatpush2.bf16.msra.mxu0 0
    %3150 = vmatprep.subr.bf16.mxu0 0
    %3151 = vmatpush2.bf16.msra.mxu0 0
    %3152 = vmatprep.subr.bf16.mxu0 0
    %3153 = vmatpush2.bf16.msra.mxu0 0
    %3154 = vmatprep.subr.bf16.mxu0 0
    %3155 = vmatpush2.bf16.msra.mxu0 0
    %3156 = vmatprep.subr.bf16.mxu0 0
    %3157 = vmatpush2.bf16.msra.mxu0 0
    %3158 = vmatprep.subr.bf16.mxu0 0
    %3159 = vmatpush2.bf16.msra.mxu0 0
    %3160 = vmatprep.subr.bf16.mxu0 0
    %3161 = vmatpush2.bf16.msra.mxu0 0
    %3162 = vmatprep.mubr.bf16.mxu0 0
    %3163 = vmatmul.mubr.bf16.gmra.mxu0 %v3058
    %v3164 = vpop.f32.mrf.mxu0
    %v3165 = vadd.f32 %v3080, %v3164
    %v3166 = vpop.f32.mrf.mxu0
    %v3167 = vpop.f32.mrf.mxu0
    %v3168 = vpop.f32.mrf.mxu0
    %3169 = vdwg.mxu0
    %3170 = vst [vmem:[#allocation12] sm:$0xff] %v3165
    // Predicated region
    $region42: #{tpu_custom_call.1} parent=1 // pred_check
      _
    $region43: #{tpu_custom_call.1} parent=1 // pred_check_branch
      %3172 = sbr.rel (0) target = $region45
    $region44: #{tpu_custom_call.1} parent=1 // pred_region
      %s3174 = ssub.s32 128, 128
      %3175 = vsyncadd [#allocation8], %s3174
      %s3177 = sshll.u32 [#allocation12], 4
      %s3178 = int_to_ptr.vmem [resolvable:$true] %s3177
      %3180 = dma.vmem_to_hbm [thread:$0]  %s3178, 128, %s7, [#allocation8]
    $region45: #{tpu_custom_call.1} parent=1 // pred_fallthru
      _
    // Predicated region
    $region46: #{tpu_custom_call.1} parent=1 // pred_check
      _
    $region47: #{tpu_custom_call.1} parent=1 // pred_check_branch
      %3182 = sbr.rel (0) target = $region49
    $region48: #{tpu_custom_call.1} parent=1 // pred_region
      %3183 = dma.done [#allocation8], 128
    $region49: #{tpu_custom_call.1} parent=1 // pred_fallthru
      _
    %3184 = vsyncpa [#allocation7], 1
    %3185 = vsyncpa [#allocation10], 1
    %3186 = vsyncpa [#allocation8], 1
  %3187 = vsyncmov [#allocation5]
  %s3188 = vpop.sfrf %3187
  %p3189 = scmp.eq.s32.totalorder %s3188, 0
  %p3190 = pneg %p3189
  %3192 = shalt.err (%p3190)
  %s3193 = scalar_lea.sflag [#allocation5], 1
  %3194 = vsyncmov %s3193
  %s3195 = vpop.sfrf %3194
  %p3196 = scmp.eq.s32.totalorder %s3195, 0
  %p3197 = pneg %p3196
  %3199 = shalt.err (%p3197)

</llo_original>
